<compile_context>
chip_gen: v7x
topology: tpu7x:2x2x1
jax: 0.10.0
libtpu: 0.0.40
codegen_flags: <defaults>
</compile_context>

<pallas_src>
import math
import functools

import jax
import jax.numpy as jnp
from jax.experimental import pallas as pl
from jax.experimental.pallas import tpu as pltpu


# ----------------------------- Fused MHA kernel -----------------------------
def _mha_kernel(*refs, h, d_k, has_mask, return_attn, mxu_dtype):
    if has_mask:
        q_ref, k_ref, v_ref, m_ref, w_ref, b_ref = refs[:6]
        out_refs = refs[6:]
    else:
        q_ref, k_ref, v_ref, w_ref, b_ref = refs[:5]
        m_ref = None
        out_refs = refs[5:]
    o_ref = out_refs[0]
    p_ref = out_refs[1] if return_attn else None

    f32 = jnp.float32
    bt, sq, dm = q_ref.shape
    sk = k_ref.shape[1]

    def mx(a):  # cast MXU operands; no-op when mxu_dtype == array dtype
        return a.astype(mxu_dtype)

    w = w_ref[...]            # (4, dm, dm), already in mxu_dtype (pre-cast at init)
    b = b_ref[...]            # (4, 1, dm) f32

    # Flatten the batch tile into MXU rows (leading-dim merge: free relayout).
    xq = mx(q_ref[...].reshape(bt * sq, dm))
    xk = mx(k_ref[...].reshape(bt * sk, dm))
    xv = mx(v_ref[...].reshape(bt * sk, dm))

    # Input projections (MXU, f32 accumulation).  1/sqrt(d_k) is folded into
    # w[0] / b[0] at init time, so no per-step scale multiply here.
    q = jnp.dot(xq, w[0], preferred_element_type=f32) + b[0]
    k = jnp.dot(xk, w[1], preferred_element_type=f32) + b[1]
    v = jnp.dot(xv, w[2], preferred_element_type=f32) + b[2]

    if has_mask:
        # One compare for all heads (hoisted out of the head loop).
        masked = m_ref[...] == 0                         # (bt, sq, sk) bool

    qm, km, vm = mx(q), mx(k), mx(v)
    neg = jnp.float32(-1000000000.0)

    # Per-head attention with the output projection accumulated per head:
    # no lane-axis concatenate, no materialized (rows, dm) ctx intermediate.
    out_acc = jnp.zeros((bt * sq, dm), f32)
    for i in range(h):                                   # static unrolled head loop
        sl = slice(i * d_k, (i + 1) * d_k)
        qi = qm[:, sl].reshape(bt, sq, d_k)
        ki = km[:, sl].reshape(bt, sk, d_k)
        vi = vm[:, sl].reshape(bt, sk, d_k)

        # scores = qi @ ki^T (lane contraction, no explicit transpose).
        s = jnp.einsum('bqd,bkd->bqk', qi, ki, preferred_element_type=f32)
        if has_mask:
            s = jnp.where(masked, neg, s)                # exact masked_fill semantics

        s = s - jnp.max(s, axis=-1, keepdims=True)
        e = jnp.exp(s)
        denom = jnp.sum(e, axis=-1, keepdims=True)
        # exact reciprocal when probabilities are returned, EUP approx otherwise
        p = e * pl.reciprocal(denom, approx=not return_attn)

        ctx = jnp.einsum('bqk,bkd->bqd', mx(p), vi,
                         preferred_element_type=f32).reshape(bt * sq, d_k)
        # Accumulate the output projection per head (sublane slice of Wo is cheap).
        out_acc = out_acc + jnp.dot(mx(ctx), w[3][sl, :], preferred_element_type=f32)

        if return_attn:
            p_ref[:, i, :, :] = p.astype(p_ref.dtype)

    out = out_acc + b[3]
    o_ref[...] = out.reshape(bt, sq, dm).astype(o_ref.dtype)


# --------------------------------- Module -----------------------------------
class MultiHeadedAttentionPallas:
    def __init__(self, h, d_model, key, dtype=jnp.float32):
        assert d_model % h == 0
        self.h = h
        self.d_k = d_model // h
        self.d_model = d_model
        self.attn = None
        # Deterministic init (PyTorch-Linear-style uniform bounds), stacked so the
        # kernel sees one resident weight ref and one resident bias ref.
        bound = 1.0 / math.sqrt(d_model)
        kw, kb = jax.random.split(key)
        # stored as (d_in, d_out) so y = x @ w + b
        self.w = jax.random.uniform(kw, (4, d_model, d_model), dtype,
                                    minval=-bound, maxval=bound)
        self.b = jax.random.uniform(kb, (4, 1, d_model), dtype,
                                    minval=-bound, maxval=bound)
        # Init-time fold of 1/sqrt(d_k) into the query projection (review item).
        scale = 1.0 / math.sqrt(self.d_k)
        self.w_fused = self.w.at[0].multiply(scale)
        self.b_fused = self.b.at[0].multiply(scale)
        # Pre-cast bf16 weight copy so the fast path DMAs half the weight bytes.
        self.w_fused_bf16 = self.w_fused.astype(jnp.bfloat16)

    def _weights_for(self, mxu_dtype):
        if jnp.dtype(mxu_dtype) == jnp.dtype(jnp.bfloat16):
            return self.w_fused_bf16
        if jnp.dtype(mxu_dtype) == self.w_fused.dtype:
            return self.w_fused
        return self.w_fused.astype(mxu_dtype)

    def __call__(self, query, key, value, mask=None, need_weights=False,
                 mxu_dtype=jnp.bfloat16, block_b=None):
        B, Sq, dm = query.shape
        Sk = key.shape[1]
        assert dm == self.d_model
        has_mask = mask is not None

        # Batch tile: target >= 256 MXU rows (Bt*Sq) per grid step.
        if block_b is None:
            block_b = max(1, min(B, -(-256 // max(Sq, 1))))
        bt = int(min(block_b, B))
        nb = -(-B // bt)
        Bp = nb * bt

        inputs = [query, key, value]
        if has_mask:
            # int8 mask: 4x less DMA/VMEM than int32, shared by all heads.
            inputs.append(mask.reshape(B, Sq, Sk).astype(jnp.int8))
        if Bp != B:
            pad = ((0, Bp - B), (0, 0), (0, 0))
            inputs = [jnp.pad(x, pad) for x in inputs]
        inputs += [self._weights_for(mxu_dtype), self.b_fused]

        kern = functools.partial(_mha_kernel, h=self.h, d_k=self.d_k,
                                 has_mask=has_mask, return_attn=need_weights,
                                 mxu_dtype=mxu_dtype)

        # Rough VMEM budget (f32 upper bound): weights + double-buffered blocks +
        # in-flight intermediates; capped at the v7x physical 64 MiB.
        wbytes = (4 * dm * dm + 4 * dm) * 4
        blk = (2 * bt * Sq * dm + 2 * bt * Sk * dm) * 4
        if has_mask:
            blk += bt * Sq * Sk
        if need_weights:
            blk += bt * self.h * Sq * Sk * 4
        interm = (4 * bt * max(Sq, Sk) * dm + 6 * bt * Sq * Sk) * 4
        est = 2 * wbytes + 2 * blk + interm
        vmem_limit = int(min(64 * 2 ** 20, max(32 * 2 ** 20, 2 * est)))

        def run(single_buffer_weights):
            in_specs = [
                pl.BlockSpec((bt, Sq, dm), lambda i: (i, 0, 0)),   # query
                pl.BlockSpec((bt, Sk, dm), lambda i: (i, 0, 0)),   # key
                pl.BlockSpec((bt, Sk, dm), lambda i: (i, 0, 0)),   # value
            ]
            if has_mask:
                in_specs.append(pl.BlockSpec((bt, Sq, Sk), lambda i: (i, 0, 0)))
            if single_buffer_weights:
                # Constant index_map -> the second pipeline buffer is pure waste.
                in_specs += [
                    pl.BlockSpec((4, dm, dm), lambda i: (0, 0, 0),
                                 pipeline_mode=pl.Buffered(1)),
                    pl.BlockSpec((4, 1, dm), lambda i: (0, 0, 0),
                                 pipeline_mode=pl.Buffered(1)),
                ]
            else:
                in_specs += [
                    pl.BlockSpec((4, dm, dm), lambda i: (0, 0, 0)),
                    pl.BlockSpec((4, 1, dm), lambda i: (0, 0, 0)),
                ]

            if need_weights:
                out_shape = (jax.ShapeDtypeStruct((Bp, Sq, dm), query.dtype),
                             jax.ShapeDtypeStruct((Bp, self.h, Sq, Sk), jnp.float32))
                out_specs = (pl.BlockSpec((bt, Sq, dm), lambda i: (i, 0, 0)),
                             pl.BlockSpec((bt, self.h, Sq, Sk),
                                          lambda i: (i, 0, 0, 0)))
            else:
                out_shape = jax.ShapeDtypeStruct((Bp, Sq, dm), query.dtype)
                out_specs = pl.BlockSpec((bt, Sq, dm), lambda i: (i, 0, 0))

            return pl.pallas_call(
                kern,
                out_shape=out_shape,
                grid=(nb,),
                in_specs=in_specs,
                out_specs=out_specs,
                compiler_params=pltpu.CompilerParams(
                    dimension_semantics=("parallel",),
                    vmem_limit_bytes=vmem_limit),
            )(*inputs)

        try:
            res = run(True)
        except Exception:
            # Fallback for Pallas builds that reject pipeline_mode=pl.Buffered(1).
            res = run(False)

        if need_weights:
            out, attn = res
            self.attn = attn[:B] if Bp != B else attn
        else:
            out = res
            self.attn = None
        return out[:B] if Bp != B else out


# -------------------------------- Reference ---------------------------------
def reference_mha(mha, query, key, value, mask=None, return_attn=False):
    B, Sq, dm = query.shape
    Sk = key.shape[1]
    h, d_k = mha.h, mha.d_k

    def lin(x, i):
        return x @ mha.w[i] + mha.b[i]

    def split(y):
        return y.reshape(B, -1, h, d_k).transpose(0, 2, 1, 3)

    q = split(lin(query, 0))
    k = split(lin(key, 1))
    v = split(lin(value, 2))
    scores = jnp.einsum("bhqd,bhkd->bhqk", q, k) / math.sqrt(d_k)
    if mask is not None:
        scores = jnp.where(mask.reshape(B, 1, Sq, Sk) == 0, -1000000000.0, scores)
    p = jax.nn.softmax(scores, axis=-1)
    x = jnp.einsum("bhqk,bhkd->bhqd", p, v)
    x = x.transpose(0, 2, 1, 3).reshape(B, Sq, h * d_k)
    out = x @ mha.w[3] + mha.b[3]
    if return_attn:
        return out, p
    return out


# ----------------------------------- Main ------------------------------------
if __name__ == "__main__":
    B, S, d_model, h = 2, 8, 32, 4

    root = jax.random.PRNGKey(0)
    k_params, k_q, k_k, k_v, k_m = jax.random.split(root, 5)

    mha = MultiHeadedAttentionPallas(h, d_model, k_params)

    query = jax.random.normal(k_q, (B, S, d_model), jnp.float32)
    key = jax.random.normal(k_k, (B, S, d_model), jnp.float32)
    value = jax.random.normal(k_v, (B, S, d_model), jnp.float32)
    mask = (jax.random.uniform(k_m, (B, S, S)) > 0.3).astype(jnp.int32)

    # --- f32-MXU path: exact parity with the reference (no mask, fast path) ---
    out = jax.block_until_ready(mha(query, key, value, mask=None,
                                    mxu_dtype=jnp.float32))
    ref = reference_mha(mha, query, key, value, mask=None)
    assert out.shape == (B, S, d_model)
    assert jnp.allclose(out, ref, atol=2e-3, rtol=2e-3), \
        float(jnp.max(jnp.abs(out - ref)))

    # --- f32-MXU path: masked, attention probabilities requested ---
    out_m = jax.block_until_ready(mha(query, key, value, mask=mask,
                                      need_weights=True, mxu_dtype=jnp.float32))
    ref_m, p_exp = reference_mha(mha, query, key, value, mask=mask, return_attn=True)
    assert jnp.allclose(out_m, ref_m, atol=2e-3, rtol=2e-3), \
        float(jnp.max(jnp.abs(out_m - ref_m)))
    assert mha.attn is not None and mha.attn.shape == (B, h, S, S)
    assert jnp.allclose(mha.attn, p_exp, atol=2e-3, rtol=2e-3)

    # --- default bf16-MXU / f32-accumulate fast path (perf configuration) ---
    out_bf = jax.block_until_ready(mha(query, key, value, mask=mask))
    assert out_bf.shape == (B, S, d_model)
    assert jnp.allclose(out_bf, ref_m, atol=6e-2, rtol=6e-2), \
        float(jnp.max(jnp.abs(out_bf - ref_m)))

    print("KERNEL_OK")
</pallas_src>

<mosaic_0001>
module attributes {stable_mosaic.version = 11 : i64} {
  func.func @_mha_kernel(%arg0: i32, %arg1: memref<2x8x32xf32, #tpu.memory_space<vmem>>, %arg2: memref<2x8x32xf32, #tpu.memory_space<vmem>>, %arg3: memref<2x8x32xf32, #tpu.memory_space<vmem>>, %arg4: memref<4x32x32xf32, #tpu.memory_space<vmem>>, %arg5: memref<4x1x32xf32, #tpu.memory_space<vmem>>, %arg6: memref<2x8x32xf32, #tpu.memory_space<vmem>>) attributes {dimension_semantics = [#tpu.dimension_semantics<parallel>], iteration_bounds = array<i64: 1>, scalar_prefetch = 0 : i64, scratch_operands = 0 : i64, tpu.core_type = #tpu.core_type<tc>, window_params = [{transform_indices = @transform_0, window_bounds = array<i64: 2, 8, 32>}, {transform_indices = @transform_1, window_bounds = array<i64: 2, 8, 32>}, {transform_indices = @transform_2, window_bounds = array<i64: 2, 8, 32>}, {pipeline_mode = #tpu.pipeline_mode<synchronous>, transform_indices = @transform_3, window_bounds = array<i64: 4, 32, 32>}, {pipeline_mode = #tpu.pipeline_mode<synchronous>, transform_indices = @transform_4, window_bounds = array<i64: 4, 1, 32>}, {transform_indices = @transform_5, window_bounds = array<i64: 2, 8, 32>}]} {
    %c0 = arith.constant 0 : index
    %c0_0 = arith.constant 0 : index
    %c0_1 = arith.constant 0 : index
    %0 = vector.load %arg4[%c0, %c0_0, %c0_1] : memref<4x32x32xf32, #tpu.memory_space<vmem>>, vector<4x32x32xf32>
    %c0_2 = arith.constant 0 : index
    %c0_3 = arith.constant 0 : index
    %c0_4 = arith.constant 0 : index
    %1 = vector.load %arg5[%c0_2, %c0_3, %c0_4] : memref<4x1x32xf32, #tpu.memory_space<vmem>>, vector<4x1x32xf32>
    %c0_5 = arith.constant 0 : index
    %c0_6 = arith.constant 0 : index
    %c0_7 = arith.constant 0 : index
    %2 = vector.load %arg1[%c0_5, %c0_6, %c0_7] : memref<2x8x32xf32, #tpu.memory_space<vmem>>, vector<2x8x32xf32>
    %3 = vector.shape_cast %2 : vector<2x8x32xf32> to vector<16x32xf32>
    %c0_8 = arith.constant 0 : index
    %c0_9 = arith.constant 0 : index
    %c0_10 = arith.constant 0 : index
    %4 = vector.load %arg2[%c0_8, %c0_9, %c0_10] : memref<2x8x32xf32, #tpu.memory_space<vmem>>, vector<2x8x32xf32>
    %5 = vector.shape_cast %4 : vector<2x8x32xf32> to vector<16x32xf32>
    %c0_11 = arith.constant 0 : index
    %c0_12 = arith.constant 0 : index
    %c0_13 = arith.constant 0 : index
    %6 = vector.load %arg3[%c0_11, %c0_12, %c0_13] : memref<2x8x32xf32, #tpu.memory_space<vmem>>, vector<2x8x32xf32>
    %7 = vector.shape_cast %6 : vector<2x8x32xf32> to vector<16x32xf32>
    %8 = vector.extract_strided_slice %0 {offsets = [0, 0, 0], sizes = [1, 32, 32], strides = [1, 1, 1]} : vector<4x32x32xf32> to vector<1x32x32xf32>
    %9 = vector.shape_cast %8 : vector<1x32x32xf32> to vector<32x32xf32>
    %cst = arith.constant dense<0.000000e+00> : vector<16x32xf32>
    %10 = tpu.matmul %3, %9, %cst {dimension_numbers = #tpu.dot_dimension_numbers<[1], [0], [0], [1], [0, 0, 1, 1], [], []>} : vector<16x32xf32>, vector<32x32xf32>, vector<16x32xf32> -> vector<16x32xf32>
    %11 = vector.extract_strided_slice %1 {offsets = [0, 0, 0], sizes = [1, 1, 32], strides = [1, 1, 1]} : vector<4x1x32xf32> to vector<1x1x32xf32>
    %12 = vector.shape_cast %11 : vector<1x1x32xf32> to vector<1x32xf32>
    %13 = vector.broadcast %12 : vector<1x32xf32> to vector<16x32xf32>
    %14 = arith.addf %10, %13 : vector<16x32xf32>
    %15 = vector.extract_strided_slice %0 {offsets = [1, 0, 0], sizes = [1, 32, 32], strides = [1, 1, 1]} : vector<4x32x32xf32> to vector<1x32x32xf32>
    %16 = vector.shape_cast %15 : vector<1x32x32xf32> to vector<32x32xf32>
    %cst_14 = arith.constant dense<0.000000e+00> : vector<16x32xf32>
    %17 = tpu.matmul %5, %16, %cst_14 {dimension_numbers = #tpu.dot_dimension_numbers<[1], [0], [0], [1], [0, 0, 1, 1], [], []>} : vector<16x32xf32>, vector<32x32xf32>, vector<16x32xf32> -> vector<16x32xf32>
    %18 = vector.extract_strided_slice %1 {offsets = [1, 0, 0], sizes = [1, 1, 32], strides = [1, 1, 1]} : vector<4x1x32xf32> to vector<1x1x32xf32>
    %19 = vector.shape_cast %18 : vector<1x1x32xf32> to vector<1x32xf32>
    %20 = vector.broadcast %19 : vector<1x32xf32> to vector<16x32xf32>
    %21 = arith.addf %17, %20 : vector<16x32xf32>
    %22 = vector.extract_strided_slice %0 {offsets = [2, 0, 0], sizes = [1, 32, 32], strides = [1, 1, 1]} : vector<4x32x32xf32> to vector<1x32x32xf32>
    %23 = vector.shape_cast %22 : vector<1x32x32xf32> to vector<32x32xf32>
    %cst_15 = arith.constant dense<0.000000e+00> : vector<16x32xf32>
    %24 = tpu.matmul %7, %23, %cst_15 {dimension_numbers = #tpu.dot_dimension_numbers<[1], [0], [0], [1], [0, 0, 1, 1], [], []>} : vector<16x32xf32>, vector<32x32xf32>, vector<16x32xf32> -> vector<16x32xf32>
    %25 = vector.extract_strided_slice %1 {offsets = [2, 0, 0], sizes = [1, 1, 32], strides = [1, 1, 1]} : vector<4x1x32xf32> to vector<1x1x32xf32>
    %26 = vector.shape_cast %25 : vector<1x1x32xf32> to vector<1x32xf32>
    %27 = vector.broadcast %26 : vector<1x32xf32> to vector<16x32xf32>
    %28 = arith.addf %24, %27 : vector<16x32xf32>
    %cst_16 = arith.constant 0.000000e+00 : f32
    %29 = vector.broadcast %cst_16 : f32 to vector<16x32xf32>
    %30 = vector.extract_strided_slice %14 {offsets = [0, 0], sizes = [16, 8], strides = [1, 1]} : vector<16x32xf32> to vector<16x8xf32>
    %31 = vector.shape_cast %30 : vector<16x8xf32> to vector<2x8x8xf32>
    %32 = vector.extract_strided_slice %21 {offsets = [0, 0], sizes = [16, 8], strides = [1, 1]} : vector<16x32xf32> to vector<16x8xf32>
    %33 = vector.shape_cast %32 : vector<16x8xf32> to vector<2x8x8xf32>
    %34 = vector.extract_strided_slice %28 {offsets = [0, 0], sizes = [16, 8], strides = [1, 1]} : vector<16x32xf32> to vector<16x8xf32>
    %35 = vector.shape_cast %34 : vector<16x8xf32> to vector<2x8x8xf32>
    "tpu.trace_start"() <{level = 10 : i32, message = "bqd,bkd->bqk"}> : () -> ()
    %cst_17 = arith.constant dense<0.000000e+00> : vector<2x8x8xf32>
    %36 = tpu.matmul %31, %33, %cst_17 {dimension_numbers = #tpu.dot_dimension_numbers<[2], [2], [1], [1], [0, 0, 0, 1, 1, 1], [0], [0]>} : vector<2x8x8xf32>, vector<2x8x8xf32>, vector<2x8x8xf32> -> vector<2x8x8xf32>
    "tpu.trace_stop"() : () -> ()
    %cst_18 = arith.constant dense<0xFF800000> : vector<2x8xf32>
    %37 = vector.multi_reduction <maximumf>, %36, %cst_18 [2] : vector<2x8x8xf32> to vector<2x8xf32>
    %38 = vector.shape_cast %37 : vector<2x8xf32> to vector<2x8x1xf32>
    %39 = vector.broadcast %38 : vector<2x8x1xf32> to vector<2x8x8xf32>
    %40 = arith.subf %36, %39 : vector<2x8x8xf32>
    %41 = math.exp %40 : vector<2x8x8xf32>
    %cst_19 = arith.constant dense<0.000000e+00> : vector<2x8xf32>
    %42 = vector.multi_reduction <add>, %41, %cst_19 [2] : vector<2x8x8xf32> to vector<2x8xf32>
    %43 = vector.shape_cast %42 : vector<2x8xf32> to vector<2x8x1xf32>
    %44 = tpu.reciprocal %43 {approx = true} : vector<2x8x1xf32> -> vector<2x8x1xf32>
    %45 = vector.broadcast %44 : vector<2x8x1xf32> to vector<2x8x8xf32>
    %46 = arith.mulf %41, %45 : vector<2x8x8xf32>
    "tpu.trace_start"() <{level = 10 : i32, message = "bqk,bkd->bqd"}> : () -> ()
    %cst_20 = arith.constant dense<0.000000e+00> : vector<2x8x8xf32>
    %47 = tpu.matmul %46, %35, %cst_20 {dimension_numbers = #tpu.dot_dimension_numbers<[2], [1], [1], [2], [0, 0, 0, 1, 1, 2], [0], [0]>} : vector<2x8x8xf32>, vector<2x8x8xf32>, vector<2x8x8xf32> -> vector<2x8x8xf32>
    "tpu.trace_stop"() : () -> ()
    %48 = vector.shape_cast %47 : vector<2x8x8xf32> to vector<16x8xf32>
    %49 = vector.extract_strided_slice %0 {offsets = [3, 0, 0], sizes = [1, 32, 32], strides = [1, 1, 1]} : vector<4x32x32xf32> to vector<1x32x32xf32>
    %50 = vector.shape_cast %49 : vector<1x32x32xf32> to vector<32x32xf32>
    %51 = vector.extract_strided_slice %50 {offsets = [0, 0], sizes = [8, 32], strides = [1, 1]} : vector<32x32xf32> to vector<8x32xf32>
    %cst_21 = arith.constant dense<0.000000e+00> : vector<16x32xf32>
    %52 = tpu.matmul %48, %51, %cst_21 {dimension_numbers = #tpu.dot_dimension_numbers<[1], [0], [0], [1], [0, 0, 1, 1], [], []>} : vector<16x8xf32>, vector<8x32xf32>, vector<16x32xf32> -> vector<16x32xf32>
    %53 = arith.addf %29, %52 : vector<16x32xf32>
    %54 = vector.extract_strided_slice %14 {offsets = [0, 8], sizes = [16, 8], strides = [1, 1]} : vector<16x32xf32> to vector<16x8xf32>
    %55 = vector.shape_cast %54 : vector<16x8xf32> to vector<2x8x8xf32>
    %56 = vector.extract_strided_slice %21 {offsets = [0, 8], sizes = [16, 8], strides = [1, 1]} : vector<16x32xf32> to vector<16x8xf32>
    %57 = vector.shape_cast %56 : vector<16x8xf32> to vector<2x8x8xf32>
    %58 = vector.extract_strided_slice %28 {offsets = [0, 8], sizes = [16, 8], strides = [1, 1]} : vector<16x32xf32> to vector<16x8xf32>
    %59 = vector.shape_cast %58 : vector<16x8xf32> to vector<2x8x8xf32>
    "tpu.trace_start"() <{level = 10 : i32, message = "bqd,bkd->bqk"}> : () -> ()
    %cst_22 = arith.constant dense<0.000000e+00> : vector<2x8x8xf32>
    %60 = tpu.matmul %55, %57, %cst_22 {dimension_numbers = #tpu.dot_dimension_numbers<[2], [2], [1], [1], [0, 0, 0, 1, 1, 1], [0], [0]>} : vector<2x8x8xf32>, vector<2x8x8xf32>, vector<2x8x8xf32> -> vector<2x8x8xf32>
    "tpu.trace_stop"() : () -> ()
    %cst_23 = arith.constant dense<0xFF800000> : vector<2x8xf32>
    %61 = vector.multi_reduction <maximumf>, %60, %cst_23 [2] : vector<2x8x8xf32> to vector<2x8xf32>
    %62 = vector.shape_cast %61 : vector<2x8xf32> to vector<2x8x1xf32>
    %63 = vector.broadcast %62 : vector<2x8x1xf32> to vector<2x8x8xf32>
    %64 = arith.subf %60, %63 : vector<2x8x8xf32>
    %65 = math.exp %64 : vector<2x8x8xf32>
    %cst_24 = arith.constant dense<0.000000e+00> : vector<2x8xf32>
    %66 = vector.multi_reduction <add>, %65, %cst_24 [2] : vector<2x8x8xf32> to vector<2x8xf32>
    %67 = vector.shape_cast %66 : vector<2x8xf32> to vector<2x8x1xf32>
    %68 = tpu.reciprocal %67 {approx = true} : vector<2x8x1xf32> -> vector<2x8x1xf32>
    %69 = vector.broadcast %68 : vector<2x8x1xf32> to vector<2x8x8xf32>
    %70 = arith.mulf %65, %69 : vector<2x8x8xf32>
    "tpu.trace_start"() <{level = 10 : i32, message = "bqk,bkd->bqd"}> : () -> ()
    %cst_25 = arith.constant dense<0.000000e+00> : vector<2x8x8xf32>
    %71 = tpu.matmul %70, %59, %cst_25 {dimension_numbers = #tpu.dot_dimension_numbers<[2], [1], [1], [2], [0, 0, 0, 1, 1, 2], [0], [0]>} : vector<2x8x8xf32>, vector<2x8x8xf32>, vector<2x8x8xf32> -> vector<2x8x8xf32>
    "tpu.trace_stop"() : () -> ()
    %72 = vector.shape_cast %71 : vector<2x8x8xf32> to vector<16x8xf32>
    %73 = vector.extract_strided_slice %0 {offsets = [3, 0, 0], sizes = [1, 32, 32], strides = [1, 1, 1]} : vector<4x32x32xf32> to vector<1x32x32xf32>
    %74 = vector.shape_cast %73 : vector<1x32x32xf32> to vector<32x32xf32>
    %75 = vector.extract_strided_slice %74 {offsets = [8, 0], sizes = [8, 32], strides = [1, 1]} : vector<32x32xf32> to vector<8x32xf32>
    %cst_26 = arith.constant dense<0.000000e+00> : vector<16x32xf32>
    %76 = tpu.matmul %72, %75, %cst_26 {dimension_numbers = #tpu.dot_dimension_numbers<[1], [0], [0], [1], [0, 0, 1, 1], [], []>} : vector<16x8xf32>, vector<8x32xf32>, vector<16x32xf32> -> vector<16x32xf32>
    %77 = arith.addf %53, %76 : vector<16x32xf32>
    %78 = vector.extract_strided_slice %14 {offsets = [0, 16], sizes = [16, 8], strides = [1, 1]} : vector<16x32xf32> to vector<16x8xf32>
    %79 = vector.shape_cast %78 : vector<16x8xf32> to vector<2x8x8xf32>
    %80 = vector.extract_strided_slice %21 {offsets = [0, 16], sizes = [16, 8], strides = [1, 1]} : vector<16x32xf32> to vector<16x8xf32>
    %81 = vector.shape_cast %80 : vector<16x8xf32> to vector<2x8x8xf32>
    %82 = vector.extract_strided_slice %28 {offsets = [0, 16], sizes = [16, 8], strides = [1, 1]} : vector<16x32xf32> to vector<16x8xf32>
    %83 = vector.shape_cast %82 : vector<16x8xf32> to vector<2x8x8xf32>
    "tpu.trace_start"() <{level = 10 : i32, message = "bqd,bkd->bqk"}> : () -> ()
    %cst_27 = arith.constant dense<0.000000e+00> : vector<2x8x8xf32>
    %84 = tpu.matmul %79, %81, %cst_27 {dimension_numbers = #tpu.dot_dimension_numbers<[2], [2], [1], [1], [0, 0, 0, 1, 1, 1], [0], [0]>} : vector<2x8x8xf32>, vector<2x8x8xf32>, vector<2x8x8xf32> -> vector<2x8x8xf32>
    "tpu.trace_stop"() : () -> ()
    %cst_28 = arith.constant dense<0xFF800000> : vector<2x8xf32>
    %85 = vector.multi_reduction <maximumf>, %84, %cst_28 [2] : vector<2x8x8xf32> to vector<2x8xf32>
    %86 = vector.shape_cast %85 : vector<2x8xf32> to vector<2x8x1xf32>
    %87 = vector.broadcast %86 : vector<2x8x1xf32> to vector<2x8x8xf32>
    %88 = arith.subf %84, %87 : vector<2x8x8xf32>
    %89 = math.exp %88 : vector<2x8x8xf32>
    %cst_29 = arith.constant dense<0.000000e+00> : vector<2x8xf32>
    %90 = vector.multi_reduction <add>, %89, %cst_29 [2] : vector<2x8x8xf32> to vector<2x8xf32>
    %91 = vector.shape_cast %90 : vector<2x8xf32> to vector<2x8x1xf32>
    %92 = tpu.reciprocal %91 {approx = true} : vector<2x8x1xf32> -> vector<2x8x1xf32>
    %93 = vector.broadcast %92 : vector<2x8x1xf32> to vector<2x8x8xf32>
    %94 = arith.mulf %89, %93 : vector<2x8x8xf32>
    "tpu.trace_start"() <{level = 10 : i32, message = "bqk,bkd->bqd"}> : () -> ()
    %cst_30 = arith.constant dense<0.000000e+00> : vector<2x8x8xf32>
    %95 = tpu.matmul %94, %83, %cst_30 {dimension_numbers = #tpu.dot_dimension_numbers<[2], [1], [1], [2], [0, 0, 0, 1, 1, 2], [0], [0]>} : vector<2x8x8xf32>, vector<2x8x8xf32>, vector<2x8x8xf32> -> vector<2x8x8xf32>
    "tpu.trace_stop"() : () -> ()
    %96 = vector.shape_cast %95 : vector<2x8x8xf32> to vector<16x8xf32>
    %97 = vector.extract_strided_slice %0 {offsets = [3, 0, 0], sizes = [1, 32, 32], strides = [1, 1, 1]} : vector<4x32x32xf32> to vector<1x32x32xf32>
    %98 = vector.shape_cast %97 : vector<1x32x32xf32> to vector<32x32xf32>
    %99 = vector.extract_strided_slice %98 {offsets = [16, 0], sizes = [8, 32], strides = [1, 1]} : vector<32x32xf32> to vector<8x32xf32>
    %cst_31 = arith.constant dense<0.000000e+00> : vector<16x32xf32>
    %100 = tpu.matmul %96, %99, %cst_31 {dimension_numbers = #tpu.dot_dimension_numbers<[1], [0], [0], [1], [0, 0, 1, 1], [], []>} : vector<16x8xf32>, vector<8x32xf32>, vector<16x32xf32> -> vector<16x32xf32>
    %101 = arith.addf %77, %100 : vector<16x32xf32>
    %102 = vector.extract_strided_slice %14 {offsets = [0, 24], sizes = [16, 8], strides = [1, 1]} : vector<16x32xf32> to vector<16x8xf32>
    %103 = vector.shape_cast %102 : vector<16x8xf32> to vector<2x8x8xf32>
    %104 = vector.extract_strided_slice %21 {offsets = [0, 24], sizes = [16, 8], strides = [1, 1]} : vector<16x32xf32> to vector<16x8xf32>
    %105 = vector.shape_cast %104 : vector<16x8xf32> to vector<2x8x8xf32>
    %106 = vector.extract_strided_slice %28 {offsets = [0, 24], sizes = [16, 8], strides = [1, 1]} : vector<16x32xf32> to vector<16x8xf32>
    %107 = vector.shape_cast %106 : vector<16x8xf32> to vector<2x8x8xf32>
    "tpu.trace_start"() <{level = 10 : i32, message = "bqd,bkd->bqk"}> : () -> ()
    %cst_32 = arith.constant dense<0.000000e+00> : vector<2x8x8xf32>
    %108 = tpu.matmul %103, %105, %cst_32 {dimension_numbers = #tpu.dot_dimension_numbers<[2], [2], [1], [1], [0, 0, 0, 1, 1, 1], [0], [0]>} : vector<2x8x8xf32>, vector<2x8x8xf32>, vector<2x8x8xf32> -> vector<2x8x8xf32>
    "tpu.trace_stop"() : () -> ()
    %cst_33 = arith.constant dense<0xFF800000> : vector<2x8xf32>
    %109 = vector.multi_reduction <maximumf>, %108, %cst_33 [2] : vector<2x8x8xf32> to vector<2x8xf32>
    %110 = vector.shape_cast %109 : vector<2x8xf32> to vector<2x8x1xf32>
    %111 = vector.broadcast %110 : vector<2x8x1xf32> to vector<2x8x8xf32>
    %112 = arith.subf %108, %111 : vector<2x8x8xf32>
    %113 = math.exp %112 : vector<2x8x8xf32>
    %cst_34 = arith.constant dense<0.000000e+00> : vector<2x8xf32>
    %114 = vector.multi_reduction <add>, %113, %cst_34 [2] : vector<2x8x8xf32> to vector<2x8xf32>
    %115 = vector.shape_cast %114 : vector<2x8xf32> to vector<2x8x1xf32>
    %116 = tpu.reciprocal %115 {approx = true} : vector<2x8x1xf32> -> vector<2x8x1xf32>
    %117 = vector.broadcast %116 : vector<2x8x1xf32> to vector<2x8x8xf32>
    %118 = arith.mulf %113, %117 : vector<2x8x8xf32>
    "tpu.trace_start"() <{level = 10 : i32, message = "bqk,bkd->bqd"}> : () -> ()
    %cst_35 = arith.constant dense<0.000000e+00> : vector<2x8x8xf32>
    %119 = tpu.matmul %118, %107, %cst_35 {dimension_numbers = #tpu.dot_dimension_numbers<[2], [1], [1], [2], [0, 0, 0, 1, 1, 2], [0], [0]>} : vector<2x8x8xf32>, vector<2x8x8xf32>, vector<2x8x8xf32> -> vector<2x8x8xf32>
    "tpu.trace_stop"() : () -> ()
    %120 = vector.shape_cast %119 : vector<2x8x8xf32> to vector<16x8xf32>
    %121 = vector.extract_strided_slice %0 {offsets = [3, 0, 0], sizes = [1, 32, 32], strides = [1, 1, 1]} : vector<4x32x32xf32> to vector<1x32x32xf32>
    %122 = vector.shape_cast %121 : vector<1x32x32xf32> to vector<32x32xf32>
    %123 = vector.extract_strided_slice %122 {offsets = [24, 0], sizes = [8, 32], strides = [1, 1]} : vector<32x32xf32> to vector<8x32xf32>
    %cst_36 = arith.constant dense<0.000000e+00> : vector<16x32xf32>
    %124 = tpu.matmul %120, %123, %cst_36 {dimension_numbers = #tpu.dot_dimension_numbers<[1], [0], [0], [1], [0, 0, 1, 1], [], []>} : vector<16x8xf32>, vector<8x32xf32>, vector<16x32xf32> -> vector<16x32xf32>
    %125 = arith.addf %101, %124 : vector<16x32xf32>
    %126 = vector.extract_strided_slice %1 {offsets = [3, 0, 0], sizes = [1, 1, 32], strides = [1, 1, 1]} : vector<4x1x32xf32> to vector<1x1x32xf32>
    %127 = vector.shape_cast %126 : vector<1x1x32xf32> to vector<1x32xf32>
    %128 = vector.broadcast %127 : vector<1x32xf32> to vector<16x32xf32>
    %129 = arith.addf %125, %128 : vector<16x32xf32>
    %130 = vector.shape_cast %129 : vector<16x32xf32> to vector<2x8x32xf32>
    %c0_37 = arith.constant 0 : index
    %c0_38 = arith.constant 0 : index
    %c0_39 = arith.constant 0 : index
    %131 = vector.load %arg6[%c0_37, %c0_38, %c0_39] : memref<2x8x32xf32, #tpu.memory_space<vmem>>, vector<2x8x32xf32>
    tpu.vector_store %arg6[%c0_37, %c0_38, %c0_39], %130 {strides = array<i32>} : memref<2x8x32xf32, #tpu.memory_space<vmem>>, vector<2x8x32xf32>,
    return
  }
  func.func @transform_0(%arg0: i32) -> (i32, i32, i32) {
    %c0_i32 = arith.constant 0 : i32
    %c0_i32_0 = arith.constant 0 : i32
    %c0_i32_1 = arith.constant 0 : i32
    return %arg0, %c0_i32, %c0_i32_0 : i32, i32, i32
  }
  func.func @transform_1(%arg0: i32) -> (i32, i32, i32) {
    %c0_i32 = arith.constant 0 : i32
    %c0_i32_0 = arith.constant 0 : i32
    %c0_i32_1 = arith.constant 0 : i32
    return %arg0, %c0_i32, %c0_i32_0 : i32, i32, i32
  }
  func.func @transform_2(%arg0: i32) -> (i32, i32, i32) {
    %c0_i32 = arith.constant 0 : i32
    %c0_i32_0 = arith.constant 0 : i32
    %c0_i32_1 = arith.constant 0 : i32
    return %arg0, %c0_i32, %c0_i32_0 : i32, i32, i32
  }
  func.func @transform_3(%arg0: i32) -> (i32, i32, i32) {
    %c0_i32 = arith.constant 0 : i32
    %c0_i32_0 = arith.constant 0 : i32
    %c0_i32_1 = arith.constant 0 : i32
    %c0_i32_2 = arith.constant 0 : i32
    return %c0_i32, %c0_i32_0, %c0_i32_1 : i32, i32, i32
  }
  func.func @transform_4(%arg0: i32) -> (i32, i32, i32) {
    %c0_i32 = arith.constant 0 : i32
    %c0_i32_0 = arith.constant 0 : i32
    %c0_i32_1 = arith.constant 0 : i32
    %c0_i32_2 = arith.constant 0 : i32
    return %c0_i32, %c0_i32_0, %c0_i32_1 : i32, i32, i32
  }
  func.func @transform_5(%arg0: i32) -> (i32, i32, i32) {
    %c0_i32 = arith.constant 0 : i32
    %c0_i32_0 = arith.constant 0 : i32
    %c0_i32_1 = arith.constant 0 : i32
    return %arg0, %c0_i32, %c0_i32_0 : i32, i32, i32
  }
}

module attributes {stable_mosaic.version = 11 : i64} {
  func.func @_mha_kernel(%arg0: i32, %arg1: memref<2x8x32xf32, #tpu.memory_space<vmem>>, %arg2: memref<2x8x32xf32, #tpu.memory_space<vmem>>, %arg3: memref<2x8x32xf32, #tpu.memory_space<vmem>>, %arg4: memref<4x32x32xf32, #tpu.memory_space<vmem>>, %arg5: memref<4x1x32xf32, #tpu.memory_space<vmem>>, %arg6: memref<2x8x32xf32, #tpu.memory_space<vmem>>) attributes {dimension_semantics = [#tpu.dimension_semantics<parallel>], iteration_bounds = array<i64: 1>, scalar_prefetch = 0 : i64, scratch_operands = 0 : i64, tpu.core_type = #tpu.core_type<tc>, window_params = [{transform_indices = @transform_0, window_bounds = array<i64: 2, 8, 32>}, {transform_indices = @transform_1, window_bounds = array<i64: 2, 8, 32>}, {transform_indices = @transform_2, window_bounds = array<i64: 2, 8, 32>}, {pipeline_mode = #tpu.pipeline_mode<synchronous>, transform_indices = @transform_3, window_bounds = array<i64: 4, 32, 32>}, {pipeline_mode = #tpu.pipeline_mode<synchronous>, transform_indices = @transform_4, window_bounds = array<i64: 4, 1, 32>}, {transform_indices = @transform_5, window_bounds = array<i64: 2, 8, 32>}]} {
    %c0 = arith.constant 0 : index
    %c0_0 = arith.constant 0 : index
    %c0_1 = arith.constant 0 : index
    %0 = vector.load %arg4[%c0, %c0_0, %c0_1] : memref<4x32x32xf32, #tpu.memory_space<vmem>>, vector<4x32x32xf32>
    %c0_2 = arith.constant 0 : index
    %c0_3 = arith.constant 0 : index
    %c0_4 = arith.constant 0 : index
    %1 = vector.load %arg5[%c0_2, %c0_3, %c0_4] : memref<4x1x32xf32, #tpu.memory_space<vmem>>, vector<4x1x32xf32>
    %c0_5 = arith.constant 0 : index
    %c0_6 = arith.constant 0 : index
    %c0_7 = arith.constant 0 : index
    %2 = vector.load %arg1[%c0_5, %c0_6, %c0_7] : memref<2x8x32xf32, #tpu.memory_space<vmem>>, vector<2x8x32xf32>
    %3 = vector.shape_cast %2 : vector<2x8x32xf32> to vector<16x32xf32>
    %c0_8 = arith.constant 0 : index
    %c0_9 = arith.constant 0 : index
    %c0_10 = arith.constant 0 : index
    %4 = vector.load %arg2[%c0_8, %c0_9, %c0_10] : memref<2x8x32xf32, #tpu.memory_space<vmem>>, vector<2x8x32xf32>
    %5 = vector.shape_cast %4 : vector<2x8x32xf32> to vector<16x32xf32>
    %c0_11 = arith.constant 0 : index
    %c0_12 = arith.constant 0 : index
    %c0_13 = arith.constant 0 : index
    %6 = vector.load %arg3[%c0_11, %c0_12, %c0_13] : memref<2x8x32xf32, #tpu.memory_space<vmem>>, vector<2x8x32xf32>
    %7 = vector.shape_cast %6 : vector<2x8x32xf32> to vector<16x32xf32>
    %8 = vector.extract_strided_slice %0 {offsets = [0, 0, 0], sizes = [1, 32, 32], strides = [1, 1, 1]} : vector<4x32x32xf32> to vector<1x32x32xf32>
    %9 = vector.shape_cast %8 : vector<1x32x32xf32> to vector<32x32xf32>
    %cst = arith.constant dense<0.000000e+00> : vector<16x32xf32>
    %10 = tpu.matmul %3, %9, %cst {dimension_numbers = #tpu.dot_dimension_numbers<[1], [0], [0], [1], [0, 0, 1, 1], [], []>} : vector<16x32xf32>, vector<32x32xf32>, vector<16x32xf32> -> vector<16x32xf32>
    %11 = vector.extract_strided_slice %1 {offsets = [0, 0, 0], sizes = [1, 1, 32], strides = [1, 1, 1]} : vector<4x1x32xf32> to vector<1x1x32xf32>
    %12 = vector.shape_cast %11 : vector<1x1x32xf32> to vector<1x32xf32>
    %13 = vector.broadcast %12 : vector<1x32xf32> to vector<16x32xf32>
    %14 = arith.addf %10, %13 : vector<16x32xf32>
    %15 = vector.extract_strided_slice %0 {offsets = [1, 0, 0], sizes = [1, 32, 32], strides = [1, 1, 1]} : vector<4x32x32xf32> to vector<1x32x32xf32>
    %16 = vector.shape_cast %15 : vector<1x32x32xf32> to vector<32x32xf32>
    %cst_14 = arith.constant dense<0.000000e+00> : vector<16x32xf32>
    %17 = tpu.matmul %5, %16, %cst_14 {dimension_numbers = #tpu.dot_dimension_numbers<[1], [0], [0], [1], [0, 0, 1, 1], [], []>} : vector<16x32xf32>, vector<32x32xf32>, vector<16x32xf32> -> vector<16x32xf32>
    %18 = vector.extract_strided_slice %1 {offsets = [1, 0, 0], sizes = [1, 1, 32], strides = [1, 1, 1]} : vector<4x1x32xf32> to vector<1x1x32xf32>
    %19 = vector.shape_cast %18 : vector<1x1x32xf32> to vector<1x32xf32>
    %20 = vector.broadcast %19 : vector<1x32xf32> to vector<16x32xf32>
    %21 = arith.addf %17, %20 : vector<16x32xf32>
    %22 = vector.extract_strided_slice %0 {offsets = [2, 0, 0], sizes = [1, 32, 32], strides = [1, 1, 1]} : vector<4x32x32xf32> to vector<1x32x32xf32>
    %23 = vector.shape_cast %22 : vector<1x32x32xf32> to vector<32x32xf32>
    %cst_15 = arith.constant dense<0.000000e+00> : vector<16x32xf32>
    %24 = tpu.matmul %7, %23, %cst_15 {dimension_numbers = #tpu.dot_dimension_numbers<[1], [0], [0], [1], [0, 0, 1, 1], [], []>} : vector<16x32xf32>, vector<32x32xf32>, vector<16x32xf32> -> vector<16x32xf32>
    %25 = vector.extract_strided_slice %1 {offsets = [2, 0, 0], sizes = [1, 1, 32], strides = [1, 1, 1]} : vector<4x1x32xf32> to vector<1x1x32xf32>
    %26 = vector.shape_cast %25 : vector<1x1x32xf32> to vector<1x32xf32>
    %27 = vector.broadcast %26 : vector<1x32xf32> to vector<16x32xf32>
    %28 = arith.addf %24, %27 : vector<16x32xf32>
    %cst_16 = arith.constant 0.000000e+00 : f32
    %29 = vector.broadcast %cst_16 : f32 to vector<16x32xf32>
    %30 = vector.extract_strided_slice %14 {offsets = [0, 0], sizes = [16, 8], strides = [1, 1]} : vector<16x32xf32> to vector<16x8xf32>
    %31 = vector.shape_cast %30 : vector<16x8xf32> to vector<2x8x8xf32>
    %32 = vector.extract_strided_slice %21 {offsets = [0, 0], sizes = [16, 8], strides = [1, 1]} : vector<16x32xf32> to vector<16x8xf32>
    %33 = vector.shape_cast %32 : vector<16x8xf32> to vector<2x8x8xf32>
    %34 = vector.extract_strided_slice %28 {offsets = [0, 0], sizes = [16, 8], strides = [1, 1]} : vector<16x32xf32> to vector<16x8xf32>
    %35 = vector.shape_cast %34 : vector<16x8xf32> to vector<2x8x8xf32>
    "tpu.trace_start"() <{level = 10 : i32, message = "bqd,bkd->bqk"}> : () -> ()
    %cst_17 = arith.constant dense<0.000000e+00> : vector<2x8x8xf32>
    %36 = tpu.matmul %31, %33, %cst_17 {dimension_numbers = #tpu.dot_dimension_numbers<[2], [2], [1], [1], [0, 0, 0, 1, 1, 1], [0], [0]>} : vector<2x8x8xf32>, vector<2x8x8xf32>, vector<2x8x8xf32> -> vector<2x8x8xf32>
    "tpu.trace_stop"() : () -> ()
    %cst_18 = arith.constant dense<0xFF800000> : vector<2x8xf32>
    %37 = vector.multi_reduction <maximumf>, %36, %cst_18 [2] : vector<2x8x8xf32> to vector<2x8xf32>
    %38 = vector.shape_cast %37 : vector<2x8xf32> to vector<2x8x1xf32>
    %39 = vector.broadcast %38 : vector<2x8x1xf32> to vector<2x8x8xf32>
    %40 = arith.subf %36, %39 : vector<2x8x8xf32>
    %41 = math.exp %40 : vector<2x8x8xf32>
    %cst_19 = arith.constant dense<0.000000e+00> : vector<2x8xf32>
    %42 = vector.multi_reduction <add>, %41, %cst_19 [2] : vector<2x8x8xf32> to vector<2x8xf32>
    %43 = vector.shape_cast %42 : vector<2x8xf32> to vector<2x8x1xf32>
    %44 = tpu.reciprocal %43 {approx = true} : vector<2x8x1xf32> -> vector<2x8x1xf32>
    %45 = vector.broadcast %44 : vector<2x8x1xf32> to vector<2x8x8xf32>
    %46 = arith.mulf %41, %45 : vector<2x8x8xf32>
    "tpu.trace_start"() <{level = 10 : i32, message = "bqk,bkd->bqd"}> : () -> ()
    %cst_20 = arith.constant dense<0.000000e+00> : vector<2x8x8xf32>
    %47 = tpu.matmul %46, %35, %cst_20 {dimension_numbers = #tpu.dot_dimension_numbers<[2], [1], [1], [2], [0, 0, 0, 1, 1, 2], [0], [0]>} : vector<2x8x8xf32>, vector<2x8x8xf32>, vector<2x8x8xf32> -> vector<2x8x8xf32>
    "tpu.trace_stop"() : () -> ()
    %48 = vector.shape_cast %47 : vector<2x8x8xf32> to vector<16x8xf32>
    %49 = vector.extract_strided_slice %0 {offsets = [3, 0, 0], sizes = [1, 32, 32], strides = [1, 1, 1]} : vector<4x32x32xf32> to vector<1x32x32xf32>
    %50 = vector.shape_cast %49 : vector<1x32x32xf32> to vector<32x32xf32>
    %51 = vector.extract_strided_slice %50 {offsets = [0, 0], sizes = [8, 32], strides = [1, 1]} : vector<32x32xf32> to vector<8x32xf32>
    %cst_21 = arith.constant dense<0.000000e+00> : vector<16x32xf32>
    %52 = tpu.matmul %48, %51, %cst_21 {dimension_numbers = #tpu.dot_dimension_numbers<[1], [0], [0], [1], [0, 0, 1, 1], [], []>} : vector<16x8xf32>, vector<8x32xf32>, vector<16x32xf32> -> vector<16x32xf32>
    %53 = arith.addf %29, %52 : vector<16x32xf32>
    %54 = vector.extract_strided_slice %14 {offsets = [0, 8], sizes = [16, 8], strides = [1, 1]} : vector<16x32xf32> to vector<16x8xf32>
    %55 = vector.shape_cast %54 : vector<16x8xf32> to vector<2x8x8xf32>
    %56 = vector.extract_strided_slice %21 {offsets = [0, 8], sizes = [16, 8], strides = [1, 1]} : vector<16x32xf32> to vector<16x8xf32>
    %57 = vector.shape_cast %56 : vector<16x8xf32> to vector<2x8x8xf32>
    %58 = vector.extract_strided_slice %28 {offsets = [0, 8], sizes = [16, 8], strides = [1, 1]} : vector<16x32xf32> to vector<16x8xf32>
    %59 = vector.shape_cast %58 : vector<16x8xf32> to vector<2x8x8xf32>
    "tpu.trace_start"() <{level = 10 : i32, message = "bqd,bkd->bqk"}> : () -> ()
    %cst_22 = arith.constant dense<0.000000e+00> : vector<2x8x8xf32>
    %60 = tpu.matmul %55, %57, %cst_22 {dimension_numbers = #tpu.dot_dimension_numbers<[2], [2], [1], [1], [0, 0, 0, 1, 1, 1], [0], [0]>} : vector<2x8x8xf32>, vector<2x8x8xf32>, vector<2x8x8xf32> -> vector<2x8x8xf32>
    "tpu.trace_stop"() : () -> ()
    %cst_23 = arith.constant dense<0xFF800000> : vector<2x8xf32>
    %61 = vector.multi_reduction <maximumf>, %60, %cst_23 [2] : vector<2x8x8xf32> to vector<2x8xf32>
    %62 = vector.shape_cast %61 : vector<2x8xf32> to vector<2x8x1xf32>
    %63 = vector.broadcast %62 : vector<2x8x1xf32> to vector<2x8x8xf32>
    %64 = arith.subf %60, %63 : vector<2x8x8xf32>
    %65 = math.exp %64 : vector<2x8x8xf32>
    %cst_24 = arith.constant dense<0.000000e+00> : vector<2x8xf32>
    %66 = vector.multi_reduction <add>, %65, %cst_24 [2] : vector<2x8x8xf32> to vector<2x8xf32>
    %67 = vector.shape_cast %66 : vector<2x8xf32> to vector<2x8x1xf32>
    %68 = tpu.reciprocal %67 {approx = true} : vector<2x8x1xf32> -> vector<2x8x1xf32>
    %69 = vector.broadcast %68 : vector<2x8x1xf32> to vector<2x8x8xf32>
    %70 = arith.mulf %65, %69 : vector<2x8x8xf32>
    "tpu.trace_start"() <{level = 10 : i32, message = "bqk,bkd->bqd"}> : () -> ()
    %cst_25 = arith.constant dense<0.000000e+00> : vector<2x8x8xf32>
    %71 = tpu.matmul %70, %59, %cst_25 {dimension_numbers = #tpu.dot_dimension_numbers<[2], [1], [1], [2], [0, 0, 0, 1, 1, 2], [0], [0]>} : vector<2x8x8xf32>, vector<2x8x8xf32>, vector<2x8x8xf32> -> vector<2x8x8xf32>
    "tpu.trace_stop"() : () -> ()
    %72 = vector.shape_cast %71 : vector<2x8x8xf32> to vector<16x8xf32>
    %73 = vector.extract_strided_slice %0 {offsets = [3, 0, 0], sizes = [1, 32, 32], strides = [1, 1, 1]} : vector<4x32x32xf32> to vector<1x32x32xf32>
    %74 = vector.shape_cast %73 : vector<1x32x32xf32> to vector<32x32xf32>
    %75 = vector.extract_strided_slice %74 {offsets = [8, 0], sizes = [8, 32], strides = [1, 1]} : vector<32x32xf32> to vector<8x32xf32>
    %cst_26 = arith.constant dense<0.000000e+00> : vector<16x32xf32>
    %76 = tpu.matmul %72, %75, %cst_26 {dimension_numbers = #tpu.dot_dimension_numbers<[1], [0], [0], [1], [0, 0, 1, 1], [], []>} : vector<16x8xf32>, vector<8x32xf32>, vector<16x32xf32> -> vector<16x32xf32>
    %77 = arith.addf %53, %76 : vector<16x32xf32>
    %78 = vector.extract_strided_slice %14 {offsets = [0, 16], sizes = [16, 8], strides = [1, 1]} : vector<16x32xf32> to vector<16x8xf32>
    %79 = vector.shape_cast %78 : vector<16x8xf32> to vector<2x8x8xf32>
    %80 = vector.extract_strided_slice %21 {offsets = [0, 16], sizes = [16, 8], strides = [1, 1]} : vector<16x32xf32> to vector<16x8xf32>
    %81 = vector.shape_cast %80 : vector<16x8xf32> to vector<2x8x8xf32>
    %82 = vector.extract_strided_slice %28 {offsets = [0, 16], sizes = [16, 8], strides = [1, 1]} : vector<16x32xf32> to vector<16x8xf32>
    %83 = vector.shape_cast %82 : vector<16x8xf32> to vector<2x8x8xf32>
    "tpu.trace_start"() <{level = 10 : i32, message = "bqd,bkd->bqk"}> : () -> ()
    %cst_27 = arith.constant dense<0.000000e+00> : vector<2x8x8xf32>
    %84 = tpu.matmul %79, %81, %cst_27 {dimension_numbers = #tpu.dot_dimension_numbers<[2], [2], [1], [1], [0, 0, 0, 1, 1, 1], [0], [0]>} : vector<2x8x8xf32>, vector<2x8x8xf32>, vector<2x8x8xf32> -> vector<2x8x8xf32>
    "tpu.trace_stop"() : () -> ()
    %cst_28 = arith.constant dense<0xFF800000> : vector<2x8xf32>
    %85 = vector.multi_reduction <maximumf>, %84, %cst_28 [2] : vector<2x8x8xf32> to vector<2x8xf32>
    %86 = vector.shape_cast %85 : vector<2x8xf32> to vector<2x8x1xf32>
    %87 = vector.broadcast %86 : vector<2x8x1xf32> to vector<2x8x8xf32>
    %88 = arith.subf %84, %87 : vector<2x8x8xf32>
    %89 = math.exp %88 : vector<2x8x8xf32>
    %cst_29 = arith.constant dense<0.000000e+00> : vector<2x8xf32>
    %90 = vector.multi_reduction <add>, %89, %cst_29 [2] : vector<2x8x8xf32> to vector<2x8xf32>
    %91 = vector.shape_cast %90 : vector<2x8xf32> to vector<2x8x1xf32>
    %92 = tpu.reciprocal %91 {approx = true} : vector<2x8x1xf32> -> vector<2x8x1xf32>
    %93 = vector.broadcast %92 : vector<2x8x1xf32> to vector<2x8x8xf32>
    %94 = arith.mulf %89, %93 : vector<2x8x8xf32>
    "tpu.trace_start"() <{level = 10 : i32, message = "bqk,bkd->bqd"}> : () -> ()
    %cst_30 = arith.constant dense<0.000000e+00> : vector<2x8x8xf32>
    %95 = tpu.matmul %94, %83, %cst_30 {dimension_numbers = #tpu.dot_dimension_numbers<[2], [1], [1], [2], [0, 0, 0, 1, 1, 2], [0], [0]>} : vector<2x8x8xf32>, vector<2x8x8xf32>, vector<2x8x8xf32> -> vector<2x8x8xf32>
    "tpu.trace_stop"() : () -> ()
    %96 = vector.shape_cast %95 : vector<2x8x8xf32> to vector<16x8xf32>
    %97 = vector.extract_strided_slice %0 {offsets = [3, 0, 0], sizes = [1, 32, 32], strides = [1, 1, 1]} : vector<4x32x32xf32> to vector<1x32x32xf32>
    %98 = vector.shape_cast %97 : vector<1x32x32xf32> to vector<32x32xf32>
    %99 = vector.extract_strided_slice %98 {offsets = [16, 0], sizes = [8, 32], strides = [1, 1]} : vector<32x32xf32> to vector<8x32xf32>
    %cst_31 = arith.constant dense<0.000000e+00> : vector<16x32xf32>
    %100 = tpu.matmul %96, %99, %cst_31 {dimension_numbers = #tpu.dot_dimension_numbers<[1], [0], [0], [1], [0, 0, 1, 1], [], []>} : vector<16x8xf32>, vector<8x32xf32>, vector<16x32xf32> -> vector<16x32xf32>
    %101 = arith.addf %77, %100 : vector<16x32xf32>
    %102 = vector.extract_strided_slice %14 {offsets = [0, 24], sizes = [16, 8], strides = [1, 1]} : vector<16x32xf32> to vector<16x8xf32>
    %103 = vector.shape_cast %102 : vector<16x8xf32> to vector<2x8x8xf32>
    %104 = vector.extract_strided_slice %21 {offsets = [0, 24], sizes = [16, 8], strides = [1, 1]} : vector<16x32xf32> to vector<16x8xf32>
    %105 = vector.shape_cast %104 : vector<16x8xf32> to vector<2x8x8xf32>
    %106 = vector.extract_strided_slice %28 {offsets = [0, 24], sizes = [16, 8], strides = [1, 1]} : vector<16x32xf32> to vector<16x8xf32>
    %107 = vector.shape_cast %106 : vector<16x8xf32> to vector<2x8x8xf32>
    "tpu.trace_start"() <{level = 10 : i32, message = "bqd,bkd->bqk"}> : () -> ()
    %cst_32 = arith.constant dense<0.000000e+00> : vector<2x8x8xf32>
    %108 = tpu.matmul %103, %105, %cst_32 {dimension_numbers = #tpu.dot_dimension_numbers<[2], [2], [1], [1], [0, 0, 0, 1, 1, 1], [0], [0]>} : vector<2x8x8xf32>, vector<2x8x8xf32>, vector<2x8x8xf32> -> vector<2x8x8xf32>
    "tpu.trace_stop"() : () -> ()
    %cst_33 = arith.constant dense<0xFF800000> : vector<2x8xf32>
    %109 = vector.multi_reduction <maximumf>, %108, %cst_33 [2] : vector<2x8x8xf32> to vector<2x8xf32>
    %110 = vector.shape_cast %109 : vector<2x8xf32> to vector<2x8x1xf32>
    %111 = vector.broadcast %110 : vector<2x8x1xf32> to vector<2x8x8xf32>
    %112 = arith.subf %108, %111 : vector<2x8x8xf32>
    %113 = math.exp %112 : vector<2x8x8xf32>
    %cst_34 = arith.constant dense<0.000000e+00> : vector<2x8xf32>
    %114 = vector.multi_reduction <add>, %113, %cst_34 [2] : vector<2x8x8xf32> to vector<2x8xf32>
    %115 = vector.shape_cast %114 : vector<2x8xf32> to vector<2x8x1xf32>
    %116 = tpu.reciprocal %115 {approx = true} : vector<2x8x1xf32> -> vector<2x8x1xf32>
    %117 = vector.broadcast %116 : vector<2x8x1xf32> to vector<2x8x8xf32>
    %118 = arith.mulf %113, %117 : vector<2x8x8xf32>
    "tpu.trace_start"() <{level = 10 : i32, message = "bqk,bkd->bqd"}> : () -> ()
    %cst_35 = arith.constant dense<0.000000e+00> : vector<2x8x8xf32>
    %119 = tpu.matmul %118, %107, %cst_35 {dimension_numbers = #tpu.dot_dimension_numbers<[2], [1], [1], [2], [0, 0, 0, 1, 1, 2], [0], [0]>} : vector<2x8x8xf32>, vector<2x8x8xf32>, vector<2x8x8xf32> -> vector<2x8x8xf32>
    "tpu.trace_stop"() : () -> ()
    %120 = vector.shape_cast %119 : vector<2x8x8xf32> to vector<16x8xf32>
    %121 = vector.extract_strided_slice %0 {offsets = [3, 0, 0], sizes = [1, 32, 32], strides = [1, 1, 1]} : vector<4x32x32xf32> to vector<1x32x32xf32>
    %122 = vector.shape_cast %121 : vector<1x32x32xf32> to vector<32x32xf32>
    %123 = vector.extract_strided_slice %122 {offsets = [24, 0], sizes = [8, 32], strides = [1, 1]} : vector<32x32xf32> to vector<8x32xf32>
    %cst_36 = arith.constant dense<0.000000e+00> : vector<16x32xf32>
    %124 = tpu.matmul %120, %123, %cst_36 {dimension_numbers = #tpu.dot_dimension_numbers<[1], [0], [0], [1], [0, 0, 1, 1], [], []>} : vector<16x8xf32>, vector<8x32xf32>, vector<16x32xf32> -> vector<16x32xf32>
    %125 = arith.addf %101, %124 : vector<16x32xf32>
    %126 = vector.extract_strided_slice %1 {offsets = [3, 0, 0], sizes = [1, 1, 32], strides = [1, 1, 1]} : vector<4x1x32xf32> to vector<1x1x32xf32>
    %127 = vector.shape_cast %126 : vector<1x1x32xf32> to vector<1x32xf32>
    %128 = vector.broadcast %127 : vector<1x32xf32> to vector<16x32xf32>
    %129 = arith.addf %125, %128 : vector<16x32xf32>
    %130 = vector.shape_cast %129 : vector<16x32xf32> to vector<2x8x32xf32>
    %c0_37 = arith.constant 0 : index
    %c0_38 = arith.constant 0 : index
    %c0_39 = arith.constant 0 : index
    %131 = vector.load %arg6[%c0_37, %c0_38, %c0_39] : memref<2x8x32xf32, #tpu.memory_space<vmem>>, vector<2x8x32xf32>
    tpu.vector_store %arg6[%c0_37, %c0_38, %c0_39], %130 {strides = array<i32>} : memref<2x8x32xf32, #tpu.memory_space<vmem>>, vector<2x8x32xf32>,
    return
  }
  func.func @transform_0(%arg0: i32) -> (i32, i32, i32) {
    %c0_i32 = arith.constant 0 : i32
    %c0_i32_0 = arith.constant 0 : i32
    %c0_i32_1 = arith.constant 0 : i32
    return %arg0, %c0_i32, %c0_i32_0 : i32, i32, i32
  }
  func.func @transform_1(%arg0: i32) -> (i32, i32, i32) {
    %c0_i32 = arith.constant 0 : i32
    %c0_i32_0 = arith.constant 0 : i32
    %c0_i32_1 = arith.constant 0 : i32
    return %arg0, %c0_i32, %c0_i32_0 : i32, i32, i32
  }
  func.func @transform_2(%arg0: i32) -> (i32, i32, i32) {
    %c0_i32 = arith.constant 0 : i32
    %c0_i32_0 = arith.constant 0 : i32
    %c0_i32_1 = arith.constant 0 : i32
    return %arg0, %c0_i32, %c0_i32_0 : i32, i32, i32
  }
  func.func @transform_3(%arg0: i32) -> (i32, i32, i32) {
    %c0_i32 = arith.constant 0 : i32
    %c0_i32_0 = arith.constant 0 : i32
    %c0_i32_1 = arith.constant 0 : i32
    %c0_i32_2 = arith.constant 0 : i32
    return %c0_i32, %c0_i32_0, %c0_i32_1 : i32, i32, i32
  }
  func.func @transform_4(%arg0: i32) -> (i32, i32, i32) {
    %c0_i32 = arith.constant 0 : i32
    %c0_i32_0 = arith.constant 0 : i32
    %c0_i32_1 = arith.constant 0 : i32
    %c0_i32_2 = arith.constant 0 : i32
    return %c0_i32, %c0_i32_0, %c0_i32_1 : i32, i32, i32
  }
  func.func @transform_5(%arg0: i32) -> (i32, i32, i32) {
    %c0_i32 = arith.constant 0 : i32
    %c0_i32_0 = arith.constant 0 : i32
    %c0_i32_1 = arith.constant 0 : i32
    return %arg0, %c0_i32, %c0_i32_0 : i32, i32, i32
  }
}

</mosaic_0001>

<llo_original>
// kernel: tpu_custom_call.1
$region0: #{tpu_custom_call.1}
  #allocation0 [shape = 'u32[]', space=smem, size = 0x4, offset = 0x4, fixed_abs, tag = 'smem constant byte address 0x4 - core index']
  #allocation1 [shape = 'u32[144,128]{1,0:T(1,128)}', space=vmem, size = 0x12000, scoped, tag = 'internal scratch']
  %s0 = inlined_call_operand.hbm [shape: f32[2,8,32], index: 0, kind: input, shape index: {}]
  %s1 = inlined_call_operand.hbm [shape: f32[2,8,32], index: 1, kind: input, shape index: {}]
  %s2 = inlined_call_operand.hbm [shape: f32[2,8,32], index: 2, kind: input, shape index: {}]
  %s3 = inlined_call_operand.hbm [shape: f32[4,32,32], index: 3, kind: input, shape index: {}]
  %s4 = inlined_call_operand.vmem [shape: f32[4,1,32], index: 4, kind: input, shape index: {}]
  %s5 = inlined_call_operand.hbm [shape: f32[2,8,32], index: 5, kind: output, shape index: {}]
  %s6 = sld [smem:[#allocation0]]
  $region46: #{tpu_custom_call.1} parent=0
    _
  %s8 = ssub.s32 1, %s6
  %s9 = scalar_select 0, %s8, %s6
  $region1: #{tpu_custom_call.1} parent=0
    #allocation2 [shape = 'u8[8192]{0}', space=vmem, size = 0x2000, scoped, tag = 'input window, operand 0, single buffered']
    #allocation3 [shape = 's32[1]{0}', space=sflag, size = 0x4, scoped, tag = 'scoped memory for tpu_custom_call.1']
    #allocation4 [shape = 's32[1]{0}', space=sflag, size = 0x4, scoped, tag = 'scoped memory for tpu_custom_call.1']
    #allocation5 [shape = 'u8[8192]{0}', space=vmem, size = 0x2000, scoped, tag = 'input window, operand 1, single buffered']
    #allocation6 [shape = 's32[1]{0}', space=sflag, size = 0x4, scoped, tag = 'scoped memory for tpu_custom_call.1']
    #allocation7 [shape = 'u8[8192]{0}', space=vmem, size = 0x2000, scoped, tag = 'input window, operand 2, single buffered']
    #allocation8 [shape = 'u8[65536]{0}', space=vmem, size = 0x10000, scoped, tag = 'input window, operand 3, single buffered']
    #allocation9 [shape = 's32[1]{0}', space=sflag, size = 0x4, scoped, tag = 'scoped memory for tpu_custom_call.1']
    #allocation10 [shape = 'u8[8192]{0}', space=vmem, size = 0x2000, scoped, tag = 'output window, operand 0, single buffered']
    %10 = vsyncpa [#allocation3], 0
    %11 = vsyncpa [#allocation6], 0
    %12 = vsyncpa [#allocation9], 0
    %13 = vsyncpa [#allocation4], 0
    // Predicated region
    $region2: #{tpu_custom_call.1} parent=1 // pred_check
      _
    $region3: #{tpu_custom_call.1} parent=1 // pred_check_branch
      %15 = sbr.rel (0) target = $region5
    $region4: #{tpu_custom_call.1} parent=1 // pred_region
      %s17 = ssub.s32 256, 256
      %18 = vsyncadd [#allocation3], %s17
      %s19 = sshll.u32 [#allocation2], 4
      %s20 = int_to_ptr.vmem [resolvable:$true] %s19
      %25 = dma.hbm_to_vmem [thread:$0]  %s0, 256, %s20, [#allocation3], 128, 128, 8
    $region5: #{tpu_custom_call.1} parent=1 // pred_fallthru
      _
    // Predicated region
    $region6: #{tpu_custom_call.1} parent=1 // pred_check
      _
    $region7: #{tpu_custom_call.1} parent=1 // pred_check_branch
      %27 = sbr.rel (0) target = $region9
    $region8: #{tpu_custom_call.1} parent=1 // pred_region
      %s29 = ssub.s32 256, 256
      %30 = vsyncadd [#allocation6], %s29
      %s31 = sshll.u32 [#allocation5], 4
      %s32 = int_to_ptr.vmem [resolvable:$true] %s31
      %37 = dma.hbm_to_vmem [thread:$0]  %s1, 256, %s32, [#allocation6], 128, 128, 8
    $region9: #{tpu_custom_call.1} parent=1 // pred_fallthru
      _
    // Predicated region
    $region10: #{tpu_custom_call.1} parent=1 // pred_check
      _
    $region11: #{tpu_custom_call.1} parent=1 // pred_check_branch
      %39 = sbr.rel (0) target = $region13
    $region12: #{tpu_custom_call.1} parent=1 // pred_region
      %s41 = ssub.s32 256, 256
      %42 = vsyncadd [#allocation6], %s41
      %s43 = sshll.u32 [#allocation7], 4
      %s44 = int_to_ptr.vmem [resolvable:$true] %s43
      %49 = dma.hbm_to_vmem [thread:$0]  %s2, 256, %s44, [#allocation6], 128, 128, 8
    $region13: #{tpu_custom_call.1} parent=1 // pred_fallthru
      _
    // Predicated region
    $region14: #{tpu_custom_call.1} parent=1 // pred_check
      _
    $region15: #{tpu_custom_call.1} parent=1 // pred_check_branch
      %51 = sbr.rel (0) target = $region17
    $region16: #{tpu_custom_call.1} parent=1 // pred_region
      %s53 = ssub.s32 2048, 2048
      %54 = vsyncadd [#allocation9], %s53
      %s55 = sshll.u32 [#allocation8], 4
      %s56 = int_to_ptr.vmem [resolvable:$true] %s55
      %61 = dma.hbm_to_vmem [thread:$0]  %s3, 2048, %s56, [#allocation9], 128, 128, 8
    $region17: #{tpu_custom_call.1} parent=1 // pred_fallthru
      _
    // Predicated region
    $region18: #{tpu_custom_call.1} parent=1 // pred_check
      _
    $region19: #{tpu_custom_call.1} parent=1 // pred_check_branch
      %63 = sbr.rel (0) target = $region21
    $region20: #{tpu_custom_call.1} parent=1 // pred_region
      _
    $region21: #{tpu_custom_call.1} parent=1 // pred_fallthru
      _
    // Predicated region
    $region22: #{tpu_custom_call.1} parent=1 // pred_check
      _
    $region23: #{tpu_custom_call.1} parent=1 // pred_check_branch
      %65 = sbr.rel (0) target = $region25
    $region24: #{tpu_custom_call.1} parent=1 // pred_region
      %66 = dma.done [#allocation3], 256
    $region25: #{tpu_custom_call.1} parent=1 // pred_fallthru
      _
    // Predicated region
    $region26: #{tpu_custom_call.1} parent=1 // pred_check
      _
    $region27: #{tpu_custom_call.1} parent=1 // pred_check_branch
      %68 = sbr.rel (0) target = $region29
    $region28: #{tpu_custom_call.1} parent=1 // pred_region
      %69 = dma.done [#allocation6], 256
    $region29: #{tpu_custom_call.1} parent=1 // pred_fallthru
      _
    // Predicated region
    $region30: #{tpu_custom_call.1} parent=1 // pred_check
      _
    $region31: #{tpu_custom_call.1} parent=1 // pred_check_branch
      %71 = sbr.rel (0) target = $region33
    $region32: #{tpu_custom_call.1} parent=1 // pred_region
      %72 = dma.done [#allocation6], 256
    $region33: #{tpu_custom_call.1} parent=1 // pred_fallthru
      _
    // Predicated region
    $region34: #{tpu_custom_call.1} parent=1 // pred_check
      _
    $region35: #{tpu_custom_call.1} parent=1 // pred_check_branch
      %74 = sbr.rel (0) target = $region37
    $region36: #{tpu_custom_call.1} parent=1 // pred_region
      %75 = dma.done [#allocation9], 2048
    $region37: #{tpu_custom_call.1} parent=1 // pred_fallthru
      _
    %v76 = vld [vmem:[#allocation8] sm:$0xff]
    %v77 = vld [vmem:[#allocation8 + $0x8] sm:$0xff]
    %v78 = vld [vmem:[#allocation8 + $0x10] sm:$0xff]
    %v79 = vld [vmem:[#allocation8 + $0x18] sm:$0xff]
    %v80 = vld [vmem:[#allocation8 + $0x20] sm:$0xff]
    %v81 = vld [vmem:[#allocation8 + $0x28] sm:$0xff]
    %v82 = vld [vmem:[#allocation8 + $0x30] sm:$0xff]
    %v83 = vld [vmem:[#allocation8 + $0x38] sm:$0xff]
    %v84 = vld [vmem:[#allocation8 + $0x40] sm:$0xff]
    %v85 = vld [vmem:[#allocation8 + $0x48] sm:$0xff]
    %v86 = vld [vmem:[#allocation8 + $0x50] sm:$0xff]
    %v87 = vld [vmem:[#allocation8 + $0x58] sm:$0xff]
    %v88 = vld [vmem:[#allocation8 + $0x60] sm:$0xff]
    %v89 = vld [vmem:[#allocation8 + $0x68] sm:$0xff]
    %v90 = vld [vmem:[#allocation8 + $0x70] sm:$0xff]
    %v91 = vld [vmem:[#allocation8 + $0x78] sm:$0xff]
    %v92 = vld [vmem:[%s4] sm:$0x1]
    %v93 = vld [vmem:[%s4 + $0x1] sm:$0x1]
    %v94 = vld [vmem:[%s4 + $0x2] sm:$0x1]
    %v95 = vld [vmem:[%s4 + $0x3] sm:$0x1]
    %v96 = vld [vmem:[#allocation2] sm:$0xff]
    %v97 = vld [vmem:[#allocation2 + $0x8] sm:$0xff]
    %v98 = vld [vmem:[#allocation5] sm:$0xff]
    %v99 = vld [vmem:[#allocation5 + $0x8] sm:$0xff]
    %v100 = vld [vmem:[#allocation7] sm:$0xff]
    %v101 = vld [vmem:[#allocation7 + $0x8] sm:$0xff]
    %v103 = vlaneseq
    %v104 = vshrl.u32 %v103, 7
    %v105 = vsub.s32 0, %v104
    %v106 = vrot.slane %v92, %v105
    %vm108 = vcmask 261120
    %v110 = vsel %vm108, %v96, 0
    %v113 = vsel %vm108, %v97, 0
    %115 = vmatprep.subr.mxu0 0.0
    %116 = vmatpush1.msra.mxu0 %v76
    %117 = vmatprep.subr.mxu0 0.0
    %118 = vmatpush1.msra.mxu0 %v77
    %119 = vmatprep.subr.mxu0 0.0
    %120 = vmatpush1.msra.mxu0 %v78
    %121 = vmatprep.subr.mxu0 0.0
    %122 = vmatpush1.msra.mxu0 %v79
    %123 = vmatprep.subr.mxu0 0.0
    %124 = vmatpush1.msra.mxu0 0.0
    %125 = vmatprep.subr.mxu0 0.0
    %126 = vmatpush1.msra.mxu0 0.0
    %127 = vmatprep.subr.mxu0 0.0
    %128 = vmatpush1.msra.mxu0 0.0
    %129 = vmatprep.subr.mxu0 0.0
    %130 = vmatpush1.msra.mxu0 0.0
    %131 = vmatprep.subr.mxu0 0.0
    %132 = vmatpush1.msra.mxu0 0.0
    %133 = vmatprep.subr.mxu0 0.0
    %134 = vmatpush1.msra.mxu0 0.0
    %135 = vmatprep.subr.mxu0 0.0
    %136 = vmatpush1.msra.mxu0 0.0
    %137 = vmatprep.subr.mxu0 0.0
    %138 = vmatpush1.msra.mxu0 0.0
    %139 = vmatprep.subr.mxu0 0.0
    %140 = vmatpush1.msra.mxu0 0.0
    %141 = vmatprep.subr.mxu0 0.0
    %142 = vmatpush1.msra.mxu0 0.0
    %143 = vmatprep.subr.mxu0 0.0
    %144 = vmatpush1.msra.mxu0 0.0
    %145 = vmatprep.subr.mxu0 0.0
    %146 = vmatpush1.msra.mxu0 0.0
    %147 = vmatprep.subr.mxu0 0.0
    %148 = vmatpush1.msra.mxu0 0.0
    %149 = vmatprep.subr.mxu0 0.0
    %150 = vmatpush1.msra.mxu0 0.0
    %151 = vmatprep.subr.mxu0 0.0
    %152 = vmatpush1.msra.mxu0 0.0
    %153 = vmatprep.subr.mxu0 0.0
    %154 = vmatpush1.msra.mxu0 0.0
    %155 = vmatprep.subr.mxu0 0.0
    %156 = vmatpush1.msra.mxu0 0.0
    %157 = vmatprep.subr.mxu0 0.0
    %158 = vmatpush1.msra.mxu0 0.0
    %159 = vmatprep.subr.mxu0 0.0
    %160 = vmatpush1.msra.mxu0 0.0
    %161 = vmatprep.subr.mxu0 0.0
    %162 = vmatpush1.msra.mxu0 0.0
    %163 = vmatprep.subr.mxu0 0.0
    %164 = vmatpush1.msra.mxu0 0.0
    %165 = vmatprep.subr.mxu0 0.0
    %166 = vmatpush1.msra.mxu0 0.0
    %167 = vmatprep.subr.mxu0 0.0
    %168 = vmatpush1.msra.mxu0 0.0
    %169 = vmatprep.subr.mxu0 0.0
    %170 = vmatpush1.msra.mxu0 0.0
    %171 = vmatprep.subr.mxu0 0.0
    %172 = vmatpush1.msra.mxu0 0.0
    %173 = vmatprep.subr.mxu0 0.0
    %174 = vmatpush1.msra.mxu0 0.0
    %175 = vmatprep.subr.mxu0 0.0
    %176 = vmatpush1.msra.mxu0 0.0
    %177 = vmatprep.subr.mxu0 0.0
    %178 = vmatpush1.msra.mxu0 0.0
    %179 = vmatprep.mubr.f32.mxu0 0.0
    %180 = vmatmul.mubr.f32.gmra.mrb[0].mxu0 %v110
    %v181 = vpop.f32.mrb[0].mxu0
    %v182 = vadd.f32 %v106, %v181
    %v183 = vpop.f32.mrb[0].mxu0
    %184 = vmatprep.mubr.f32.mxu0 0.0
    %185 = vmatmul.mubr.f32.gmra.mrb[0].mxu0 %v113
    %v186 = vpop.f32.mrb[0].mxu0
    %v187 = vadd.f32 %v106, %v186
    %v188 = vpop.f32.mrb[0].mxu0
    %189 = vdwg.mxu0
    %v191 = vlaneseq
    %v192 = vshrl.u32 %v191, 7
    %v193 = vsub.s32 0, %v192
    %v194 = vrot.slane %v93, %v193
    %v197 = vsel %vm108, %v98, 0
    %v200 = vsel %vm108, %v99, 0
    %202 = vmatprep.subr.mxu0 0.0
    %203 = vmatpush1.msra.mxu0 %v80
    %204 = vmatprep.subr.mxu0 0.0
    %205 = vmatpush1.msra.mxu0 %v81
    %206 = vmatprep.subr.mxu0 0.0
    %207 = vmatpush1.msra.mxu0 %v82
    %208 = vmatprep.subr.mxu0 0.0
    %209 = vmatpush1.msra.mxu0 %v83
    %210 = vmatprep.subr.mxu0 0.0
    %211 = vmatpush1.msra.mxu0 0.0
    %212 = vmatprep.subr.mxu0 0.0
    %213 = vmatpush1.msra.mxu0 0.0
    %214 = vmatprep.subr.mxu0 0.0
    %215 = vmatpush1.msra.mxu0 0.0
    %216 = vmatprep.subr.mxu0 0.0
    %217 = vmatpush1.msra.mxu0 0.0
    %218 = vmatprep.subr.mxu0 0.0
    %219 = vmatpush1.msra.mxu0 0.0
    %220 = vmatprep.subr.mxu0 0.0
    %221 = vmatpush1.msra.mxu0 0.0
    %222 = vmatprep.subr.mxu0 0.0
    %223 = vmatpush1.msra.mxu0 0.0
    %224 = vmatprep.subr.mxu0 0.0
    %225 = vmatpush1.msra.mxu0 0.0
    %226 = vmatprep.subr.mxu0 0.0
    %227 = vmatpush1.msra.mxu0 0.0
    %228 = vmatprep.subr.mxu0 0.0
    %229 = vmatpush1.msra.mxu0 0.0
    %230 = vmatprep.subr.mxu0 0.0
    %231 = vmatpush1.msra.mxu0 0.0
    %232 = vmatprep.subr.mxu0 0.0
    %233 = vmatpush1.msra.mxu0 0.0
    %234 = vmatprep.subr.mxu0 0.0
    %235 = vmatpush1.msra.mxu0 0.0
    %236 = vmatprep.subr.mxu0 0.0
    %237 = vmatpush1.msra.mxu0 0.0
    %238 = vmatprep.subr.mxu0 0.0
    %239 = vmatpush1.msra.mxu0 0.0
    %240 = vmatprep.subr.mxu0 0.0
    %241 = vmatpush1.msra.mxu0 0.0
    %242 = vmatprep.subr.mxu0 0.0
    %243 = vmatpush1.msra.mxu0 0.0
    %244 = vmatprep.subr.mxu0 0.0
    %245 = vmatpush1.msra.mxu0 0.0
    %246 = vmatprep.subr.mxu0 0.0
    %247 = vmatpush1.msra.mxu0 0.0
    %248 = vmatprep.subr.mxu0 0.0
    %249 = vmatpush1.msra.mxu0 0.0
    %250 = vmatprep.subr.mxu0 0.0
    %251 = vmatpush1.msra.mxu0 0.0
    %252 = vmatprep.subr.mxu0 0.0
    %253 = vmatpush1.msra.mxu0 0.0
    %254 = vmatprep.subr.mxu0 0.0
    %255 = vmatpush1.msra.mxu0 0.0
    %256 = vmatprep.subr.mxu0 0.0
    %257 = vmatpush1.msra.mxu0 0.0
    %258 = vmatprep.subr.mxu0 0.0
    %259 = vmatpush1.msra.mxu0 0.0
    %260 = vmatprep.subr.mxu0 0.0
    %261 = vmatpush1.msra.mxu0 0.0
    %262 = vmatprep.subr.mxu0 0.0
    %263 = vmatpush1.msra.mxu0 0.0
    %264 = vmatprep.subr.mxu0 0.0
    %265 = vmatpush1.msra.mxu0 0.0
    %266 = vmatprep.mubr.f32.mxu0 0.0
    %267 = vmatmul.mubr.f32.gmra.mrb[0].mxu0 %v197
    %v268 = vpop.f32.mrb[0].mxu0
    %v269 = vadd.f32 %v194, %v268
    %v270 = vpop.f32.mrb[0].mxu0
    %271 = vmatprep.mubr.f32.mxu0 0.0
    %272 = vmatmul.mubr.f32.gmra.mrb[0].mxu0 %v200
    %v273 = vpop.f32.mrb[0].mxu0
    %v274 = vadd.f32 %v194, %v273
    %v275 = vpop.f32.mrb[0].mxu0
    %276 = vdwg.mxu0
    %v278 = vlaneseq
    %v279 = vshrl.u32 %v278, 7
    %v280 = vsub.s32 0, %v279
    %v281 = vrot.slane %v94, %v280
    %v284 = vsel %vm108, %v100, 0
    %v287 = vsel %vm108, %v101, 0
    %289 = vmatprep.subr.mxu0 0.0
    %290 = vmatpush1.msra.mxu0 %v84
    %291 = vmatprep.subr.mxu0 0.0
    %292 = vmatpush1.msra.mxu0 %v85
    %293 = vmatprep.subr.mxu0 0.0
    %294 = vmatpush1.msra.mxu0 %v86
    %295 = vmatprep.subr.mxu0 0.0
    %296 = vmatpush1.msra.mxu0 %v87
    %297 = vmatprep.subr.mxu0 0.0
    %298 = vmatpush1.msra.mxu0 0.0
    %299 = vmatprep.subr.mxu0 0.0
    %300 = vmatpush1.msra.mxu0 0.0
    %301 = vmatprep.subr.mxu0 0.0
    %302 = vmatpush1.msra.mxu0 0.0
    %303 = vmatprep.subr.mxu0 0.0
    %304 = vmatpush1.msra.mxu0 0.0
    %305 = vmatprep.subr.mxu0 0.0
    %306 = vmatpush1.msra.mxu0 0.0
    %307 = vmatprep.subr.mxu0 0.0
    %308 = vmatpush1.msra.mxu0 0.0
    %309 = vmatprep.subr.mxu0 0.0
    %310 = vmatpush1.msra.mxu0 0.0
    %311 = vmatprep.subr.mxu0 0.0
    %312 = vmatpush1.msra.mxu0 0.0
    %313 = vmatprep.subr.mxu0 0.0
    %314 = vmatpush1.msra.mxu0 0.0
    %315 = vmatprep.subr.mxu0 0.0
    %316 = vmatpush1.msra.mxu0 0.0
    %317 = vmatprep.subr.mxu0 0.0
    %318 = vmatpush1.msra.mxu0 0.0
    %319 = vmatprep.subr.mxu0 0.0
    %320 = vmatpush1.msra.mxu0 0.0
    %321 = vmatprep.subr.mxu0 0.0
    %322 = vmatpush1.msra.mxu0 0.0
    %323 = vmatprep.subr.mxu0 0.0
    %324 = vmatpush1.msra.mxu0 0.0
    %325 = vmatprep.subr.mxu0 0.0
    %326 = vmatpush1.msra.mxu0 0.0
    %327 = vmatprep.subr.mxu0 0.0
    %328 = vmatpush1.msra.mxu0 0.0
    %329 = vmatprep.subr.mxu0 0.0
    %330 = vmatpush1.msra.mxu0 0.0
    %331 = vmatprep.subr.mxu0 0.0
    %332 = vmatpush1.msra.mxu0 0.0
    %333 = vmatprep.subr.mxu0 0.0
    %334 = vmatpush1.msra.mxu0 0.0
    %335 = vmatprep.subr.mxu0 0.0
    %336 = vmatpush1.msra.mxu0 0.0
    %337 = vmatprep.subr.mxu0 0.0
    %338 = vmatpush1.msra.mxu0 0.0
    %339 = vmatprep.subr.mxu0 0.0
    %340 = vmatpush1.msra.mxu0 0.0
    %341 = vmatprep.subr.mxu0 0.0
    %342 = vmatpush1.msra.mxu0 0.0
    %343 = vmatprep.subr.mxu0 0.0
    %344 = vmatpush1.msra.mxu0 0.0
    %345 = vmatprep.subr.mxu0 0.0
    %346 = vmatpush1.msra.mxu0 0.0
    %347 = vmatprep.subr.mxu0 0.0
    %348 = vmatpush1.msra.mxu0 0.0
    %349 = vmatprep.subr.mxu0 0.0
    %350 = vmatpush1.msra.mxu0 0.0
    %351 = vmatprep.subr.mxu0 0.0
    %352 = vmatpush1.msra.mxu0 0.0
    %353 = vmatprep.mubr.f32.mxu0 0.0
    %354 = vmatmul.mubr.f32.gmra.mrb[0].mxu0 %v284
    %v355 = vpop.f32.mrb[0].mxu0
    %v356 = vadd.f32 %v281, %v355
    %v357 = vpop.f32.mrb[0].mxu0
    %358 = vmatprep.mubr.f32.mxu0 0.0
    %359 = vmatmul.mubr.f32.gmra.mrb[0].mxu0 %v287
    %v360 = vpop.f32.mrb[0].mxu0
    %v361 = vadd.f32 %v281, %v360
    %v362 = vpop.f32.mrb[0].mxu0
    %363 = vdwg.mxu0
    %vm364 = vcmask 64512
    %v366 = vsel %vm364, %v182, 0
    %v369 = vsel %vm364, %v269, 0
    %371 = vmatprep.subr.mxu0 0.0
    %372 = vmatpush1.xpose.msra.mxu0 %v369
    %373 = vmatprep.subr.mxu0 0.0
    %374 = vmatpush1.xpose.msra.mxu0 0.0
    %375 = vmatprep.subr.mxu0 0.0
    %376 = vmatpush1.xpose.msra.mxu0 0.0
    %377 = vmatprep.subr.mxu0 0.0
    %378 = vmatpush1.xpose.msra.mxu0 0.0
    %379 = vmatprep.subr.mxu0 0.0
    %380 = vmatpush1.xpose.msra.mxu0 0.0
    %381 = vmatprep.subr.mxu0 0.0
    %382 = vmatpush1.xpose.msra.mxu0 0.0
    %383 = vmatprep.subr.mxu0 0.0
    %384 = vmatpush1.xpose.msra.mxu0 0.0
    %385 = vmatprep.subr.mxu0 0.0
    %386 = vmatpush1.xpose.msra.mxu0 0.0
    %387 = vmatprep.subr.mxu0 0.0
    %388 = vmatpush1.xpose.msra.mxu0 0.0
    %389 = vmatprep.subr.mxu0 0.0
    %390 = vmatpush1.xpose.msra.mxu0 0.0
    %391 = vmatprep.subr.mxu0 0.0
    %392 = vmatpush1.xpose.msra.mxu0 0.0
    %393 = vmatprep.subr.mxu0 0.0
    %394 = vmatpush1.xpose.msra.mxu0 0.0
    %395 = vmatprep.subr.mxu0 0.0
    %396 = vmatpush1.xpose.msra.mxu0 0.0
    %397 = vmatprep.subr.mxu0 0.0
    %398 = vmatpush1.xpose.msra.mxu0 0.0
    %399 = vmatprep.subr.mxu0 0.0
    %400 = vmatpush1.xpose.msra.mxu0 0.0
    %401 = vmatprep.subr.mxu0 0.0
    %402 = vmatpush1.xpose.msra.mxu0 0.0
    %403 = vmatprep.subr.mxu0 0.0
    %404 = vmatpush1.xpose.msra.mxu0 0.0
    %405 = vmatprep.subr.mxu0 0.0
    %406 = vmatpush1.xpose.msra.mxu0 0.0
    %407 = vmatprep.subr.mxu0 0.0
    %408 = vmatpush1.xpose.msra.mxu0 0.0
    %409 = vmatprep.subr.mxu0 0.0
    %410 = vmatpush1.xpose.msra.mxu0 0.0
    %411 = vmatprep.subr.mxu0 0.0
    %412 = vmatpush1.xpose.msra.mxu0 0.0
    %413 = vmatprep.subr.mxu0 0.0
    %414 = vmatpush1.xpose.msra.mxu0 0.0
    %415 = vmatprep.subr.mxu0 0.0
    %416 = vmatpush1.xpose.msra.mxu0 0.0
    %417 = vmatprep.subr.mxu0 0.0
    %418 = vmatpush1.xpose.msra.mxu0 0.0
    %419 = vmatprep.subr.mxu0 0.0
    %420 = vmatpush1.xpose.msra.mxu0 0.0
    %421 = vmatprep.subr.mxu0 0.0
    %422 = vmatpush1.xpose.msra.mxu0 0.0
    %423 = vmatprep.subr.mxu0 0.0
    %424 = vmatpush1.xpose.msra.mxu0 0.0
    %425 = vmatprep.subr.mxu0 0.0
    %426 = vmatpush1.xpose.msra.mxu0 0.0
    %427 = vmatprep.subr.mxu0 0.0
    %428 = vmatpush1.xpose.msra.mxu0 0.0
    %429 = vmatprep.subr.mxu0 0.0
    %430 = vmatpush1.xpose.msra.mxu0 0.0
    %431 = vmatprep.subr.mxu0 0.0
    %432 = vmatpush1.xpose.msra.mxu0 0.0
    %433 = vmatprep.subr.mxu0 0.0
    %434 = vmatpush1.xpose.msra.mxu0 0.0
    %435 = vmatprep.mubr.f32.mxu0 0.0
    %436 = vmatmul.mubr.f32.gmra.mrb[0].mxu0 %v366
    %v437 = vpop.f32.mrb[0].mxu0
    %v438 = vadd.f32 0.0, %v437
    %v439 = vpop.f32.mrb[0].mxu0
    %440 = vdwg.mxu0
    %v442 = vsel %vm364, %v187, 0
    %v445 = vsel %vm364, %v274, 0
    %447 = vmatprep.subr.mxu0 0.0
    %448 = vmatpush1.xpose.msra.mxu0 %v445
    %449 = vmatprep.subr.mxu0 0.0
    %450 = vmatpush1.xpose.msra.mxu0 0.0
    %451 = vmatprep.subr.mxu0 0.0
    %452 = vmatpush1.xpose.msra.mxu0 0.0
    %453 = vmatprep.subr.mxu0 0.0
    %454 = vmatpush1.xpose.msra.mxu0 0.0
    %455 = vmatprep.subr.mxu0 0.0
    %456 = vmatpush1.xpose.msra.mxu0 0.0
    %457 = vmatprep.subr.mxu0 0.0
    %458 = vmatpush1.xpose.msra.mxu0 0.0
    %459 = vmatprep.subr.mxu0 0.0
    %460 = vmatpush1.xpose.msra.mxu0 0.0
    %461 = vmatprep.subr.mxu0 0.0
    %462 = vmatpush1.xpose.msra.mxu0 0.0
    %463 = vmatprep.subr.mxu0 0.0
    %464 = vmatpush1.xpose.msra.mxu0 0.0
    %465 = vmatprep.subr.mxu0 0.0
    %466 = vmatpush1.xpose.msra.mxu0 0.0
    %467 = vmatprep.subr.mxu0 0.0
    %468 = vmatpush1.xpose.msra.mxu0 0.0
    %469 = vmatprep.subr.mxu0 0.0
    %470 = vmatpush1.xpose.msra.mxu0 0.0
    %471 = vmatprep.subr.mxu0 0.0
    %472 = vmatpush1.xpose.msra.mxu0 0.0
    %473 = vmatprep.subr.mxu0 0.0
    %474 = vmatpush1.xpose.msra.mxu0 0.0
    %475 = vmatprep.subr.mxu0 0.0
    %476 = vmatpush1.xpose.msra.mxu0 0.0
    %477 = vmatprep.subr.mxu0 0.0
    %478 = vmatpush1.xpose.msra.mxu0 0.0
    %479 = vmatprep.subr.mxu0 0.0
    %480 = vmatpush1.xpose.msra.mxu0 0.0
    %481 = vmatprep.subr.mxu0 0.0
    %482 = vmatpush1.xpose.msra.mxu0 0.0
    %483 = vmatprep.subr.mxu0 0.0
    %484 = vmatpush1.xpose.msra.mxu0 0.0
    %485 = vmatprep.subr.mxu0 0.0
    %486 = vmatpush1.xpose.msra.mxu0 0.0
    %487 = vmatprep.subr.mxu0 0.0
    %488 = vmatpush1.xpose.msra.mxu0 0.0
    %489 = vmatprep.subr.mxu0 0.0
    %490 = vmatpush1.xpose.msra.mxu0 0.0
    %491 = vmatprep.subr.mxu0 0.0
    %492 = vmatpush1.xpose.msra.mxu0 0.0
    %493 = vmatprep.subr.mxu0 0.0
    %494 = vmatpush1.xpose.msra.mxu0 0.0
    %495 = vmatprep.subr.mxu0 0.0
    %496 = vmatpush1.xpose.msra.mxu0 0.0
    %497 = vmatprep.subr.mxu0 0.0
    %498 = vmatpush1.xpose.msra.mxu0 0.0
    %499 = vmatprep.subr.mxu0 0.0
    %500 = vmatpush1.xpose.msra.mxu0 0.0
    %501 = vmatprep.subr.mxu0 0.0
    %502 = vmatpush1.xpose.msra.mxu0 0.0
    %503 = vmatprep.subr.mxu0 0.0
    %504 = vmatpush1.xpose.msra.mxu0 0.0
    %505 = vmatprep.subr.mxu0 0.0
    %506 = vmatpush1.xpose.msra.mxu0 0.0
    %507 = vmatprep.subr.mxu0 0.0
    %508 = vmatpush1.xpose.msra.mxu0 0.0
    %509 = vmatprep.subr.mxu0 0.0
    %510 = vmatpush1.xpose.msra.mxu0 0.0
    %511 = vmatprep.mubr.f32.mxu0 0.0
    %512 = vmatmul.mubr.f32.gmra.mrb[0].mxu0 %v442
    %v513 = vpop.f32.mrb[0].mxu0
    %v514 = vadd.f32 0.0, %v513
    %v515 = vpop.f32.mrb[0].mxu0
    %516 = vdwg.mxu0
    %v517 = vsel %vm364, %v438, -inf
    %518 = vmax.xlane.f32.xlu0 %v517
    %v519 = vpop.xlane.xlu0 %518
    %v520 = vsel %vm364, %v514, -inf
    %521 = vmax.xlane.f32.xlu0 %v520
    %v522 = vpop.xlane.xlu0 %521
    %v523 = vsub.f32 %v438, %v519
    %v524 = vsub.f32 %v514, %v522
    %v525 = vmul.f32 %v523, 1.442695
    %v526 = vpow.pop %v525
    %v527 = vmul.f32 %v524, 1.442695
    %v528 = vpow.pop %v527
    %v529 = vsel %vm364, %v526, 0.0
    %530 = vadd.xlane.f32.xlu0 %v529
    %v531 = vpop.xlane.xlu0 %530
    %v532 = vsel %vm364, %v528, 0.0
    %533 = vadd.xlane.f32.xlu0 %v532
    %v534 = vpop.xlane.xlu0 %533
    %v535 = vrcp.pop %v531
    %v536 = vrcp.pop %v534
    %v537 = vmul.f32 %v526, %v535
    %v538 = vmul.f32 %v528, %v536
    %v540 = vsel %vm364, %v537, 0
    %542 = vmatprep.subr.mxu0 0.0
    %543 = vmatpush1.msra.mxu0 %v356
    %544 = vmatprep.subr.mxu0 0.0
    %545 = vmatpush1.msra.mxu0 0.0
    %546 = vmatprep.subr.mxu0 0.0
    %547 = vmatpush1.msra.mxu0 0.0
    %548 = vmatprep.subr.mxu0 0.0
    %549 = vmatpush1.msra.mxu0 0.0
    %550 = vmatprep.subr.mxu0 0.0
    %551 = vmatpush1.msra.mxu0 0.0
    %552 = vmatprep.subr.mxu0 0.0
    %553 = vmatpush1.msra.mxu0 0.0
    %554 = vmatprep.subr.mxu0 0.0
    %555 = vmatpush1.msra.mxu0 0.0
    %556 = vmatprep.subr.mxu0 0.0
    %557 = vmatpush1.msra.mxu0 0.0
    %558 = vmatprep.subr.mxu0 0.0
    %559 = vmatpush1.msra.mxu0 0.0
    %560 = vmatprep.subr.mxu0 0.0
    %561 = vmatpush1.msra.mxu0 0.0
    %562 = vmatprep.subr.mxu0 0.0
    %563 = vmatpush1.msra.mxu0 0.0
    %564 = vmatprep.subr.mxu0 0.0
    %565 = vmatpush1.msra.mxu0 0.0
    %566 = vmatprep.subr.mxu0 0.0
    %567 = vmatpush1.msra.mxu0 0.0
    %568 = vmatprep.subr.mxu0 0.0
    %569 = vmatpush1.msra.mxu0 0.0
    %570 = vmatprep.subr.mxu0 0.0
    %571 = vmatpush1.msra.mxu0 0.0
    %572 = vmatprep.subr.mxu0 0.0
    %573 = vmatpush1.msra.mxu0 0.0
    %574 = vmatprep.subr.mxu0 0.0
    %575 = vmatpush1.msra.mxu0 0.0
    %576 = vmatprep.subr.mxu0 0.0
    %577 = vmatpush1.msra.mxu0 0.0
    %578 = vmatprep.subr.mxu0 0.0
    %579 = vmatpush1.msra.mxu0 0.0
    %580 = vmatprep.subr.mxu0 0.0
    %581 = vmatpush1.msra.mxu0 0.0
    %582 = vmatprep.subr.mxu0 0.0
    %583 = vmatpush1.msra.mxu0 0.0
    %584 = vmatprep.subr.mxu0 0.0
    %585 = vmatpush1.msra.mxu0 0.0
    %586 = vmatprep.subr.mxu0 0.0
    %587 = vmatpush1.msra.mxu0 0.0
    %588 = vmatprep.subr.mxu0 0.0
    %589 = vmatpush1.msra.mxu0 0.0
    %590 = vmatprep.subr.mxu0 0.0
    %591 = vmatpush1.msra.mxu0 0.0
    %592 = vmatprep.subr.mxu0 0.0
    %593 = vmatpush1.msra.mxu0 0.0
    %594 = vmatprep.subr.mxu0 0.0
    %595 = vmatpush1.msra.mxu0 0.0
    %596 = vmatprep.subr.mxu0 0.0
    %597 = vmatpush1.msra.mxu0 0.0
    %598 = vmatprep.subr.mxu0 0.0
    %599 = vmatpush1.msra.mxu0 0.0
    %600 = vmatprep.subr.mxu0 0.0
    %601 = vmatpush1.msra.mxu0 0.0
    %602 = vmatprep.subr.mxu0 0.0
    %603 = vmatpush1.msra.mxu0 0.0
    %604 = vmatprep.subr.mxu0 0.0
    %605 = vmatpush1.msra.mxu0 0.0
    %606 = vmatprep.mubr.f32.mxu0 0.0
    %607 = vmatmul.mubr.f32.gmra.mrb[0].mxu0 %v540
    %v608 = vpop.f32.mrb[0].mxu0
    %v609 = vadd.f32 0.0, %v608
    %v610 = vpop.f32.mrb[0].mxu0
    %611 = vdwg.mxu0
    %v613 = vsel %vm364, %v538, 0
    %615 = vmatprep.subr.mxu0 0.0
    %616 = vmatpush1.msra.mxu0 %v361
    %617 = vmatprep.subr.mxu0 0.0
    %618 = vmatpush1.msra.mxu0 0.0
    %619 = vmatprep.subr.mxu0 0.0
    %620 = vmatpush1.msra.mxu0 0.0
    %621 = vmatprep.subr.mxu0 0.0
    %622 = vmatpush1.msra.mxu0 0.0
    %623 = vmatprep.subr.mxu0 0.0
    %624 = vmatpush1.msra.mxu0 0.0
    %625 = vmatprep.subr.mxu0 0.0
    %626 = vmatpush1.msra.mxu0 0.0
    %627 = vmatprep.subr.mxu0 0.0
    %628 = vmatpush1.msra.mxu0 0.0
    %629 = vmatprep.subr.mxu0 0.0
    %630 = vmatpush1.msra.mxu0 0.0
    %631 = vmatprep.subr.mxu0 0.0
    %632 = vmatpush1.msra.mxu0 0.0
    %633 = vmatprep.subr.mxu0 0.0
    %634 = vmatpush1.msra.mxu0 0.0
    %635 = vmatprep.subr.mxu0 0.0
    %636 = vmatpush1.msra.mxu0 0.0
    %637 = vmatprep.subr.mxu0 0.0
    %638 = vmatpush1.msra.mxu0 0.0
    %639 = vmatprep.subr.mxu0 0.0
    %640 = vmatpush1.msra.mxu0 0.0
    %641 = vmatprep.subr.mxu0 0.0
    %642 = vmatpush1.msra.mxu0 0.0
    %643 = vmatprep.subr.mxu0 0.0
    %644 = vmatpush1.msra.mxu0 0.0
    %645 = vmatprep.subr.mxu0 0.0
    %646 = vmatpush1.msra.mxu0 0.0
    %647 = vmatprep.subr.mxu0 0.0
    %648 = vmatpush1.msra.mxu0 0.0
    %649 = vmatprep.subr.mxu0 0.0
    %650 = vmatpush1.msra.mxu0 0.0
    %651 = vmatprep.subr.mxu0 0.0
    %652 = vmatpush1.msra.mxu0 0.0
    %653 = vmatprep.subr.mxu0 0.0
    %654 = vmatpush1.msra.mxu0 0.0
    %655 = vmatprep.subr.mxu0 0.0
    %656 = vmatpush1.msra.mxu0 0.0
    %657 = vmatprep.subr.mxu0 0.0
    %658 = vmatpush1.msra.mxu0 0.0
    %659 = vmatprep.subr.mxu0 0.0
    %660 = vmatpush1.msra.mxu0 0.0
    %661 = vmatprep.subr.mxu0 0.0
    %662 = vmatpush1.msra.mxu0 0.0
    %663 = vmatprep.subr.mxu0 0.0
    %664 = vmatpush1.msra.mxu0 0.0
    %665 = vmatprep.subr.mxu0 0.0
    %666 = vmatpush1.msra.mxu0 0.0
    %667 = vmatprep.subr.mxu0 0.0
    %668 = vmatpush1.msra.mxu0 0.0
    %669 = vmatprep.subr.mxu0 0.0
    %670 = vmatpush1.msra.mxu0 0.0
    %671 = vmatprep.subr.mxu0 0.0
    %672 = vmatpush1.msra.mxu0 0.0
    %673 = vmatprep.subr.mxu0 0.0
    %674 = vmatpush1.msra.mxu0 0.0
    %675 = vmatprep.subr.mxu0 0.0
    %676 = vmatpush1.msra.mxu0 0.0
    %677 = vmatprep.subr.mxu0 0.0
    %678 = vmatpush1.msra.mxu0 0.0
    %679 = vmatprep.mubr.f32.mxu0 0.0
    %680 = vmatmul.mubr.f32.gmra.mrb[0].mxu0 %v613
    %v681 = vpop.f32.mrb[0].mxu0
    %v682 = vadd.f32 0.0, %v681
    %v683 = vpop.f32.mrb[0].mxu0
    %684 = vdwg.mxu0
    %685 = vrot.lane.b32.xlu0 %v182, 120
    %v686 = vpop.permute.xlu0 %685
    %687 = vrot.lane.b32.xlu0 %v269, 120
    %v688 = vpop.permute.xlu0 %687
    %v689 = vsel %vm364, %v686, 0
    %v691 = vsel %vm364, %v688, 0
    %693 = vmatprep.subr.mxu0 0.0
    %694 = vmatpush1.xpose.msra.mxu0 %v691
    %695 = vmatprep.subr.mxu0 0.0
    %696 = vmatpush1.xpose.msra.mxu0 0.0
    %697 = vmatprep.subr.mxu0 0.0
    %698 = vmatpush1.xpose.msra.mxu0 0.0
    %699 = vmatprep.subr.mxu0 0.0
    %700 = vmatpush1.xpose.msra.mxu0 0.0
    %701 = vmatprep.subr.mxu0 0.0
    %702 = vmatpush1.xpose.msra.mxu0 0.0
    %703 = vmatprep.subr.mxu0 0.0
    %704 = vmatpush1.xpose.msra.mxu0 0.0
    %705 = vmatprep.subr.mxu0 0.0
    %706 = vmatpush1.xpose.msra.mxu0 0.0
    %707 = vmatprep.subr.mxu0 0.0
    %708 = vmatpush1.xpose.msra.mxu0 0.0
    %709 = vmatprep.subr.mxu0 0.0
    %710 = vmatpush1.xpose.msra.mxu0 0.0
    %711 = vmatprep.subr.mxu0 0.0
    %712 = vmatpush1.xpose.msra.mxu0 0.0
    %713 = vmatprep.subr.mxu0 0.0
    %714 = vmatpush1.xpose.msra.mxu0 0.0
    %715 = vmatprep.subr.mxu0 0.0
    %716 = vmatpush1.xpose.msra.mxu0 0.0
    %717 = vmatprep.subr.mxu0 0.0
    %718 = vmatpush1.xpose.msra.mxu0 0.0
    %719 = vmatprep.subr.mxu0 0.0
    %720 = vmatpush1.xpose.msra.mxu0 0.0
    %721 = vmatprep.subr.mxu0 0.0
    %722 = vmatpush1.xpose.msra.mxu0 0.0
    %723 = vmatprep.subr.mxu0 0.0
    %724 = vmatpush1.xpose.msra.mxu0 0.0
    %725 = vmatprep.subr.mxu0 0.0
    %726 = vmatpush1.xpose.msra.mxu0 0.0
    %727 = vmatprep.subr.mxu0 0.0
    %728 = vmatpush1.xpose.msra.mxu0 0.0
    %729 = vmatprep.subr.mxu0 0.0
    %730 = vmatpush1.xpose.msra.mxu0 0.0
    %731 = vmatprep.subr.mxu0 0.0
    %732 = vmatpush1.xpose.msra.mxu0 0.0
    %733 = vmatprep.subr.mxu0 0.0
    %734 = vmatpush1.xpose.msra.mxu0 0.0
    %735 = vmatprep.subr.mxu0 0.0
    %736 = vmatpush1.xpose.msra.mxu0 0.0
    %737 = vmatprep.subr.mxu0 0.0
    %738 = vmatpush1.xpose.msra.mxu0 0.0
    %739 = vmatprep.subr.mxu0 0.0
    %740 = vmatpush1.xpose.msra.mxu0 0.0
    %741 = vmatprep.subr.mxu0 0.0
    %742 = vmatpush1.xpose.msra.mxu0 0.0
    %743 = vmatprep.subr.mxu0 0.0
    %744 = vmatpush1.xpose.msra.mxu0 0.0
    %745 = vmatprep.subr.mxu0 0.0
    %746 = vmatpush1.xpose.msra.mxu0 0.0
    %747 = vmatprep.subr.mxu0 0.0
    %748 = vmatpush1.xpose.msra.mxu0 0.0
    %749 = vmatprep.subr.mxu0 0.0
    %750 = vmatpush1.xpose.msra.mxu0 0.0
    %751 = vmatprep.subr.mxu0 0.0
    %752 = vmatpush1.xpose.msra.mxu0 0.0
    %753 = vmatprep.subr.mxu0 0.0
    %754 = vmatpush1.xpose.msra.mxu0 0.0
    %755 = vmatprep.subr.mxu0 0.0
    %756 = vmatpush1.xpose.msra.mxu0 0.0
    %757 = vmatprep.mubr.f32.mxu0 0.0
    %758 = vmatmul.mubr.f32.gmra.mrb[0].mxu0 %v689
    %v759 = vpop.f32.mrb[0].mxu0
    %v760 = vadd.f32 0.0, %v759
    %v761 = vpop.f32.mrb[0].mxu0
    %762 = vdwg.mxu0
    %763 = vrot.lane.b32.xlu0 %v187, 120
    %v764 = vpop.permute.xlu0 %763
    %765 = vrot.lane.b32.xlu0 %v274, 120
    %v766 = vpop.permute.xlu0 %765
    %v767 = vsel %vm364, %v764, 0
    %v769 = vsel %vm364, %v766, 0
    %771 = vmatprep.subr.mxu0 0.0
    %772 = vmatpush1.xpose.msra.mxu0 %v769
    %773 = vmatprep.subr.mxu0 0.0
    %774 = vmatpush1.xpose.msra.mxu0 0.0
    %775 = vmatprep.subr.mxu0 0.0
    %776 = vmatpush1.xpose.msra.mxu0 0.0
    %777 = vmatprep.subr.mxu0 0.0
    %778 = vmatpush1.xpose.msra.mxu0 0.0
    %779 = vmatprep.subr.mxu0 0.0
    %780 = vmatpush1.xpose.msra.mxu0 0.0
    %781 = vmatprep.subr.mxu0 0.0
    %782 = vmatpush1.xpose.msra.mxu0 0.0
    %783 = vmatprep.subr.mxu0 0.0
    %784 = vmatpush1.xpose.msra.mxu0 0.0
    %785 = vmatprep.subr.mxu0 0.0
    %786 = vmatpush1.xpose.msra.mxu0 0.0
    %787 = vmatprep.subr.mxu0 0.0
    %788 = vmatpush1.xpose.msra.mxu0 0.0
    %789 = vmatprep.subr.mxu0 0.0
    %790 = vmatpush1.xpose.msra.mxu0 0.0
    %791 = vmatprep.subr.mxu0 0.0
    %792 = vmatpush1.xpose.msra.mxu0 0.0
    %793 = vmatprep.subr.mxu0 0.0
    %794 = vmatpush1.xpose.msra.mxu0 0.0
    %795 = vmatprep.subr.mxu0 0.0
    %796 = vmatpush1.xpose.msra.mxu0 0.0
    %797 = vmatprep.subr.mxu0 0.0
    %798 = vmatpush1.xpose.msra.mxu0 0.0
    %799 = vmatprep.subr.mxu0 0.0
    %800 = vmatpush1.xpose.msra.mxu0 0.0
    %801 = vmatprep.subr.mxu0 0.0
    %802 = vmatpush1.xpose.msra.mxu0 0.0
    %803 = vmatprep.subr.mxu0 0.0
    %804 = vmatpush1.xpose.msra.mxu0 0.0
    %805 = vmatprep.subr.mxu0 0.0
    %806 = vmatpush1.xpose.msra.mxu0 0.0
    %807 = vmatprep.subr.mxu0 0.0
    %808 = vmatpush1.xpose.msra.mxu0 0.0
    %809 = vmatprep.subr.mxu0 0.0
    %810 = vmatpush1.xpose.msra.mxu0 0.0
    %811 = vmatprep.subr.mxu0 0.0
    %812 = vmatpush1.xpose.msra.mxu0 0.0
    %813 = vmatprep.subr.mxu0 0.0
    %814 = vmatpush1.xpose.msra.mxu0 0.0
    %815 = vmatprep.subr.mxu0 0.0
    %816 = vmatpush1.xpose.msra.mxu0 0.0
    %817 = vmatprep.subr.mxu0 0.0
    %818 = vmatpush1.xpose.msra.mxu0 0.0
    %819 = vmatprep.subr.mxu0 0.0
    %820 = vmatpush1.xpose.msra.mxu0 0.0
    %821 = vmatprep.subr.mxu0 0.0
    %822 = vmatpush1.xpose.msra.mxu0 0.0
    %823 = vmatprep.subr.mxu0 0.0
    %824 = vmatpush1.xpose.msra.mxu0 0.0
    %825 = vmatprep.subr.mxu0 0.0
    %826 = vmatpush1.xpose.msra.mxu0 0.0
    %827 = vmatprep.subr.mxu0 0.0
    %828 = vmatpush1.xpose.msra.mxu0 0.0
    %829 = vmatprep.subr.mxu0 0.0
    %830 = vmatpush1.xpose.msra.mxu0 0.0
    %831 = vmatprep.subr.mxu0 0.0
    %832 = vmatpush1.xpose.msra.mxu0 0.0
    %833 = vmatprep.subr.mxu0 0.0
    %834 = vmatpush1.xpose.msra.mxu0 0.0
    %835 = vmatprep.mubr.f32.mxu0 0.0
    %836 = vmatmul.mubr.f32.gmra.mrb[0].mxu0 %v767
    %v837 = vpop.f32.mrb[0].mxu0
    %v838 = vadd.f32 0.0, %v837
    %v839 = vpop.f32.mrb[0].mxu0
    %840 = vdwg.mxu0
    %v841 = vsel %vm364, %v760, -inf
    %842 = vmax.xlane.f32.xlu0 %v841
    %v843 = vpop.xlane.xlu0 %842
    %v844 = vsel %vm364, %v838, -inf
    %845 = vmax.xlane.f32.xlu0 %v844
    %v846 = vpop.xlane.xlu0 %845
    %v847 = vsub.f32 %v760, %v843
    %v848 = vsub.f32 %v838, %v846
    %v849 = vmul.f32 %v847, 1.442695
    %v850 = vpow.pop %v849
    %v851 = vmul.f32 %v848, 1.442695
    %v852 = vpow.pop %v851
    %v853 = vsel %vm364, %v850, 0.0
    %854 = vadd.xlane.f32.xlu0 %v853
    %v855 = vpop.xlane.xlu0 %854
    %v856 = vsel %vm364, %v852, 0.0
    %857 = vadd.xlane.f32.xlu0 %v856
    %v858 = vpop.xlane.xlu0 %857
    %v859 = vrcp.pop %v855
    %v860 = vrcp.pop %v858
    %v861 = vmul.f32 %v850, %v859
    %v862 = vmul.f32 %v852, %v860
    %864 = vrot.lane.b32.xlu0 %v356, 120
    %v865 = vpop.permute.xlu0 %864
    %v868 = vsel %vm364, %v861, 0
    %870 = vmatprep.subr.mxu0 0.0
    %871 = vmatpush1.msra.mxu0 %v865
    %872 = vmatprep.subr.mxu0 0.0
    %873 = vmatpush1.msra.mxu0 0.0
    %874 = vmatprep.subr.mxu0 0.0
    %875 = vmatpush1.msra.mxu0 0.0
    %876 = vmatprep.subr.mxu0 0.0
    %877 = vmatpush1.msra.mxu0 0.0
    %878 = vmatprep.subr.mxu0 0.0
    %879 = vmatpush1.msra.mxu0 0.0
    %880 = vmatprep.subr.mxu0 0.0
    %881 = vmatpush1.msra.mxu0 0.0
    %882 = vmatprep.subr.mxu0 0.0
    %883 = vmatpush1.msra.mxu0 0.0
    %884 = vmatprep.subr.mxu0 0.0
    %885 = vmatpush1.msra.mxu0 0.0
    %886 = vmatprep.subr.mxu0 0.0
    %887 = vmatpush1.msra.mxu0 0.0
    %888 = vmatprep.subr.mxu0 0.0
    %889 = vmatpush1.msra.mxu0 0.0
    %890 = vmatprep.subr.mxu0 0.0
    %891 = vmatpush1.msra.mxu0 0.0
    %892 = vmatprep.subr.mxu0 0.0
    %893 = vmatpush1.msra.mxu0 0.0
    %894 = vmatprep.subr.mxu0 0.0
    %895 = vmatpush1.msra.mxu0 0.0
    %896 = vmatprep.subr.mxu0 0.0
    %897 = vmatpush1.msra.mxu0 0.0
    %898 = vmatprep.subr.mxu0 0.0
    %899 = vmatpush1.msra.mxu0 0.0
    %900 = vmatprep.subr.mxu0 0.0
    %901 = vmatpush1.msra.mxu0 0.0
    %902 = vmatprep.subr.mxu0 0.0
    %903 = vmatpush1.msra.mxu0 0.0
    %904 = vmatprep.subr.mxu0 0.0
    %905 = vmatpush1.msra.mxu0 0.0
    %906 = vmatprep.subr.mxu0 0.0
    %907 = vmatpush1.msra.mxu0 0.0
    %908 = vmatprep.subr.mxu0 0.0
    %909 = vmatpush1.msra.mxu0 0.0
    %910 = vmatprep.subr.mxu0 0.0
    %911 = vmatpush1.msra.mxu0 0.0
    %912 = vmatprep.subr.mxu0 0.0
    %913 = vmatpush1.msra.mxu0 0.0
    %914 = vmatprep.subr.mxu0 0.0
    %915 = vmatpush1.msra.mxu0 0.0
    %916 = vmatprep.subr.mxu0 0.0
    %917 = vmatpush1.msra.mxu0 0.0
    %918 = vmatprep.subr.mxu0 0.0
    %919 = vmatpush1.msra.mxu0 0.0
    %920 = vmatprep.subr.mxu0 0.0
    %921 = vmatpush1.msra.mxu0 0.0
    %922 = vmatprep.subr.mxu0 0.0
    %923 = vmatpush1.msra.mxu0 0.0
    %924 = vmatprep.subr.mxu0 0.0
    %925 = vmatpush1.msra.mxu0 0.0
    %926 = vmatprep.subr.mxu0 0.0
    %927 = vmatpush1.msra.mxu0 0.0
    %928 = vmatprep.subr.mxu0 0.0
    %929 = vmatpush1.msra.mxu0 0.0
    %930 = vmatprep.subr.mxu0 0.0
    %931 = vmatpush1.msra.mxu0 0.0
    %932 = vmatprep.subr.mxu0 0.0
    %933 = vmatpush1.msra.mxu0 0.0
    %934 = vmatprep.mubr.f32.mxu0 0.0
    %935 = vmatmul.mubr.f32.gmra.mrb[0].mxu0 %v868
    %v936 = vpop.f32.mrb[0].mxu0
    %v937 = vadd.f32 0.0, %v936
    %v938 = vpop.f32.mrb[0].mxu0
    %939 = vdwg.mxu0
    %941 = vrot.lane.b32.xlu0 %v361, 120
    %v942 = vpop.permute.xlu0 %941
    %v945 = vsel %vm364, %v862, 0
    %947 = vmatprep.subr.mxu0 0.0
    %948 = vmatpush1.msra.mxu0 %v942
    %949 = vmatprep.subr.mxu0 0.0
    %950 = vmatpush1.msra.mxu0 0.0
    %951 = vmatprep.subr.mxu0 0.0
    %952 = vmatpush1.msra.mxu0 0.0
    %953 = vmatprep.subr.mxu0 0.0
    %954 = vmatpush1.msra.mxu0 0.0
    %955 = vmatprep.subr.mxu0 0.0
    %956 = vmatpush1.msra.mxu0 0.0
    %957 = vmatprep.subr.mxu0 0.0
    %958 = vmatpush1.msra.mxu0 0.0
    %959 = vmatprep.subr.mxu0 0.0
    %960 = vmatpush1.msra.mxu0 0.0
    %961 = vmatprep.subr.mxu0 0.0
    %962 = vmatpush1.msra.mxu0 0.0
    %963 = vmatprep.subr.mxu0 0.0
    %964 = vmatpush1.msra.mxu0 0.0
    %965 = vmatprep.subr.mxu0 0.0
    %966 = vmatpush1.msra.mxu0 0.0
    %967 = vmatprep.subr.mxu0 0.0
    %968 = vmatpush1.msra.mxu0 0.0
    %969 = vmatprep.subr.mxu0 0.0
    %970 = vmatpush1.msra.mxu0 0.0
    %971 = vmatprep.subr.mxu0 0.0
    %972 = vmatpush1.msra.mxu0 0.0
    %973 = vmatprep.subr.mxu0 0.0
    %974 = vmatpush1.msra.mxu0 0.0
    %975 = vmatprep.subr.mxu0 0.0
    %976 = vmatpush1.msra.mxu0 0.0
    %977 = vmatprep.subr.mxu0 0.0
    %978 = vmatpush1.msra.mxu0 0.0
    %979 = vmatprep.subr.mxu0 0.0
    %980 = vmatpush1.msra.mxu0 0.0
    %981 = vmatprep.subr.mxu0 0.0
    %982 = vmatpush1.msra.mxu0 0.0
    %983 = vmatprep.subr.mxu0 0.0
    %984 = vmatpush1.msra.mxu0 0.0
    %985 = vmatprep.subr.mxu0 0.0
    %986 = vmatpush1.msra.mxu0 0.0
    %987 = vmatprep.subr.mxu0 0.0
    %988 = vmatpush1.msra.mxu0 0.0
    %989 = vmatprep.subr.mxu0 0.0
    %990 = vmatpush1.msra.mxu0 0.0
    %991 = vmatprep.subr.mxu0 0.0
    %992 = vmatpush1.msra.mxu0 0.0
    %993 = vmatprep.subr.mxu0 0.0
    %994 = vmatpush1.msra.mxu0 0.0
    %995 = vmatprep.subr.mxu0 0.0
    %996 = vmatpush1.msra.mxu0 0.0
    %997 = vmatprep.subr.mxu0 0.0
    %998 = vmatpush1.msra.mxu0 0.0
    %999 = vmatprep.subr.mxu0 0.0
    %1000 = vmatpush1.msra.mxu0 0.0
    %1001 = vmatprep.subr.mxu0 0.0
    %1002 = vmatpush1.msra.mxu0 0.0
    %1003 = vmatprep.subr.mxu0 0.0
    %1004 = vmatpush1.msra.mxu0 0.0
    %1005 = vmatprep.subr.mxu0 0.0
    %1006 = vmatpush1.msra.mxu0 0.0
    %1007 = vmatprep.subr.mxu0 0.0
    %1008 = vmatpush1.msra.mxu0 0.0
    %1009 = vmatprep.subr.mxu0 0.0
    %1010 = vmatpush1.msra.mxu0 0.0
    %1011 = vmatprep.mubr.f32.mxu0 0.0
    %1012 = vmatmul.mubr.f32.gmra.mrb[0].mxu0 %v945
    %v1013 = vpop.f32.mrb[0].mxu0
    %v1014 = vadd.f32 0.0, %v1013
    %v1015 = vpop.f32.mrb[0].mxu0
    %1016 = vdwg.mxu0
    %v1018 = vsel %vm364, %v937, 0
    %v1021 = vsel %vm364, %v1014, 0
    %1023 = vmatprep.subr.mxu0 0.0
    %1024 = vmatpush1.msra.mxu0 %v89
    %1025 = vmatprep.subr.mxu0 0.0
    %1026 = vmatpush1.msra.mxu0 0.0
    %1027 = vmatprep.subr.mxu0 0.0
    %1028 = vmatpush1.msra.mxu0 0.0
    %1029 = vmatprep.subr.mxu0 0.0
    %1030 = vmatpush1.msra.mxu0 0.0
    %1031 = vmatprep.subr.mxu0 0.0
    %1032 = vmatpush1.msra.mxu0 0.0
    %1033 = vmatprep.subr.mxu0 0.0
    %1034 = vmatpush1.msra.mxu0 0.0
    %1035 = vmatprep.subr.mxu0 0.0
    %1036 = vmatpush1.msra.mxu0 0.0
    %1037 = vmatprep.subr.mxu0 0.0
    %1038 = vmatpush1.msra.mxu0 0.0
    %1039 = vmatprep.subr.mxu0 0.0
    %1040 = vmatpush1.msra.mxu0 0.0
    %1041 = vmatprep.subr.mxu0 0.0
    %1042 = vmatpush1.msra.mxu0 0.0
    %1043 = vmatprep.subr.mxu0 0.0
    %1044 = vmatpush1.msra.mxu0 0.0
    %1045 = vmatprep.subr.mxu0 0.0
    %1046 = vmatpush1.msra.mxu0 0.0
    %1047 = vmatprep.subr.mxu0 0.0
    %1048 = vmatpush1.msra.mxu0 0.0
    %1049 = vmatprep.subr.mxu0 0.0
    %1050 = vmatpush1.msra.mxu0 0.0
    %1051 = vmatprep.subr.mxu0 0.0
    %1052 = vmatpush1.msra.mxu0 0.0
    %1053 = vmatprep.subr.mxu0 0.0
    %1054 = vmatpush1.msra.mxu0 0.0
    %1055 = vmatprep.subr.mxu0 0.0
    %1056 = vmatpush1.msra.mxu0 0.0
    %1057 = vmatprep.subr.mxu0 0.0
    %1058 = vmatpush1.msra.mxu0 0.0
    %1059 = vmatprep.subr.mxu0 0.0
    %1060 = vmatpush1.msra.mxu0 0.0
    %1061 = vmatprep.subr.mxu0 0.0
    %1062 = vmatpush1.msra.mxu0 0.0
    %1063 = vmatprep.subr.mxu0 0.0
    %1064 = vmatpush1.msra.mxu0 0.0
    %1065 = vmatprep.subr.mxu0 0.0
    %1066 = vmatpush1.msra.mxu0 0.0
    %1067 = vmatprep.subr.mxu0 0.0
    %1068 = vmatpush1.msra.mxu0 0.0
    %1069 = vmatprep.subr.mxu0 0.0
    %1070 = vmatpush1.msra.mxu0 0.0
    %1071 = vmatprep.subr.mxu0 0.0
    %1072 = vmatpush1.msra.mxu0 0.0
    %1073 = vmatprep.subr.mxu0 0.0
    %1074 = vmatpush1.msra.mxu0 0.0
    %1075 = vmatprep.subr.mxu0 0.0
    %1076 = vmatpush1.msra.mxu0 0.0
    %1077 = vmatprep.subr.mxu0 0.0
    %1078 = vmatpush1.msra.mxu0 0.0
    %1079 = vmatprep.subr.mxu0 0.0
    %1080 = vmatpush1.msra.mxu0 0.0
    %1081 = vmatprep.subr.mxu0 0.0
    %1082 = vmatpush1.msra.mxu0 0.0
    %1083 = vmatprep.subr.mxu0 0.0
    %1084 = vmatpush1.msra.mxu0 0.0
    %1085 = vmatprep.subr.mxu0 0.0
    %1086 = vmatpush1.msra.mxu0 0.0
    %1087 = vmatprep.mubr.f32.mxu0 0.0
    %1088 = vmatmul.mubr.f32.gmra.mrb[0].mxu0 %v1018
    %v1089 = vpop.f32.mrb[0].mxu0
    %v1090 = vadd.f32 0.0, %v1089
    %v1091 = vpop.f32.mrb[0].mxu0
    %1092 = vmatprep.mubr.f32.mxu0 0.0
    %1093 = vmatmul.mubr.f32.gmra.mrb[0].mxu0 %v1021
    %v1094 = vpop.f32.mrb[0].mxu0
    %v1095 = vadd.f32 0.0, %v1094
    %v1096 = vpop.f32.mrb[0].mxu0
    %1097 = vdwg.mxu0
    %v1099 = vsel %vm364, %v609, 0
    %v1102 = vsel %vm364, %v682, 0
    %1104 = vmatprep.subr.mxu0 0.0
    %1105 = vmatpush1.msra.mxu0 %v88
    %1106 = vmatprep.subr.mxu0 0.0
    %1107 = vmatpush1.msra.mxu0 0.0
    %1108 = vmatprep.subr.mxu0 0.0
    %1109 = vmatpush1.msra.mxu0 0.0
    %1110 = vmatprep.subr.mxu0 0.0
    %1111 = vmatpush1.msra.mxu0 0.0
    %1112 = vmatprep.subr.mxu0 0.0
    %1113 = vmatpush1.msra.mxu0 0.0
    %1114 = vmatprep.subr.mxu0 0.0
    %1115 = vmatpush1.msra.mxu0 0.0
    %1116 = vmatprep.subr.mxu0 0.0
    %1117 = vmatpush1.msra.mxu0 0.0
    %1118 = vmatprep.subr.mxu0 0.0
    %1119 = vmatpush1.msra.mxu0 0.0
    %1120 = vmatprep.subr.mxu0 0.0
    %1121 = vmatpush1.msra.mxu0 0.0
    %1122 = vmatprep.subr.mxu0 0.0
    %1123 = vmatpush1.msra.mxu0 0.0
    %1124 = vmatprep.subr.mxu0 0.0
    %1125 = vmatpush1.msra.mxu0 0.0
    %1126 = vmatprep.subr.mxu0 0.0
    %1127 = vmatpush1.msra.mxu0 0.0
    %1128 = vmatprep.subr.mxu0 0.0
    %1129 = vmatpush1.msra.mxu0 0.0
    %1130 = vmatprep.subr.mxu0 0.0
    %1131 = vmatpush1.msra.mxu0 0.0
    %1132 = vmatprep.subr.mxu0 0.0
    %1133 = vmatpush1.msra.mxu0 0.0
    %1134 = vmatprep.subr.mxu0 0.0
    %1135 = vmatpush1.msra.mxu0 0.0
    %1136 = vmatprep.subr.mxu0 0.0
    %1137 = vmatpush1.msra.mxu0 0.0
    %1138 = vmatprep.subr.mxu0 0.0
    %1139 = vmatpush1.msra.mxu0 0.0
    %1140 = vmatprep.subr.mxu0 0.0
    %1141 = vmatpush1.msra.mxu0 0.0
    %1142 = vmatprep.subr.mxu0 0.0
    %1143 = vmatpush1.msra.mxu0 0.0
    %1144 = vmatprep.subr.mxu0 0.0
    %1145 = vmatpush1.msra.mxu0 0.0
    %1146 = vmatprep.subr.mxu0 0.0
    %1147 = vmatpush1.msra.mxu0 0.0
    %1148 = vmatprep.subr.mxu0 0.0
    %1149 = vmatpush1.msra.mxu0 0.0
    %1150 = vmatprep.subr.mxu0 0.0
    %1151 = vmatpush1.msra.mxu0 0.0
    %1152 = vmatprep.subr.mxu0 0.0
    %1153 = vmatpush1.msra.mxu0 0.0
    %1154 = vmatprep.subr.mxu0 0.0
    %1155 = vmatpush1.msra.mxu0 0.0
    %1156 = vmatprep.subr.mxu0 0.0
    %1157 = vmatpush1.msra.mxu0 0.0
    %1158 = vmatprep.subr.mxu0 0.0
    %1159 = vmatpush1.msra.mxu0 0.0
    %1160 = vmatprep.subr.mxu0 0.0
    %1161 = vmatpush1.msra.mxu0 0.0
    %1162 = vmatprep.subr.mxu0 0.0
    %1163 = vmatpush1.msra.mxu0 0.0
    %1164 = vmatprep.subr.mxu0 0.0
    %1165 = vmatpush1.msra.mxu0 0.0
    %1166 = vmatprep.subr.mxu0 0.0
    %1167 = vmatpush1.msra.mxu0 0.0
    %1168 = vmatprep.mubr.f32.mxu0 0.0
    %1169 = vmatmul.mubr.f32.gmra.mrb[0].mxu0 %v1099
    %v1170 = vpop.f32.mrb[0].mxu0
    %v1171 = vadd.f32 %v1090, %v1170
    %v1172 = vpop.f32.mrb[0].mxu0
    %1173 = vmatprep.mubr.f32.mxu0 0.0
    %1174 = vmatmul.mubr.f32.gmra.mrb[0].mxu0 %v1102
    %v1175 = vpop.f32.mrb[0].mxu0
    %v1176 = vadd.f32 %v1095, %v1175
    %v1177 = vpop.f32.mrb[0].mxu0
    %1178 = vdwg.mxu0
    %1179 = vrot.lane.b32.xlu0 %v182, 112
    %v1180 = vpop.permute.xlu0 %1179
    %1181 = vrot.lane.b32.xlu0 %v269, 112
    %v1182 = vpop.permute.xlu0 %1181
    %v1183 = vsel %vm364, %v1180, 0
    %v1185 = vsel %vm364, %v1182, 0
    %1187 = vmatprep.subr.mxu0 0.0
    %1188 = vmatpush1.xpose.msra.mxu0 %v1185
    %1189 = vmatprep.subr.mxu0 0.0
    %1190 = vmatpush1.xpose.msra.mxu0 0.0
    %1191 = vmatprep.subr.mxu0 0.0
    %1192 = vmatpush1.xpose.msra.mxu0 0.0
    %1193 = vmatprep.subr.mxu0 0.0
    %1194 = vmatpush1.xpose.msra.mxu0 0.0
    %1195 = vmatprep.subr.mxu0 0.0
    %1196 = vmatpush1.xpose.msra.mxu0 0.0
    %1197 = vmatprep.subr.mxu0 0.0
    %1198 = vmatpush1.xpose.msra.mxu0 0.0
    %1199 = vmatprep.subr.mxu0 0.0
    %1200 = vmatpush1.xpose.msra.mxu0 0.0
    %1201 = vmatprep.subr.mxu0 0.0
    %1202 = vmatpush1.xpose.msra.mxu0 0.0
    %1203 = vmatprep.subr.mxu0 0.0
    %1204 = vmatpush1.xpose.msra.mxu0 0.0
    %1205 = vmatprep.subr.mxu0 0.0
    %1206 = vmatpush1.xpose.msra.mxu0 0.0
    %1207 = vmatprep.subr.mxu0 0.0
    %1208 = vmatpush1.xpose.msra.mxu0 0.0
    %1209 = vmatprep.subr.mxu0 0.0
    %1210 = vmatpush1.xpose.msra.mxu0 0.0
    %1211 = vmatprep.subr.mxu0 0.0
    %1212 = vmatpush1.xpose.msra.mxu0 0.0
    %1213 = vmatprep.subr.mxu0 0.0
    %1214 = vmatpush1.xpose.msra.mxu0 0.0
    %1215 = vmatprep.subr.mxu0 0.0
    %1216 = vmatpush1.xpose.msra.mxu0 0.0
    %1217 = vmatprep.subr.mxu0 0.0
    %1218 = vmatpush1.xpose.msra.mxu0 0.0
    %1219 = vmatprep.subr.mxu0 0.0
    %1220 = vmatpush1.xpose.msra.mxu0 0.0
    %1221 = vmatprep.subr.mxu0 0.0
    %1222 = vmatpush1.xpose.msra.mxu0 0.0
    %1223 = vmatprep.subr.mxu0 0.0
    %1224 = vmatpush1.xpose.msra.mxu0 0.0
    %1225 = vmatprep.subr.mxu0 0.0
    %1226 = vmatpush1.xpose.msra.mxu0 0.0
    %1227 = vmatprep.subr.mxu0 0.0
    %1228 = vmatpush1.xpose.msra.mxu0 0.0
    %1229 = vmatprep.subr.mxu0 0.0
    %1230 = vmatpush1.xpose.msra.mxu0 0.0
    %1231 = vmatprep.subr.mxu0 0.0
    %1232 = vmatpush1.xpose.msra.mxu0 0.0
    %1233 = vmatprep.subr.mxu0 0.0
    %1234 = vmatpush1.xpose.msra.mxu0 0.0
    %1235 = vmatprep.subr.mxu0 0.0
    %1236 = vmatpush1.xpose.msra.mxu0 0.0
    %1237 = vmatprep.subr.mxu0 0.0
    %1238 = vmatpush1.xpose.msra.mxu0 0.0
    %1239 = vmatprep.subr.mxu0 0.0
    %1240 = vmatpush1.xpose.msra.mxu0 0.0
    %1241 = vmatprep.subr.mxu0 0.0
    %1242 = vmatpush1.xpose.msra.mxu0 0.0
    %1243 = vmatprep.subr.mxu0 0.0
    %1244 = vmatpush1.xpose.msra.mxu0 0.0
    %1245 = vmatprep.subr.mxu0 0.0
    %1246 = vmatpush1.xpose.msra.mxu0 0.0
    %1247 = vmatprep.subr.mxu0 0.0
    %1248 = vmatpush1.xpose.msra.mxu0 0.0
    %1249 = vmatprep.subr.mxu0 0.0
    %1250 = vmatpush1.xpose.msra.mxu0 0.0
    %1251 = vmatprep.mubr.f32.mxu0 0.0
    %1252 = vmatmul.mubr.f32.gmra.mrb[0].mxu0 %v1183
    %v1253 = vpop.f32.mrb[0].mxu0
    %v1254 = vadd.f32 0.0, %v1253
    %v1255 = vpop.f32.mrb[0].mxu0
    %1256 = vdwg.mxu0
    %1257 = vrot.lane.b32.xlu0 %v187, 112
    %v1258 = vpop.permute.xlu0 %1257
    %1259 = vrot.lane.b32.xlu0 %v274, 112
    %v1260 = vpop.permute.xlu0 %1259
    %v1261 = vsel %vm364, %v1258, 0
    %v1263 = vsel %vm364, %v1260, 0
    %1265 = vmatprep.subr.mxu0 0.0
    %1266 = vmatpush1.xpose.msra.mxu0 %v1263
    %1267 = vmatprep.subr.mxu0 0.0
    %1268 = vmatpush1.xpose.msra.mxu0 0.0
    %1269 = vmatprep.subr.mxu0 0.0
    %1270 = vmatpush1.xpose.msra.mxu0 0.0
    %1271 = vmatprep.subr.mxu0 0.0
    %1272 = vmatpush1.xpose.msra.mxu0 0.0
    %1273 = vmatprep.subr.mxu0 0.0
    %1274 = vmatpush1.xpose.msra.mxu0 0.0
    %1275 = vmatprep.subr.mxu0 0.0
    %1276 = vmatpush1.xpose.msra.mxu0 0.0
    %1277 = vmatprep.subr.mxu0 0.0
    %1278 = vmatpush1.xpose.msra.mxu0 0.0
    %1279 = vmatprep.subr.mxu0 0.0
    %1280 = vmatpush1.xpose.msra.mxu0 0.0
    %1281 = vmatprep.subr.mxu0 0.0
    %1282 = vmatpush1.xpose.msra.mxu0 0.0
    %1283 = vmatprep.subr.mxu0 0.0
    %1284 = vmatpush1.xpose.msra.mxu0 0.0
    %1285 = vmatprep.subr.mxu0 0.0
    %1286 = vmatpush1.xpose.msra.mxu0 0.0
    %1287 = vmatprep.subr.mxu0 0.0
    %1288 = vmatpush1.xpose.msra.mxu0 0.0
    %1289 = vmatprep.subr.mxu0 0.0
    %1290 = vmatpush1.xpose.msra.mxu0 0.0
    %1291 = vmatprep.subr.mxu0 0.0
    %1292 = vmatpush1.xpose.msra.mxu0 0.0
    %1293 = vmatprep.subr.mxu0 0.0
    %1294 = vmatpush1.xpose.msra.mxu0 0.0
    %1295 = vmatprep.subr.mxu0 0.0
    %1296 = vmatpush1.xpose.msra.mxu0 0.0
    %1297 = vmatprep.subr.mxu0 0.0
    %1298 = vmatpush1.xpose.msra.mxu0 0.0
    %1299 = vmatprep.subr.mxu0 0.0
    %1300 = vmatpush1.xpose.msra.mxu0 0.0
    %1301 = vmatprep.subr.mxu0 0.0
    %1302 = vmatpush1.xpose.msra.mxu0 0.0
    %1303 = vmatprep.subr.mxu0 0.0
    %1304 = vmatpush1.xpose.msra.mxu0 0.0
    %1305 = vmatprep.subr.mxu0 0.0
    %1306 = vmatpush1.xpose.msra.mxu0 0.0
    %1307 = vmatprep.subr.mxu0 0.0
    %1308 = vmatpush1.xpose.msra.mxu0 0.0
    %1309 = vmatprep.subr.mxu0 0.0
    %1310 = vmatpush1.xpose.msra.mxu0 0.0
    %1311 = vmatprep.subr.mxu0 0.0
    %1312 = vmatpush1.xpose.msra.mxu0 0.0
    %1313 = vmatprep.subr.mxu0 0.0
    %1314 = vmatpush1.xpose.msra.mxu0 0.0
    %1315 = vmatprep.subr.mxu0 0.0
    %1316 = vmatpush1.xpose.msra.mxu0 0.0
    %1317 = vmatprep.subr.mxu0 0.0
    %1318 = vmatpush1.xpose.msra.mxu0 0.0
    %1319 = vmatprep.subr.mxu0 0.0
    %1320 = vmatpush1.xpose.msra.mxu0 0.0
    %1321 = vmatprep.subr.mxu0 0.0
    %1322 = vmatpush1.xpose.msra.mxu0 0.0
    %1323 = vmatprep.subr.mxu0 0.0
    %1324 = vmatpush1.xpose.msra.mxu0 0.0
    %1325 = vmatprep.subr.mxu0 0.0
    %1326 = vmatpush1.xpose.msra.mxu0 0.0
    %1327 = vmatprep.subr.mxu0 0.0
    %1328 = vmatpush1.xpose.msra.mxu0 0.0
    %1329 = vmatprep.mubr.f32.mxu0 0.0
    %1330 = vmatmul.mubr.f32.gmra.mrb[0].mxu0 %v1261
    %v1331 = vpop.f32.mrb[0].mxu0
    %v1332 = vadd.f32 0.0, %v1331
    %v1333 = vpop.f32.mrb[0].mxu0
    %1334 = vdwg.mxu0
    %v1335 = vsel %vm364, %v1254, -inf
    %1336 = vmax.xlane.f32.xlu0 %v1335
    %v1337 = vpop.xlane.xlu0 %1336
    %v1338 = vsel %vm364, %v1332, -inf
    %1339 = vmax.xlane.f32.xlu0 %v1338
    %v1340 = vpop.xlane.xlu0 %1339
    %v1341 = vsub.f32 %v1254, %v1337
    %v1342 = vsub.f32 %v1332, %v1340
    %v1343 = vmul.f32 %v1341, 1.442695
    %v1344 = vpow.pop %v1343
    %v1345 = vmul.f32 %v1342, 1.442695
    %v1346 = vpow.pop %v1345
    %v1347 = vsel %vm364, %v1344, 0.0
    %1348 = vadd.xlane.f32.xlu0 %v1347
    %v1349 = vpop.xlane.xlu0 %1348
    %v1350 = vsel %vm364, %v1346, 0.0
    %1351 = vadd.xlane.f32.xlu0 %v1350
    %v1352 = vpop.xlane.xlu0 %1351
    %v1353 = vrcp.pop %v1349
    %v1354 = vrcp.pop %v1352
    %v1355 = vmul.f32 %v1344, %v1353
    %v1356 = vmul.f32 %v1346, %v1354
    %1357 = vrot.lane.b32.xlu0 %v356, 112
    %v1358 = vpop.permute.xlu0 %1357
    %v1361 = vsel %vm364, %v1355, 0
    %1363 = vmatprep.subr.mxu0 0.0
    %1364 = vmatpush1.msra.mxu0 %v1358
    %1365 = vmatprep.subr.mxu0 0.0
    %1366 = vmatpush1.msra.mxu0 0.0
    %1367 = vmatprep.subr.mxu0 0.0
    %1368 = vmatpush1.msra.mxu0 0.0
    %1369 = vmatprep.subr.mxu0 0.0
    %1370 = vmatpush1.msra.mxu0 0.0
    %1371 = vmatprep.subr.mxu0 0.0
    %1372 = vmatpush1.msra.mxu0 0.0
    %1373 = vmatprep.subr.mxu0 0.0
    %1374 = vmatpush1.msra.mxu0 0.0
    %1375 = vmatprep.subr.mxu0 0.0
    %1376 = vmatpush1.msra.mxu0 0.0
    %1377 = vmatprep.subr.mxu0 0.0
    %1378 = vmatpush1.msra.mxu0 0.0
    %1379 = vmatprep.subr.mxu0 0.0
    %1380 = vmatpush1.msra.mxu0 0.0
    %1381 = vmatprep.subr.mxu0 0.0
    %1382 = vmatpush1.msra.mxu0 0.0
    %1383 = vmatprep.subr.mxu0 0.0
    %1384 = vmatpush1.msra.mxu0 0.0
    %1385 = vmatprep.subr.mxu0 0.0
    %1386 = vmatpush1.msra.mxu0 0.0
    %1387 = vmatprep.subr.mxu0 0.0
    %1388 = vmatpush1.msra.mxu0 0.0
    %1389 = vmatprep.subr.mxu0 0.0
    %1390 = vmatpush1.msra.mxu0 0.0
    %1391 = vmatprep.subr.mxu0 0.0
    %1392 = vmatpush1.msra.mxu0 0.0
    %1393 = vmatprep.subr.mxu0 0.0
    %1394 = vmatpush1.msra.mxu0 0.0
    %1395 = vmatprep.subr.mxu0 0.0
    %1396 = vmatpush1.msra.mxu0 0.0
    %1397 = vmatprep.subr.mxu0 0.0
    %1398 = vmatpush1.msra.mxu0 0.0
    %1399 = vmatprep.subr.mxu0 0.0
    %1400 = vmatpush1.msra.mxu0 0.0
    %1401 = vmatprep.subr.mxu0 0.0
    %1402 = vmatpush1.msra.mxu0 0.0
    %1403 = vmatprep.subr.mxu0 0.0
    %1404 = vmatpush1.msra.mxu0 0.0
    %1405 = vmatprep.subr.mxu0 0.0
    %1406 = vmatpush1.msra.mxu0 0.0
    %1407 = vmatprep.subr.mxu0 0.0
    %1408 = vmatpush1.msra.mxu0 0.0
    %1409 = vmatprep.subr.mxu0 0.0
    %1410 = vmatpush1.msra.mxu0 0.0
    %1411 = vmatprep.subr.mxu0 0.0
    %1412 = vmatpush1.msra.mxu0 0.0
    %1413 = vmatprep.subr.mxu0 0.0
    %1414 = vmatpush1.msra.mxu0 0.0
    %1415 = vmatprep.subr.mxu0 0.0
    %1416 = vmatpush1.msra.mxu0 0.0
    %1417 = vmatprep.subr.mxu0 0.0
    %1418 = vmatpush1.msra.mxu0 0.0
    %1419 = vmatprep.subr.mxu0 0.0
    %1420 = vmatpush1.msra.mxu0 0.0
    %1421 = vmatprep.subr.mxu0 0.0
    %1422 = vmatpush1.msra.mxu0 0.0
    %1423 = vmatprep.subr.mxu0 0.0
    %1424 = vmatpush1.msra.mxu0 0.0
    %1425 = vmatprep.subr.mxu0 0.0
    %1426 = vmatpush1.msra.mxu0 0.0
    %1427 = vmatprep.mubr.f32.mxu0 0.0
    %1428 = vmatmul.mubr.f32.gmra.mrb[0].mxu0 %v1361
    %v1429 = vpop.f32.mrb[0].mxu0
    %v1430 = vadd.f32 0.0, %v1429
    %v1431 = vpop.f32.mrb[0].mxu0
    %1432 = vdwg.mxu0
    %1433 = vrot.lane.b32.xlu0 %v361, 112
    %v1434 = vpop.permute.xlu0 %1433
    %v1437 = vsel %vm364, %v1356, 0
    %1439 = vmatprep.subr.mxu0 0.0
    %1440 = vmatpush1.msra.mxu0 %v1434
    %1441 = vmatprep.subr.mxu0 0.0
    %1442 = vmatpush1.msra.mxu0 0.0
    %1443 = vmatprep.subr.mxu0 0.0
    %1444 = vmatpush1.msra.mxu0 0.0
    %1445 = vmatprep.subr.mxu0 0.0
    %1446 = vmatpush1.msra.mxu0 0.0
    %1447 = vmatprep.subr.mxu0 0.0
    %1448 = vmatpush1.msra.mxu0 0.0
    %1449 = vmatprep.subr.mxu0 0.0
    %1450 = vmatpush1.msra.mxu0 0.0
    %1451 = vmatprep.subr.mxu0 0.0
    %1452 = vmatpush1.msra.mxu0 0.0
    %1453 = vmatprep.subr.mxu0 0.0
    %1454 = vmatpush1.msra.mxu0 0.0
    %1455 = vmatprep.subr.mxu0 0.0
    %1456 = vmatpush1.msra.mxu0 0.0
    %1457 = vmatprep.subr.mxu0 0.0
    %1458 = vmatpush1.msra.mxu0 0.0
    %1459 = vmatprep.subr.mxu0 0.0
    %1460 = vmatpush1.msra.mxu0 0.0
    %1461 = vmatprep.subr.mxu0 0.0
    %1462 = vmatpush1.msra.mxu0 0.0
    %1463 = vmatprep.subr.mxu0 0.0
    %1464 = vmatpush1.msra.mxu0 0.0
    %1465 = vmatprep.subr.mxu0 0.0
    %1466 = vmatpush1.msra.mxu0 0.0
    %1467 = vmatprep.subr.mxu0 0.0
    %1468 = vmatpush1.msra.mxu0 0.0
    %1469 = vmatprep.subr.mxu0 0.0
    %1470 = vmatpush1.msra.mxu0 0.0
    %1471 = vmatprep.subr.mxu0 0.0
    %1472 = vmatpush1.msra.mxu0 0.0
    %1473 = vmatprep.subr.mxu0 0.0
    %1474 = vmatpush1.msra.mxu0 0.0
    %1475 = vmatprep.subr.mxu0 0.0
    %1476 = vmatpush1.msra.mxu0 0.0
    %1477 = vmatprep.subr.mxu0 0.0
    %1478 = vmatpush1.msra.mxu0 0.0
    %1479 = vmatprep.subr.mxu0 0.0
    %1480 = vmatpush1.msra.mxu0 0.0
    %1481 = vmatprep.subr.mxu0 0.0
    %1482 = vmatpush1.msra.mxu0 0.0
    %1483 = vmatprep.subr.mxu0 0.0
    %1484 = vmatpush1.msra.mxu0 0.0
    %1485 = vmatprep.subr.mxu0 0.0
    %1486 = vmatpush1.msra.mxu0 0.0
    %1487 = vmatprep.subr.mxu0 0.0
    %1488 = vmatpush1.msra.mxu0 0.0
    %1489 = vmatprep.subr.mxu0 0.0
    %1490 = vmatpush1.msra.mxu0 0.0
    %1491 = vmatprep.subr.mxu0 0.0
    %1492 = vmatpush1.msra.mxu0 0.0
    %1493 = vmatprep.subr.mxu0 0.0
    %1494 = vmatpush1.msra.mxu0 0.0
    %1495 = vmatprep.subr.mxu0 0.0
    %1496 = vmatpush1.msra.mxu0 0.0
    %1497 = vmatprep.subr.mxu0 0.0
    %1498 = vmatpush1.msra.mxu0 0.0
    %1499 = vmatprep.subr.mxu0 0.0
    %1500 = vmatpush1.msra.mxu0 0.0
    %1501 = vmatprep.subr.mxu0 0.0
    %1502 = vmatpush1.msra.mxu0 0.0
    %1503 = vmatprep.mubr.f32.mxu0 0.0
    %1504 = vmatmul.mubr.f32.gmra.mrb[0].mxu0 %v1437
    %v1505 = vpop.f32.mrb[0].mxu0
    %v1506 = vadd.f32 0.0, %v1505
    %v1507 = vpop.f32.mrb[0].mxu0
    %1508 = vdwg.mxu0
    %v1510 = vsel %vm364, %v1430, 0
    %v1513 = vsel %vm364, %v1506, 0
    %1515 = vmatprep.subr.mxu0 0.0
    %1516 = vmatpush1.msra.mxu0 %v90
    %1517 = vmatprep.subr.mxu0 0.0
    %1518 = vmatpush1.msra.mxu0 0.0
    %1519 = vmatprep.subr.mxu0 0.0
    %1520 = vmatpush1.msra.mxu0 0.0
    %1521 = vmatprep.subr.mxu0 0.0
    %1522 = vmatpush1.msra.mxu0 0.0
    %1523 = vmatprep.subr.mxu0 0.0
    %1524 = vmatpush1.msra.mxu0 0.0
    %1525 = vmatprep.subr.mxu0 0.0
    %1526 = vmatpush1.msra.mxu0 0.0
    %1527 = vmatprep.subr.mxu0 0.0
    %1528 = vmatpush1.msra.mxu0 0.0
    %1529 = vmatprep.subr.mxu0 0.0
    %1530 = vmatpush1.msra.mxu0 0.0
    %1531 = vmatprep.subr.mxu0 0.0
    %1532 = vmatpush1.msra.mxu0 0.0
    %1533 = vmatprep.subr.mxu0 0.0
    %1534 = vmatpush1.msra.mxu0 0.0
    %1535 = vmatprep.subr.mxu0 0.0
    %1536 = vmatpush1.msra.mxu0 0.0
    %1537 = vmatprep.subr.mxu0 0.0
    %1538 = vmatpush1.msra.mxu0 0.0
    %1539 = vmatprep.subr.mxu0 0.0
    %1540 = vmatpush1.msra.mxu0 0.0
    %1541 = vmatprep.subr.mxu0 0.0
    %1542 = vmatpush1.msra.mxu0 0.0
    %1543 = vmatprep.subr.mxu0 0.0
    %1544 = vmatpush1.msra.mxu0 0.0
    %1545 = vmatprep.subr.mxu0 0.0
    %1546 = vmatpush1.msra.mxu0 0.0
    %1547 = vmatprep.subr.mxu0 0.0
    %1548 = vmatpush1.msra.mxu0 0.0
    %1549 = vmatprep.subr.mxu0 0.0
    %1550 = vmatpush1.msra.mxu0 0.0
    %1551 = vmatprep.subr.mxu0 0.0
    %1552 = vmatpush1.msra.mxu0 0.0
    %1553 = vmatprep.subr.mxu0 0.0
    %1554 = vmatpush1.msra.mxu0 0.0
    %1555 = vmatprep.subr.mxu0 0.0
    %1556 = vmatpush1.msra.mxu0 0.0
    %1557 = vmatprep.subr.mxu0 0.0
    %1558 = vmatpush1.msra.mxu0 0.0
    %1559 = vmatprep.subr.mxu0 0.0
    %1560 = vmatpush1.msra.mxu0 0.0
    %1561 = vmatprep.subr.mxu0 0.0
    %1562 = vmatpush1.msra.mxu0 0.0
    %1563 = vmatprep.subr.mxu0 0.0
    %1564 = vmatpush1.msra.mxu0 0.0
    %1565 = vmatprep.subr.mxu0 0.0
    %1566 = vmatpush1.msra.mxu0 0.0
    %1567 = vmatprep.subr.mxu0 0.0
    %1568 = vmatpush1.msra.mxu0 0.0
    %1569 = vmatprep.subr.mxu0 0.0
    %1570 = vmatpush1.msra.mxu0 0.0
    %1571 = vmatprep.subr.mxu0 0.0
    %1572 = vmatpush1.msra.mxu0 0.0
    %1573 = vmatprep.subr.mxu0 0.0
    %1574 = vmatpush1.msra.mxu0 0.0
    %1575 = vmatprep.subr.mxu0 0.0
    %1576 = vmatpush1.msra.mxu0 0.0
    %1577 = vmatprep.subr.mxu0 0.0
    %1578 = vmatpush1.msra.mxu0 0.0
    %1579 = vmatprep.mubr.f32.mxu0 0.0
    %1580 = vmatmul.mubr.f32.gmra.mrb[0].mxu0 %v1510
    %v1581 = vpop.f32.mrb[0].mxu0
    %v1582 = vadd.f32 0.0, %v1581
    %v1583 = vpop.f32.mrb[0].mxu0
    %1584 = vmatprep.mubr.f32.mxu0 0.0
    %1585 = vmatmul.mubr.f32.gmra.mrb[0].mxu0 %v1513
    %v1586 = vpop.f32.mrb[0].mxu0
    %v1587 = vadd.f32 0.0, %v1586
    %v1588 = vpop.f32.mrb[0].mxu0
    %1589 = vdwg.mxu0
    %v1590 = vadd.f32 %v1171, %v1582
    %v1591 = vadd.f32 %v1176, %v1587
    %1592 = vrot.lane.b32.xlu0 %v182, 104
    %v1593 = vpop.permute.xlu0 %1592
    %1594 = vrot.lane.b32.xlu0 %v269, 104
    %v1595 = vpop.permute.xlu0 %1594
    %v1596 = vsel %vm364, %v1593, 0
    %v1598 = vsel %vm364, %v1595, 0
    %1600 = vmatprep.subr.mxu0 0.0
    %1601 = vmatpush1.xpose.msra.mxu0 %v1598
    %1602 = vmatprep.subr.mxu0 0.0
    %1603 = vmatpush1.xpose.msra.mxu0 0.0
    %1604 = vmatprep.subr.mxu0 0.0
    %1605 = vmatpush1.xpose.msra.mxu0 0.0
    %1606 = vmatprep.subr.mxu0 0.0
    %1607 = vmatpush1.xpose.msra.mxu0 0.0
    %1608 = vmatprep.subr.mxu0 0.0
    %1609 = vmatpush1.xpose.msra.mxu0 0.0
    %1610 = vmatprep.subr.mxu0 0.0
    %1611 = vmatpush1.xpose.msra.mxu0 0.0
    %1612 = vmatprep.subr.mxu0 0.0
    %1613 = vmatpush1.xpose.msra.mxu0 0.0
    %1614 = vmatprep.subr.mxu0 0.0
    %1615 = vmatpush1.xpose.msra.mxu0 0.0
    %1616 = vmatprep.subr.mxu0 0.0
    %1617 = vmatpush1.xpose.msra.mxu0 0.0
    %1618 = vmatprep.subr.mxu0 0.0
    %1619 = vmatpush1.xpose.msra.mxu0 0.0
    %1620 = vmatprep.subr.mxu0 0.0
    %1621 = vmatpush1.xpose.msra.mxu0 0.0
    %1622 = vmatprep.subr.mxu0 0.0
    %1623 = vmatpush1.xpose.msra.mxu0 0.0
    %1624 = vmatprep.subr.mxu0 0.0
    %1625 = vmatpush1.xpose.msra.mxu0 0.0
    %1626 = vmatprep.subr.mxu0 0.0
    %1627 = vmatpush1.xpose.msra.mxu0 0.0
    %1628 = vmatprep.subr.mxu0 0.0
    %1629 = vmatpush1.xpose.msra.mxu0 0.0
    %1630 = vmatprep.subr.mxu0 0.0
    %1631 = vmatpush1.xpose.msra.mxu0 0.0
    %1632 = vmatprep.subr.mxu0 0.0
    %1633 = vmatpush1.xpose.msra.mxu0 0.0
    %1634 = vmatprep.subr.mxu0 0.0
    %1635 = vmatpush1.xpose.msra.mxu0 0.0
    %1636 = vmatprep.subr.mxu0 0.0
    %1637 = vmatpush1.xpose.msra.mxu0 0.0
    %1638 = vmatprep.subr.mxu0 0.0
    %1639 = vmatpush1.xpose.msra.mxu0 0.0
    %1640 = vmatprep.subr.mxu0 0.0
    %1641 = vmatpush1.xpose.msra.mxu0 0.0
    %1642 = vmatprep.subr.mxu0 0.0
    %1643 = vmatpush1.xpose.msra.mxu0 0.0
    %1644 = vmatprep.subr.mxu0 0.0
    %1645 = vmatpush1.xpose.msra.mxu0 0.0
    %1646 = vmatprep.subr.mxu0 0.0
    %1647 = vmatpush1.xpose.msra.mxu0 0.0
    %1648 = vmatprep.subr.mxu0 0.0
    %1649 = vmatpush1.xpose.msra.mxu0 0.0
    %1650 = vmatprep.subr.mxu0 0.0
    %1651 = vmatpush1.xpose.msra.mxu0 0.0
    %1652 = vmatprep.subr.mxu0 0.0
    %1653 = vmatpush1.xpose.msra.mxu0 0.0
    %1654 = vmatprep.subr.mxu0 0.0
    %1655 = vmatpush1.xpose.msra.mxu0 0.0
    %1656 = vmatprep.subr.mxu0 0.0
    %1657 = vmatpush1.xpose.msra.mxu0 0.0
    %1658 = vmatprep.subr.mxu0 0.0
    %1659 = vmatpush1.xpose.msra.mxu0 0.0
    %1660 = vmatprep.subr.mxu0 0.0
    %1661 = vmatpush1.xpose.msra.mxu0 0.0
    %1662 = vmatprep.subr.mxu0 0.0
    %1663 = vmatpush1.xpose.msra.mxu0 0.0
    %1664 = vmatprep.mubr.f32.mxu0 0.0
    %1665 = vmatmul.mubr.f32.gmra.mrb[0].mxu0 %v1596
    %v1666 = vpop.f32.mrb[0].mxu0
    %v1667 = vadd.f32 0.0, %v1666
    %v1668 = vpop.f32.mrb[0].mxu0
    %1669 = vdwg.mxu0
    %1670 = vrot.lane.b32.xlu0 %v187, 104
    %v1671 = vpop.permute.xlu0 %1670
    %1672 = vrot.lane.b32.xlu0 %v274, 104
    %v1673 = vpop.permute.xlu0 %1672
    %v1674 = vsel %vm364, %v1671, 0
    %v1676 = vsel %vm364, %v1673, 0
    %1678 = vmatprep.subr.mxu0 0.0
    %1679 = vmatpush1.xpose.msra.mxu0 %v1676
    %1680 = vmatprep.subr.mxu0 0.0
    %1681 = vmatpush1.xpose.msra.mxu0 0.0
    %1682 = vmatprep.subr.mxu0 0.0
    %1683 = vmatpush1.xpose.msra.mxu0 0.0
    %1684 = vmatprep.subr.mxu0 0.0
    %1685 = vmatpush1.xpose.msra.mxu0 0.0
    %1686 = vmatprep.subr.mxu0 0.0
    %1687 = vmatpush1.xpose.msra.mxu0 0.0
    %1688 = vmatprep.subr.mxu0 0.0
    %1689 = vmatpush1.xpose.msra.mxu0 0.0
    %1690 = vmatprep.subr.mxu0 0.0
    %1691 = vmatpush1.xpose.msra.mxu0 0.0
    %1692 = vmatprep.subr.mxu0 0.0
    %1693 = vmatpush1.xpose.msra.mxu0 0.0
    %1694 = vmatprep.subr.mxu0 0.0
    %1695 = vmatpush1.xpose.msra.mxu0 0.0
    %1696 = vmatprep.subr.mxu0 0.0
    %1697 = vmatpush1.xpose.msra.mxu0 0.0
    %1698 = vmatprep.subr.mxu0 0.0
    %1699 = vmatpush1.xpose.msra.mxu0 0.0
    %1700 = vmatprep.subr.mxu0 0.0
    %1701 = vmatpush1.xpose.msra.mxu0 0.0
    %1702 = vmatprep.subr.mxu0 0.0
    %1703 = vmatpush1.xpose.msra.mxu0 0.0
    %1704 = vmatprep.subr.mxu0 0.0
    %1705 = vmatpush1.xpose.msra.mxu0 0.0
    %1706 = vmatprep.subr.mxu0 0.0
    %1707 = vmatpush1.xpose.msra.mxu0 0.0
    %1708 = vmatprep.subr.mxu0 0.0
    %1709 = vmatpush1.xpose.msra.mxu0 0.0
    %1710 = vmatprep.subr.mxu0 0.0
    %1711 = vmatpush1.xpose.msra.mxu0 0.0
    %1712 = vmatprep.subr.mxu0 0.0
    %1713 = vmatpush1.xpose.msra.mxu0 0.0
    %1714 = vmatprep.subr.mxu0 0.0
    %1715 = vmatpush1.xpose.msra.mxu0 0.0
    %1716 = vmatprep.subr.mxu0 0.0
    %1717 = vmatpush1.xpose.msra.mxu0 0.0
    %1718 = vmatprep.subr.mxu0 0.0
    %1719 = vmatpush1.xpose.msra.mxu0 0.0
    %1720 = vmatprep.subr.mxu0 0.0
    %1721 = vmatpush1.xpose.msra.mxu0 0.0
    %1722 = vmatprep.subr.mxu0 0.0
    %1723 = vmatpush1.xpose.msra.mxu0 0.0
    %1724 = vmatprep.subr.mxu0 0.0
    %1725 = vmatpush1.xpose.msra.mxu0 0.0
    %1726 = vmatprep.subr.mxu0 0.0
    %1727 = vmatpush1.xpose.msra.mxu0 0.0
    %1728 = vmatprep.subr.mxu0 0.0
    %1729 = vmatpush1.xpose.msra.mxu0 0.0
    %1730 = vmatprep.subr.mxu0 0.0
    %1731 = vmatpush1.xpose.msra.mxu0 0.0
    %1732 = vmatprep.subr.mxu0 0.0
    %1733 = vmatpush1.xpose.msra.mxu0 0.0
    %1734 = vmatprep.subr.mxu0 0.0
    %1735 = vmatpush1.xpose.msra.mxu0 0.0
    %1736 = vmatprep.subr.mxu0 0.0
    %1737 = vmatpush1.xpose.msra.mxu0 0.0
    %1738 = vmatprep.subr.mxu0 0.0
    %1739 = vmatpush1.xpose.msra.mxu0 0.0
    %1740 = vmatprep.subr.mxu0 0.0
    %1741 = vmatpush1.xpose.msra.mxu0 0.0
    %1742 = vmatprep.mubr.f32.mxu0 0.0
    %1743 = vmatmul.mubr.f32.gmra.mrb[0].mxu0 %v1674
    %v1744 = vpop.f32.mrb[0].mxu0
    %v1745 = vadd.f32 0.0, %v1744
    %v1746 = vpop.f32.mrb[0].mxu0
    %1747 = vdwg.mxu0
    %v1748 = vsel %vm364, %v1667, -inf
    %1749 = vmax.xlane.f32.xlu0 %v1748
    %v1750 = vpop.xlane.xlu0 %1749
    %v1751 = vsel %vm364, %v1745, -inf
    %1752 = vmax.xlane.f32.xlu0 %v1751
    %v1753 = vpop.xlane.xlu0 %1752
    %v1754 = vsub.f32 %v1667, %v1750
    %v1755 = vsub.f32 %v1745, %v1753
    %v1756 = vmul.f32 %v1754, 1.442695
    %v1757 = vpow.pop %v1756
    %v1758 = vmul.f32 %v1755, 1.442695
    %v1759 = vpow.pop %v1758
    %v1760 = vsel %vm364, %v1757, 0.0
    %1761 = vadd.xlane.f32.xlu0 %v1760
    %v1762 = vpop.xlane.xlu0 %1761
    %v1763 = vsel %vm364, %v1759, 0.0
    %1764 = vadd.xlane.f32.xlu0 %v1763
    %v1765 = vpop.xlane.xlu0 %1764
    %v1766 = vrcp.pop %v1762
    %v1767 = vrcp.pop %v1765
    %v1768 = vmul.f32 %v1757, %v1766
    %v1769 = vmul.f32 %v1759, %v1767
    %1770 = vrot.lane.b32.xlu0 %v356, 104
    %v1771 = vpop.permute.xlu0 %1770
    %v1774 = vsel %vm364, %v1768, 0
    %1776 = vmatprep.subr.mxu0 0.0
    %1777 = vmatpush1.msra.mxu0 %v1771
    %1778 = vmatprep.subr.mxu0 0.0
    %1779 = vmatpush1.msra.mxu0 0.0
    %1780 = vmatprep.subr.mxu0 0.0
    %1781 = vmatpush1.msra.mxu0 0.0
    %1782 = vmatprep.subr.mxu0 0.0
    %1783 = vmatpush1.msra.mxu0 0.0
    %1784 = vmatprep.subr.mxu0 0.0
    %1785 = vmatpush1.msra.mxu0 0.0
    %1786 = vmatprep.subr.mxu0 0.0
    %1787 = vmatpush1.msra.mxu0 0.0
    %1788 = vmatprep.subr.mxu0 0.0
    %1789 = vmatpush1.msra.mxu0 0.0
    %1790 = vmatprep.subr.mxu0 0.0
    %1791 = vmatpush1.msra.mxu0 0.0
    %1792 = vmatprep.subr.mxu0 0.0
    %1793 = vmatpush1.msra.mxu0 0.0
    %1794 = vmatprep.subr.mxu0 0.0
    %1795 = vmatpush1.msra.mxu0 0.0
    %1796 = vmatprep.subr.mxu0 0.0
    %1797 = vmatpush1.msra.mxu0 0.0
    %1798 = vmatprep.subr.mxu0 0.0
    %1799 = vmatpush1.msra.mxu0 0.0
    %1800 = vmatprep.subr.mxu0 0.0
    %1801 = vmatpush1.msra.mxu0 0.0
    %1802 = vmatprep.subr.mxu0 0.0
    %1803 = vmatpush1.msra.mxu0 0.0
    %1804 = vmatprep.subr.mxu0 0.0
    %1805 = vmatpush1.msra.mxu0 0.0
    %1806 = vmatprep.subr.mxu0 0.0
    %1807 = vmatpush1.msra.mxu0 0.0
    %1808 = vmatprep.subr.mxu0 0.0
    %1809 = vmatpush1.msra.mxu0 0.0
    %1810 = vmatprep.subr.mxu0 0.0
    %1811 = vmatpush1.msra.mxu0 0.0
    %1812 = vmatprep.subr.mxu0 0.0
    %1813 = vmatpush1.msra.mxu0 0.0
    %1814 = vmatprep.subr.mxu0 0.0
    %1815 = vmatpush1.msra.mxu0 0.0
    %1816 = vmatprep.subr.mxu0 0.0
    %1817 = vmatpush1.msra.mxu0 0.0
    %1818 = vmatprep.subr.mxu0 0.0
    %1819 = vmatpush1.msra.mxu0 0.0
    %1820 = vmatprep.subr.mxu0 0.0
    %1821 = vmatpush1.msra.mxu0 0.0
    %1822 = vmatprep.subr.mxu0 0.0
    %1823 = vmatpush1.msra.mxu0 0.0
    %1824 = vmatprep.subr.mxu0 0.0
    %1825 = vmatpush1.msra.mxu0 0.0
    %1826 = vmatprep.subr.mxu0 0.0
    %1827 = vmatpush1.msra.mxu0 0.0
    %1828 = vmatprep.subr.mxu0 0.0
    %1829 = vmatpush1.msra.mxu0 0.0
    %1830 = vmatprep.subr.mxu0 0.0
    %1831 = vmatpush1.msra.mxu0 0.0
    %1832 = vmatprep.subr.mxu0 0.0
    %1833 = vmatpush1.msra.mxu0 0.0
    %1834 = vmatprep.subr.mxu0 0.0
    %1835 = vmatpush1.msra.mxu0 0.0
    %1836 = vmatprep.subr.mxu0 0.0
    %1837 = vmatpush1.msra.mxu0 0.0
    %1838 = vmatprep.subr.mxu0 0.0
    %1839 = vmatpush1.msra.mxu0 0.0
    %1840 = vmatprep.mubr.f32.mxu0 0.0
    %1841 = vmatmul.mubr.f32.gmra.mrb[0].mxu0 %v1774
    %v1842 = vpop.f32.mrb[0].mxu0
    %v1843 = vadd.f32 0.0, %v1842
    %v1844 = vpop.f32.mrb[0].mxu0
    %1845 = vdwg.mxu0
    %1846 = vrot.lane.b32.xlu0 %v361, 104
    %v1847 = vpop.permute.xlu0 %1846
    %v1850 = vsel %vm364, %v1769, 0
    %1852 = vmatprep.subr.mxu0 0.0
    %1853 = vmatpush1.msra.mxu0 %v1847
    %1854 = vmatprep.subr.mxu0 0.0
    %1855 = vmatpush1.msra.mxu0 0.0
    %1856 = vmatprep.subr.mxu0 0.0
    %1857 = vmatpush1.msra.mxu0 0.0
    %1858 = vmatprep.subr.mxu0 0.0
    %1859 = vmatpush1.msra.mxu0 0.0
    %1860 = vmatprep.subr.mxu0 0.0
    %1861 = vmatpush1.msra.mxu0 0.0
    %1862 = vmatprep.subr.mxu0 0.0
    %1863 = vmatpush1.msra.mxu0 0.0
    %1864 = vmatprep.subr.mxu0 0.0
    %1865 = vmatpush1.msra.mxu0 0.0
    %1866 = vmatprep.subr.mxu0 0.0
    %1867 = vmatpush1.msra.mxu0 0.0
    %1868 = vmatprep.subr.mxu0 0.0
    %1869 = vmatpush1.msra.mxu0 0.0
    %1870 = vmatprep.subr.mxu0 0.0
    %1871 = vmatpush1.msra.mxu0 0.0
    %1872 = vmatprep.subr.mxu0 0.0
    %1873 = vmatpush1.msra.mxu0 0.0
    %1874 = vmatprep.subr.mxu0 0.0
    %1875 = vmatpush1.msra.mxu0 0.0
    %1876 = vmatprep.subr.mxu0 0.0
    %1877 = vmatpush1.msra.mxu0 0.0
    %1878 = vmatprep.subr.mxu0 0.0
    %1879 = vmatpush1.msra.mxu0 0.0
    %1880 = vmatprep.subr.mxu0 0.0
    %1881 = vmatpush1.msra.mxu0 0.0
    %1882 = vmatprep.subr.mxu0 0.0
    %1883 = vmatpush1.msra.mxu0 0.0
    %1884 = vmatprep.subr.mxu0 0.0
    %1885 = vmatpush1.msra.mxu0 0.0
    %1886 = vmatprep.subr.mxu0 0.0
    %1887 = vmatpush1.msra.mxu0 0.0
    %1888 = vmatprep.subr.mxu0 0.0
    %1889 = vmatpush1.msra.mxu0 0.0
    %1890 = vmatprep.subr.mxu0 0.0
    %1891 = vmatpush1.msra.mxu0 0.0
    %1892 = vmatprep.subr.mxu0 0.0
    %1893 = vmatpush1.msra.mxu0 0.0
    %1894 = vmatprep.subr.mxu0 0.0
    %1895 = vmatpush1.msra.mxu0 0.0
    %1896 = vmatprep.subr.mxu0 0.0
    %1897 = vmatpush1.msra.mxu0 0.0
    %1898 = vmatprep.subr.mxu0 0.0
    %1899 = vmatpush1.msra.mxu0 0.0
    %1900 = vmatprep.subr.mxu0 0.0
    %1901 = vmatpush1.msra.mxu0 0.0
    %1902 = vmatprep.subr.mxu0 0.0
    %1903 = vmatpush1.msra.mxu0 0.0
    %1904 = vmatprep.subr.mxu0 0.0
    %1905 = vmatpush1.msra.mxu0 0.0
    %1906 = vmatprep.subr.mxu0 0.0
    %1907 = vmatpush1.msra.mxu0 0.0
    %1908 = vmatprep.subr.mxu0 0.0
    %1909 = vmatpush1.msra.mxu0 0.0
    %1910 = vmatprep.subr.mxu0 0.0
    %1911 = vmatpush1.msra.mxu0 0.0
    %1912 = vmatprep.subr.mxu0 0.0
    %1913 = vmatpush1.msra.mxu0 0.0
    %1914 = vmatprep.subr.mxu0 0.0
    %1915 = vmatpush1.msra.mxu0 0.0
    %1916 = vmatprep.mubr.f32.mxu0 0.0
    %1917 = vmatmul.mubr.f32.gmra.mrb[0].mxu0 %v1850
    %v1918 = vpop.f32.mrb[0].mxu0
    %v1919 = vadd.f32 0.0, %v1918
    %v1920 = vpop.f32.mrb[0].mxu0
    %1921 = vdwg.mxu0
    %v1923 = vsel %vm364, %v1843, 0
    %v1926 = vsel %vm364, %v1919, 0
    %1928 = vmatprep.subr.mxu0 0.0
    %1929 = vmatpush1.msra.mxu0 %v91
    %1930 = vmatprep.subr.mxu0 0.0
    %1931 = vmatpush1.msra.mxu0 0.0
    %1932 = vmatprep.subr.mxu0 0.0
    %1933 = vmatpush1.msra.mxu0 0.0
    %1934 = vmatprep.subr.mxu0 0.0
    %1935 = vmatpush1.msra.mxu0 0.0
    %1936 = vmatprep.subr.mxu0 0.0
    %1937 = vmatpush1.msra.mxu0 0.0
    %1938 = vmatprep.subr.mxu0 0.0
    %1939 = vmatpush1.msra.mxu0 0.0
    %1940 = vmatprep.subr.mxu0 0.0
    %1941 = vmatpush1.msra.mxu0 0.0
    %1942 = vmatprep.subr.mxu0 0.0
    %1943 = vmatpush1.msra.mxu0 0.0
    %1944 = vmatprep.subr.mxu0 0.0
    %1945 = vmatpush1.msra.mxu0 0.0
    %1946 = vmatprep.subr.mxu0 0.0
    %1947 = vmatpush1.msra.mxu0 0.0
    %1948 = vmatprep.subr.mxu0 0.0
    %1949 = vmatpush1.msra.mxu0 0.0
    %1950 = vmatprep.subr.mxu0 0.0
    %1951 = vmatpush1.msra.mxu0 0.0
    %1952 = vmatprep.subr.mxu0 0.0
    %1953 = vmatpush1.msra.mxu0 0.0
    %1954 = vmatprep.subr.mxu0 0.0
    %1955 = vmatpush1.msra.mxu0 0.0
    %1956 = vmatprep.subr.mxu0 0.0
    %1957 = vmatpush1.msra.mxu0 0.0
    %1958 = vmatprep.subr.mxu0 0.0
    %1959 = vmatpush1.msra.mxu0 0.0
    %1960 = vmatprep.subr.mxu0 0.0
    %1961 = vmatpush1.msra.mxu0 0.0
    %1962 = vmatprep.subr.mxu0 0.0
    %1963 = vmatpush1.msra.mxu0 0.0
    %1964 = vmatprep.subr.mxu0 0.0
    %1965 = vmatpush1.msra.mxu0 0.0
    %1966 = vmatprep.subr.mxu0 0.0
    %1967 = vmatpush1.msra.mxu0 0.0
    %1968 = vmatprep.subr.mxu0 0.0
    %1969 = vmatpush1.msra.mxu0 0.0
    %1970 = vmatprep.subr.mxu0 0.0
    %1971 = vmatpush1.msra.mxu0 0.0
    %1972 = vmatprep.subr.mxu0 0.0
    %1973 = vmatpush1.msra.mxu0 0.0
    %1974 = vmatprep.subr.mxu0 0.0
    %1975 = vmatpush1.msra.mxu0 0.0
    %1976 = vmatprep.subr.mxu0 0.0
    %1977 = vmatpush1.msra.mxu0 0.0
    %1978 = vmatprep.subr.mxu0 0.0
    %1979 = vmatpush1.msra.mxu0 0.0
    %1980 = vmatprep.subr.mxu0 0.0
    %1981 = vmatpush1.msra.mxu0 0.0
    %1982 = vmatprep.subr.mxu0 0.0
    %1983 = vmatpush1.msra.mxu0 0.0
    %1984 = vmatprep.subr.mxu0 0.0
    %1985 = vmatpush1.msra.mxu0 0.0
    %1986 = vmatprep.subr.mxu0 0.0
    %1987 = vmatpush1.msra.mxu0 0.0
    %1988 = vmatprep.subr.mxu0 0.0
    %1989 = vmatpush1.msra.mxu0 0.0
    %1990 = vmatprep.subr.mxu0 0.0
    %1991 = vmatpush1.msra.mxu0 0.0
    %1992 = vmatprep.mubr.f32.mxu0 0.0
    %1993 = vmatmul.mubr.f32.gmra.mrb[0].mxu0 %v1923
    %v1994 = vpop.f32.mrb[0].mxu0
    %v1995 = vadd.f32 0.0, %v1994
    %v1996 = vpop.f32.mrb[0].mxu0
    %1997 = vmatprep.mubr.f32.mxu0 0.0
    %1998 = vmatmul.mubr.f32.gmra.mrb[0].mxu0 %v1926
    %v1999 = vpop.f32.mrb[0].mxu0
    %v2000 = vadd.f32 0.0, %v1999
    %v2001 = vpop.f32.mrb[0].mxu0
    %2002 = vdwg.mxu0
    %v2003 = vadd.f32 %v1590, %v1995
    %v2004 = vadd.f32 %v1591, %v2000
    %v2006 = vlaneseq
    %v2007 = vshrl.u32 %v2006, 7
    %v2008 = vsub.s32 0, %v2007
    %v2009 = vrot.slane %v95, %v2008
    %v2011 = vadd.f32 %v2003, %v2009
    %v2012 = vadd.f32 %v2004, %v2009
    %2013 = vst.msk [vmem:[#allocation10] sm:$0xff] %vm108, %v2011
    %2014 = vst.msk [vmem:[#allocation10 + $0x8] sm:$0xff] %vm108, %v2012
    // Predicated region
    $region38: #{tpu_custom_call.1} parent=1 // pred_check
      _
    $region39: #{tpu_custom_call.1} parent=1 // pred_check_branch
      %2016 = sbr.rel (0) target = $region41
    $region40: #{tpu_custom_call.1} parent=1 // pred_region
      %s2018 = ssub.s32 256, 256
      %2019 = vsyncadd [#allocation4], %s2018
      %s2020 = sshll.u32 [#allocation10], 4
      %s2021 = int_to_ptr.vmem [resolvable:$true] %s2020
      %2026 = dma.vmem_to_hbm [thread:$0]  %s2021, 256, %s5, [#allocation4], 128, 128, 8
    $region41: #{tpu_custom_call.1} parent=1 // pred_fallthru
      _
    // Predicated region
    $region42: #{tpu_custom_call.1} parent=1 // pred_check
      _
    $region43: #{tpu_custom_call.1} parent=1 // pred_check_branch
      %2028 = sbr.rel (0) target = $region45
    $region44: #{tpu_custom_call.1} parent=1 // pred_region
      %2029 = dma.done [#allocation4], 256
    $region45: #{tpu_custom_call.1} parent=1 // pred_fallthru
      _
    %2030 = vsyncpa [#allocation3], 1
    %2031 = vsyncpa [#allocation6], 1
    %2032 = vsyncpa [#allocation9], 1
    %2033 = vsyncpa [#allocation4], 1

// kernel: tpu_custom_call.1
$region0: #{tpu_custom_call.1}
  #allocation0 [shape = 'u32[]', space=smem, size = 0x4, offset = 0x4, fixed_abs, tag = 'smem constant byte address 0x4 - core index']
  #allocation1 [shape = 'u32[144,128]{1,0:T(1,128)}', space=vmem, size = 0x12000, scoped, tag = 'internal scratch']
  %s0 = inlined_call_operand.hbm [shape: f32[2,8,32], index: 0, kind: input, shape index: {}]
  %s1 = inlined_call_operand.hbm [shape: f32[2,8,32], index: 1, kind: input, shape index: {}]
  %s2 = inlined_call_operand.hbm [shape: f32[2,8,32], index: 2, kind: input, shape index: {}]
  %s3 = inlined_call_operand.hbm [shape: f32[4,32,32], index: 3, kind: input, shape index: {}]
  %s4 = inlined_call_operand.vmem [shape: f32[4,1,32], index: 4, kind: input, shape index: {}]
  %s5 = inlined_call_operand.hbm [shape: f32[2,8,32], index: 5, kind: output, shape index: {}]
  %s6 = sld [smem:[#allocation0]]
  $region46: #{tpu_custom_call.1} parent=0
    _
  %s8 = ssub.s32 1, %s6
  %s9 = scalar_select 0, %s8, %s6
  $region1: #{tpu_custom_call.1} parent=0
    #allocation2 [shape = 'u8[8192]{0}', space=vmem, size = 0x2000, scoped, tag = 'input window, operand 0, single buffered']
    #allocation3 [shape = 's32[1]{0}', space=sflag, size = 0x4, scoped, tag = 'scoped memory for tpu_custom_call.1']
    #allocation4 [shape = 's32[1]{0}', space=sflag, size = 0x4, scoped, tag = 'scoped memory for tpu_custom_call.1']
    #allocation5 [shape = 'u8[8192]{0}', space=vmem, size = 0x2000, scoped, tag = 'input window, operand 1, single buffered']
    #allocation6 [shape = 's32[1]{0}', space=sflag, size = 0x4, scoped, tag = 'scoped memory for tpu_custom_call.1']
    #allocation7 [shape = 'u8[8192]{0}', space=vmem, size = 0x2000, scoped, tag = 'input window, operand 2, single buffered']
    #allocation8 [shape = 'u8[65536]{0}', space=vmem, size = 0x10000, scoped, tag = 'input window, operand 3, single buffered']
    #allocation9 [shape = 's32[1]{0}', space=sflag, size = 0x4, scoped, tag = 'scoped memory for tpu_custom_call.1']
    #allocation10 [shape = 'u8[8192]{0}', space=vmem, size = 0x2000, scoped, tag = 'output window, operand 0, single buffered']
    %10 = vsyncpa [#allocation3], 0
    %11 = vsyncpa [#allocation6], 0
    %12 = vsyncpa [#allocation9], 0
    %13 = vsyncpa [#allocation4], 0
    // Predicated region
    $region2: #{tpu_custom_call.1} parent=1 // pred_check
      _
    $region3: #{tpu_custom_call.1} parent=1 // pred_check_branch
      %15 = sbr.rel (0) target = $region5
    $region4: #{tpu_custom_call.1} parent=1 // pred_region
      %s17 = ssub.s32 256, 256
      %18 = vsyncadd [#allocation3], %s17
      %s19 = sshll.u32 [#allocation2], 4
      %s20 = int_to_ptr.vmem [resolvable:$true] %s19
      %25 = dma.hbm_to_vmem [thread:$0]  %s0, 256, %s20, [#allocation3], 128, 128, 8
    $region5: #{tpu_custom_call.1} parent=1 // pred_fallthru
      _
    // Predicated region
    $region6: #{tpu_custom_call.1} parent=1 // pred_check
      _
    $region7: #{tpu_custom_call.1} parent=1 // pred_check_branch
      %27 = sbr.rel (0) target = $region9
    $region8: #{tpu_custom_call.1} parent=1 // pred_region
      %s29 = ssub.s32 256, 256
      %30 = vsyncadd [#allocation6], %s29
      %s31 = sshll.u32 [#allocation5], 4
      %s32 = int_to_ptr.vmem [resolvable:$true] %s31
      %37 = dma.hbm_to_vmem [thread:$0]  %s1, 256, %s32, [#allocation6], 128, 128, 8
    $region9: #{tpu_custom_call.1} parent=1 // pred_fallthru
      _
    // Predicated region
    $region10: #{tpu_custom_call.1} parent=1 // pred_check
      _
    $region11: #{tpu_custom_call.1} parent=1 // pred_check_branch
      %39 = sbr.rel (0) target = $region13
    $region12: #{tpu_custom_call.1} parent=1 // pred_region
      %s41 = ssub.s32 256, 256
      %42 = vsyncadd [#allocation6], %s41
      %s43 = sshll.u32 [#allocation7], 4
      %s44 = int_to_ptr.vmem [resolvable:$true] %s43
      %49 = dma.hbm_to_vmem [thread:$0]  %s2, 256, %s44, [#allocation6], 128, 128, 8
    $region13: #{tpu_custom_call.1} parent=1 // pred_fallthru
      _
    // Predicated region
    $region14: #{tpu_custom_call.1} parent=1 // pred_check
      _
    $region15: #{tpu_custom_call.1} parent=1 // pred_check_branch
      %51 = sbr.rel (0) target = $region17
    $region16: #{tpu_custom_call.1} parent=1 // pred_region
      %s53 = ssub.s32 2048, 2048
      %54 = vsyncadd [#allocation9], %s53
      %s55 = sshll.u32 [#allocation8], 4
      %s56 = int_to_ptr.vmem [resolvable:$true] %s55
      %61 = dma.hbm_to_vmem [thread:$0]  %s3, 2048, %s56, [#allocation9], 128, 128, 8
    $region17: #{tpu_custom_call.1} parent=1 // pred_fallthru
      _
    // Predicated region
    $region18: #{tpu_custom_call.1} parent=1 // pred_check
      _
    $region19: #{tpu_custom_call.1} parent=1 // pred_check_branch
      %63 = sbr.rel (0) target = $region21
    $region20: #{tpu_custom_call.1} parent=1 // pred_region
      _
    $region21: #{tpu_custom_call.1} parent=1 // pred_fallthru
      _
    // Predicated region
    $region22: #{tpu_custom_call.1} parent=1 // pred_check
      _
    $region23: #{tpu_custom_call.1} parent=1 // pred_check_branch
      %65 = sbr.rel (0) target = $region25
    $region24: #{tpu_custom_call.1} parent=1 // pred_region
      %66 = dma.done [#allocation3], 256
    $region25: #{tpu_custom_call.1} parent=1 // pred_fallthru
      _
    // Predicated region
    $region26: #{tpu_custom_call.1} parent=1 // pred_check
      _
    $region27: #{tpu_custom_call.1} parent=1 // pred_check_branch
      %68 = sbr.rel (0) target = $region29
    $region28: #{tpu_custom_call.1} parent=1 // pred_region
      %69 = dma.done [#allocation6], 256
    $region29: #{tpu_custom_call.1} parent=1 // pred_fallthru
      _
    // Predicated region
    $region30: #{tpu_custom_call.1} parent=1 // pred_check
      _
    $region31: #{tpu_custom_call.1} parent=1 // pred_check_branch
      %71 = sbr.rel (0) target = $region33
    $region32: #{tpu_custom_call.1} parent=1 // pred_region
      %72 = dma.done [#allocation6], 256
    $region33: #{tpu_custom_call.1} parent=1 // pred_fallthru
      _
    // Predicated region
    $region34: #{tpu_custom_call.1} parent=1 // pred_check
      _
    $region35: #{tpu_custom_call.1} parent=1 // pred_check_branch
      %74 = sbr.rel (0) target = $region37
    $region36: #{tpu_custom_call.1} parent=1 // pred_region
      %75 = dma.done [#allocation9], 2048
    $region37: #{tpu_custom_call.1} parent=1 // pred_fallthru
      _
    %v76 = vld [vmem:[#allocation8] sm:$0xff]
    %v77 = vld [vmem:[#allocation8 + $0x8] sm:$0xff]
    %v78 = vld [vmem:[#allocation8 + $0x10] sm:$0xff]
    %v79 = vld [vmem:[#allocation8 + $0x18] sm:$0xff]
    %v80 = vld [vmem:[#allocation8 + $0x20] sm:$0xff]
    %v81 = vld [vmem:[#allocation8 + $0x28] sm:$0xff]
    %v82 = vld [vmem:[#allocation8 + $0x30] sm:$0xff]
    %v83 = vld [vmem:[#allocation8 + $0x38] sm:$0xff]
    %v84 = vld [vmem:[#allocation8 + $0x40] sm:$0xff]
    %v85 = vld [vmem:[#allocation8 + $0x48] sm:$0xff]
    %v86 = vld [vmem:[#allocation8 + $0x50] sm:$0xff]
    %v87 = vld [vmem:[#allocation8 + $0x58] sm:$0xff]
    %v88 = vld [vmem:[#allocation8 + $0x60] sm:$0xff]
    %v89 = vld [vmem:[#allocation8 + $0x68] sm:$0xff]
    %v90 = vld [vmem:[#allocation8 + $0x70] sm:$0xff]
    %v91 = vld [vmem:[#allocation8 + $0x78] sm:$0xff]
    %v92 = vld [vmem:[%s4] sm:$0x1]
    %v93 = vld [vmem:[%s4 + $0x1] sm:$0x1]
    %v94 = vld [vmem:[%s4 + $0x2] sm:$0x1]
    %v95 = vld [vmem:[%s4 + $0x3] sm:$0x1]
    %v96 = vld [vmem:[#allocation2] sm:$0xff]
    %v97 = vld [vmem:[#allocation2 + $0x8] sm:$0xff]
    %v98 = vld [vmem:[#allocation5] sm:$0xff]
    %v99 = vld [vmem:[#allocation5 + $0x8] sm:$0xff]
    %v100 = vld [vmem:[#allocation7] sm:$0xff]
    %v101 = vld [vmem:[#allocation7 + $0x8] sm:$0xff]
    %v103 = vlaneseq
    %v104 = vshrl.u32 %v103, 7
    %v105 = vsub.s32 0, %v104
    %v106 = vrot.slane %v92, %v105
    %vm108 = vcmask 261120
    %v110 = vsel %vm108, %v96, 0
    %v113 = vsel %vm108, %v97, 0
    %115 = vmatprep.subr.mxu0 0.0
    %116 = vmatpush1.msra.mxu0 %v76
    %117 = vmatprep.subr.mxu0 0.0
    %118 = vmatpush1.msra.mxu0 %v77
    %119 = vmatprep.subr.mxu0 0.0
    %120 = vmatpush1.msra.mxu0 %v78
    %121 = vmatprep.subr.mxu0 0.0
    %122 = vmatpush1.msra.mxu0 %v79
    %123 = vmatprep.subr.mxu0 0.0
    %124 = vmatpush1.msra.mxu0 0.0
    %125 = vmatprep.subr.mxu0 0.0
    %126 = vmatpush1.msra.mxu0 0.0
    %127 = vmatprep.subr.mxu0 0.0
    %128 = vmatpush1.msra.mxu0 0.0
    %129 = vmatprep.subr.mxu0 0.0
    %130 = vmatpush1.msra.mxu0 0.0
    %131 = vmatprep.subr.mxu0 0.0
    %132 = vmatpush1.msra.mxu0 0.0
    %133 = vmatprep.subr.mxu0 0.0
    %134 = vmatpush1.msra.mxu0 0.0
    %135 = vmatprep.subr.mxu0 0.0
    %136 = vmatpush1.msra.mxu0 0.0
    %137 = vmatprep.subr.mxu0 0.0
    %138 = vmatpush1.msra.mxu0 0.0
    %139 = vmatprep.subr.mxu0 0.0
    %140 = vmatpush1.msra.mxu0 0.0
    %141 = vmatprep.subr.mxu0 0.0
    %142 = vmatpush1.msra.mxu0 0.0
    %143 = vmatprep.subr.mxu0 0.0
    %144 = vmatpush1.msra.mxu0 0.0
    %145 = vmatprep.subr.mxu0 0.0
    %146 = vmatpush1.msra.mxu0 0.0
    %147 = vmatprep.subr.mxu0 0.0
    %148 = vmatpush1.msra.mxu0 0.0
    %149 = vmatprep.subr.mxu0 0.0
    %150 = vmatpush1.msra.mxu0 0.0
    %151 = vmatprep.subr.mxu0 0.0
    %152 = vmatpush1.msra.mxu0 0.0
    %153 = vmatprep.subr.mxu0 0.0
    %154 = vmatpush1.msra.mxu0 0.0
    %155 = vmatprep.subr.mxu0 0.0
    %156 = vmatpush1.msra.mxu0 0.0
    %157 = vmatprep.subr.mxu0 0.0
    %158 = vmatpush1.msra.mxu0 0.0
    %159 = vmatprep.subr.mxu0 0.0
    %160 = vmatpush1.msra.mxu0 0.0
    %161 = vmatprep.subr.mxu0 0.0
    %162 = vmatpush1.msra.mxu0 0.0
    %163 = vmatprep.subr.mxu0 0.0
    %164 = vmatpush1.msra.mxu0 0.0
    %165 = vmatprep.subr.mxu0 0.0
    %166 = vmatpush1.msra.mxu0 0.0
    %167 = vmatprep.subr.mxu0 0.0
    %168 = vmatpush1.msra.mxu0 0.0
    %169 = vmatprep.subr.mxu0 0.0
    %170 = vmatpush1.msra.mxu0 0.0
    %171 = vmatprep.subr.mxu0 0.0
    %172 = vmatpush1.msra.mxu0 0.0
    %173 = vmatprep.subr.mxu0 0.0
    %174 = vmatpush1.msra.mxu0 0.0
    %175 = vmatprep.subr.mxu0 0.0
    %176 = vmatpush1.msra.mxu0 0.0
    %177 = vmatprep.subr.mxu0 0.0
    %178 = vmatpush1.msra.mxu0 0.0
    %179 = vmatprep.mubr.f32.mxu0 0.0
    %180 = vmatmul.mubr.f32.gmra.mrb[0].mxu0 %v110
    %v181 = vpop.f32.mrb[0].mxu0
    %v182 = vadd.f32 %v106, %v181
    %v183 = vpop.f32.mrb[0].mxu0
    %184 = vmatprep.mubr.f32.mxu0 0.0
    %185 = vmatmul.mubr.f32.gmra.mrb[0].mxu0 %v113
    %v186 = vpop.f32.mrb[0].mxu0
    %v187 = vadd.f32 %v106, %v186
    %v188 = vpop.f32.mrb[0].mxu0
    %189 = vdwg.mxu0
    %v191 = vlaneseq
    %v192 = vshrl.u32 %v191, 7
    %v193 = vsub.s32 0, %v192
    %v194 = vrot.slane %v93, %v193
    %v197 = vsel %vm108, %v98, 0
    %v200 = vsel %vm108, %v99, 0
    %202 = vmatprep.subr.mxu0 0.0
    %203 = vmatpush1.msra.mxu0 %v80
    %204 = vmatprep.subr.mxu0 0.0
    %205 = vmatpush1.msra.mxu0 %v81
    %206 = vmatprep.subr.mxu0 0.0
    %207 = vmatpush1.msra.mxu0 %v82
    %208 = vmatprep.subr.mxu0 0.0
    %209 = vmatpush1.msra.mxu0 %v83
    %210 = vmatprep.subr.mxu0 0.0
    %211 = vmatpush1.msra.mxu0 0.0
    %212 = vmatprep.subr.mxu0 0.0
    %213 = vmatpush1.msra.mxu0 0.0
    %214 = vmatprep.subr.mxu0 0.0
    %215 = vmatpush1.msra.mxu0 0.0
    %216 = vmatprep.subr.mxu0 0.0
    %217 = vmatpush1.msra.mxu0 0.0
    %218 = vmatprep.subr.mxu0 0.0
    %219 = vmatpush1.msra.mxu0 0.0
    %220 = vmatprep.subr.mxu0 0.0
    %221 = vmatpush1.msra.mxu0 0.0
    %222 = vmatprep.subr.mxu0 0.0
    %223 = vmatpush1.msra.mxu0 0.0
    %224 = vmatprep.subr.mxu0 0.0
    %225 = vmatpush1.msra.mxu0 0.0
    %226 = vmatprep.subr.mxu0 0.0
    %227 = vmatpush1.msra.mxu0 0.0
    %228 = vmatprep.subr.mxu0 0.0
    %229 = vmatpush1.msra.mxu0 0.0
    %230 = vmatprep.subr.mxu0 0.0
    %231 = vmatpush1.msra.mxu0 0.0
    %232 = vmatprep.subr.mxu0 0.0
    %233 = vmatpush1.msra.mxu0 0.0
    %234 = vmatprep.subr.mxu0 0.0
    %235 = vmatpush1.msra.mxu0 0.0
    %236 = vmatprep.subr.mxu0 0.0
    %237 = vmatpush1.msra.mxu0 0.0
    %238 = vmatprep.subr.mxu0 0.0
    %239 = vmatpush1.msra.mxu0 0.0
    %240 = vmatprep.subr.mxu0 0.0
    %241 = vmatpush1.msra.mxu0 0.0
    %242 = vmatprep.subr.mxu0 0.0
    %243 = vmatpush1.msra.mxu0 0.0
    %244 = vmatprep.subr.mxu0 0.0
    %245 = vmatpush1.msra.mxu0 0.0
    %246 = vmatprep.subr.mxu0 0.0
    %247 = vmatpush1.msra.mxu0 0.0
    %248 = vmatprep.subr.mxu0 0.0
    %249 = vmatpush1.msra.mxu0 0.0
    %250 = vmatprep.subr.mxu0 0.0
    %251 = vmatpush1.msra.mxu0 0.0
    %252 = vmatprep.subr.mxu0 0.0
    %253 = vmatpush1.msra.mxu0 0.0
    %254 = vmatprep.subr.mxu0 0.0
    %255 = vmatpush1.msra.mxu0 0.0
    %256 = vmatprep.subr.mxu0 0.0
    %257 = vmatpush1.msra.mxu0 0.0
    %258 = vmatprep.subr.mxu0 0.0
    %259 = vmatpush1.msra.mxu0 0.0
    %260 = vmatprep.subr.mxu0 0.0
    %261 = vmatpush1.msra.mxu0 0.0
    %262 = vmatprep.subr.mxu0 0.0
    %263 = vmatpush1.msra.mxu0 0.0
    %264 = vmatprep.subr.mxu0 0.0
    %265 = vmatpush1.msra.mxu0 0.0
    %266 = vmatprep.mubr.f32.mxu0 0.0
    %267 = vmatmul.mubr.f32.gmra.mrb[0].mxu0 %v197
    %v268 = vpop.f32.mrb[0].mxu0
    %v269 = vadd.f32 %v194, %v268
    %v270 = vpop.f32.mrb[0].mxu0
    %271 = vmatprep.mubr.f32.mxu0 0.0
    %272 = vmatmul.mubr.f32.gmra.mrb[0].mxu0 %v200
    %v273 = vpop.f32.mrb[0].mxu0
    %v274 = vadd.f32 %v194, %v273
    %v275 = vpop.f32.mrb[0].mxu0
    %276 = vdwg.mxu0
    %v278 = vlaneseq
    %v279 = vshrl.u32 %v278, 7
    %v280 = vsub.s32 0, %v279
    %v281 = vrot.slane %v94, %v280
    %v284 = vsel %vm108, %v100, 0
    %v287 = vsel %vm108, %v101, 0
    %289 = vmatprep.subr.mxu0 0.0
    %290 = vmatpush1.msra.mxu0 %v84
    %291 = vmatprep.subr.mxu0 0.0
    %292 = vmatpush1.msra.mxu0 %v85
    %293 = vmatprep.subr.mxu0 0.0
    %294 = vmatpush1.msra.mxu0 %v86
    %295 = vmatprep.subr.mxu0 0.0
    %296 = vmatpush1.msra.mxu0 %v87
    %297 = vmatprep.subr.mxu0 0.0
    %298 = vmatpush1.msra.mxu0 0.0
    %299 = vmatprep.subr.mxu0 0.0
    %300 = vmatpush1.msra.mxu0 0.0
    %301 = vmatprep.subr.mxu0 0.0
    %302 = vmatpush1.msra.mxu0 0.0
    %303 = vmatprep.subr.mxu0 0.0
    %304 = vmatpush1.msra.mxu0 0.0
    %305 = vmatprep.subr.mxu0 0.0
    %306 = vmatpush1.msra.mxu0 0.0
    %307 = vmatprep.subr.mxu0 0.0
    %308 = vmatpush1.msra.mxu0 0.0
    %309 = vmatprep.subr.mxu0 0.0
    %310 = vmatpush1.msra.mxu0 0.0
    %311 = vmatprep.subr.mxu0 0.0
    %312 = vmatpush1.msra.mxu0 0.0
    %313 = vmatprep.subr.mxu0 0.0
    %314 = vmatpush1.msra.mxu0 0.0
    %315 = vmatprep.subr.mxu0 0.0
    %316 = vmatpush1.msra.mxu0 0.0
    %317 = vmatprep.subr.mxu0 0.0
    %318 = vmatpush1.msra.mxu0 0.0
    %319 = vmatprep.subr.mxu0 0.0
    %320 = vmatpush1.msra.mxu0 0.0
    %321 = vmatprep.subr.mxu0 0.0
    %322 = vmatpush1.msra.mxu0 0.0
    %323 = vmatprep.subr.mxu0 0.0
    %324 = vmatpush1.msra.mxu0 0.0
    %325 = vmatprep.subr.mxu0 0.0
    %326 = vmatpush1.msra.mxu0 0.0
    %327 = vmatprep.subr.mxu0 0.0
    %328 = vmatpush1.msra.mxu0 0.0
    %329 = vmatprep.subr.mxu0 0.0
    %330 = vmatpush1.msra.mxu0 0.0
    %331 = vmatprep.subr.mxu0 0.0
    %332 = vmatpush1.msra.mxu0 0.0
    %333 = vmatprep.subr.mxu0 0.0
    %334 = vmatpush1.msra.mxu0 0.0
    %335 = vmatprep.subr.mxu0 0.0
    %336 = vmatpush1.msra.mxu0 0.0
    %337 = vmatprep.subr.mxu0 0.0
    %338 = vmatpush1.msra.mxu0 0.0
    %339 = vmatprep.subr.mxu0 0.0
    %340 = vmatpush1.msra.mxu0 0.0
    %341 = vmatprep.subr.mxu0 0.0
    %342 = vmatpush1.msra.mxu0 0.0
    %343 = vmatprep.subr.mxu0 0.0
    %344 = vmatpush1.msra.mxu0 0.0
    %345 = vmatprep.subr.mxu0 0.0
    %346 = vmatpush1.msra.mxu0 0.0
    %347 = vmatprep.subr.mxu0 0.0
    %348 = vmatpush1.msra.mxu0 0.0
    %349 = vmatprep.subr.mxu0 0.0
    %350 = vmatpush1.msra.mxu0 0.0
    %351 = vmatprep.subr.mxu0 0.0
    %352 = vmatpush1.msra.mxu0 0.0
    %353 = vmatprep.mubr.f32.mxu0 0.0
    %354 = vmatmul.mubr.f32.gmra.mrb[0].mxu0 %v284
    %v355 = vpop.f32.mrb[0].mxu0
    %v356 = vadd.f32 %v281, %v355
    %v357 = vpop.f32.mrb[0].mxu0
    %358 = vmatprep.mubr.f32.mxu0 0.0
    %359 = vmatmul.mubr.f32.gmra.mrb[0].mxu0 %v287
    %v360 = vpop.f32.mrb[0].mxu0
    %v361 = vadd.f32 %v281, %v360
    %v362 = vpop.f32.mrb[0].mxu0
    %363 = vdwg.mxu0
    %vm364 = vcmask 64512
    %v366 = vsel %vm364, %v182, 0
    %v369 = vsel %vm364, %v269, 0
    %371 = vmatprep.subr.mxu0 0.0
    %372 = vmatpush1.xpose.msra.mxu0 %v369
    %373 = vmatprep.subr.mxu0 0.0
    %374 = vmatpush1.xpose.msra.mxu0 0.0
    %375 = vmatprep.subr.mxu0 0.0
    %376 = vmatpush1.xpose.msra.mxu0 0.0
    %377 = vmatprep.subr.mxu0 0.0
    %378 = vmatpush1.xpose.msra.mxu0 0.0
    %379 = vmatprep.subr.mxu0 0.0
    %380 = vmatpush1.xpose.msra.mxu0 0.0
    %381 = vmatprep.subr.mxu0 0.0
    %382 = vmatpush1.xpose.msra.mxu0 0.0
    %383 = vmatprep.subr.mxu0 0.0
    %384 = vmatpush1.xpose.msra.mxu0 0.0
    %385 = vmatprep.subr.mxu0 0.0
    %386 = vmatpush1.xpose.msra.mxu0 0.0
    %387 = vmatprep.subr.mxu0 0.0
    %388 = vmatpush1.xpose.msra.mxu0 0.0
    %389 = vmatprep.subr.mxu0 0.0
    %390 = vmatpush1.xpose.msra.mxu0 0.0
    %391 = vmatprep.subr.mxu0 0.0
    %392 = vmatpush1.xpose.msra.mxu0 0.0
    %393 = vmatprep.subr.mxu0 0.0
    %394 = vmatpush1.xpose.msra.mxu0 0.0
    %395 = vmatprep.subr.mxu0 0.0
    %396 = vmatpush1.xpose.msra.mxu0 0.0
    %397 = vmatprep.subr.mxu0 0.0
    %398 = vmatpush1.xpose.msra.mxu0 0.0
    %399 = vmatprep.subr.mxu0 0.0
    %400 = vmatpush1.xpose.msra.mxu0 0.0
    %401 = vmatprep.subr.mxu0 0.0
    %402 = vmatpush1.xpose.msra.mxu0 0.0
    %403 = vmatprep.subr.mxu0 0.0
    %404 = vmatpush1.xpose.msra.mxu0 0.0
    %405 = vmatprep.subr.mxu0 0.0
    %406 = vmatpush1.xpose.msra.mxu0 0.0
    %407 = vmatprep.subr.mxu0 0.0
    %408 = vmatpush1.xpose.msra.mxu0 0.0
    %409 = vmatprep.subr.mxu0 0.0
    %410 = vmatpush1.xpose.msra.mxu0 0.0
    %411 = vmatprep.subr.mxu0 0.0
    %412 = vmatpush1.xpose.msra.mxu0 0.0
    %413 = vmatprep.subr.mxu0 0.0
    %414 = vmatpush1.xpose.msra.mxu0 0.0
    %415 = vmatprep.subr.mxu0 0.0
    %416 = vmatpush1.xpose.msra.mxu0 0.0
    %417 = vmatprep.subr.mxu0 0.0
    %418 = vmatpush1.xpose.msra.mxu0 0.0
    %419 = vmatprep.subr.mxu0 0.0
    %420 = vmatpush1.xpose.msra.mxu0 0.0
    %421 = vmatprep.subr.mxu0 0.0
    %422 = vmatpush1.xpose.msra.mxu0 0.0
    %423 = vmatprep.subr.mxu0 0.0
    %424 = vmatpush1.xpose.msra.mxu0 0.0
    %425 = vmatprep.subr.mxu0 0.0
    %426 = vmatpush1.xpose.msra.mxu0 0.0
    %427 = vmatprep.subr.mxu0 0.0
    %428 = vmatpush1.xpose.msra.mxu0 0.0
    %429 = vmatprep.subr.mxu0 0.0
    %430 = vmatpush1.xpose.msra.mxu0 0.0
    %431 = vmatprep.subr.mxu0 0.0
    %432 = vmatpush1.xpose.msra.mxu0 0.0
    %433 = vmatprep.subr.mxu0 0.0
    %434 = vmatpush1.xpose.msra.mxu0 0.0
    %435 = vmatprep.mubr.f32.mxu0 0.0
    %436 = vmatmul.mubr.f32.gmra.mrb[0].mxu0 %v366
    %v437 = vpop.f32.mrb[0].mxu0
    %v438 = vadd.f32 0.0, %v437
    %v439 = vpop.f32.mrb[0].mxu0
    %440 = vdwg.mxu0
    %v442 = vsel %vm364, %v187, 0
    %v445 = vsel %vm364, %v274, 0
    %447 = vmatprep.subr.mxu0 0.0
    %448 = vmatpush1.xpose.msra.mxu0 %v445
    %449 = vmatprep.subr.mxu0 0.0
    %450 = vmatpush1.xpose.msra.mxu0 0.0
    %451 = vmatprep.subr.mxu0 0.0
    %452 = vmatpush1.xpose.msra.mxu0 0.0
    %453 = vmatprep.subr.mxu0 0.0
    %454 = vmatpush1.xpose.msra.mxu0 0.0
    %455 = vmatprep.subr.mxu0 0.0
    %456 = vmatpush1.xpose.msra.mxu0 0.0
    %457 = vmatprep.subr.mxu0 0.0
    %458 = vmatpush1.xpose.msra.mxu0 0.0
    %459 = vmatprep.subr.mxu0 0.0
    %460 = vmatpush1.xpose.msra.mxu0 0.0
    %461 = vmatprep.subr.mxu0 0.0
    %462 = vmatpush1.xpose.msra.mxu0 0.0
    %463 = vmatprep.subr.mxu0 0.0
    %464 = vmatpush1.xpose.msra.mxu0 0.0
    %465 = vmatprep.subr.mxu0 0.0
    %466 = vmatpush1.xpose.msra.mxu0 0.0
    %467 = vmatprep.subr.mxu0 0.0
    %468 = vmatpush1.xpose.msra.mxu0 0.0
    %469 = vmatprep.subr.mxu0 0.0
    %470 = vmatpush1.xpose.msra.mxu0 0.0
    %471 = vmatprep.subr.mxu0 0.0
    %472 = vmatpush1.xpose.msra.mxu0 0.0
    %473 = vmatprep.subr.mxu0 0.0
    %474 = vmatpush1.xpose.msra.mxu0 0.0
    %475 = vmatprep.subr.mxu0 0.0
    %476 = vmatpush1.xpose.msra.mxu0 0.0
    %477 = vmatprep.subr.mxu0 0.0
    %478 = vmatpush1.xpose.msra.mxu0 0.0
    %479 = vmatprep.subr.mxu0 0.0
    %480 = vmatpush1.xpose.msra.mxu0 0.0
    %481 = vmatprep.subr.mxu0 0.0
    %482 = vmatpush1.xpose.msra.mxu0 0.0
    %483 = vmatprep.subr.mxu0 0.0
    %484 = vmatpush1.xpose.msra.mxu0 0.0
    %485 = vmatprep.subr.mxu0 0.0
    %486 = vmatpush1.xpose.msra.mxu0 0.0
    %487 = vmatprep.subr.mxu0 0.0
    %488 = vmatpush1.xpose.msra.mxu0 0.0
    %489 = vmatprep.subr.mxu0 0.0
    %490 = vmatpush1.xpose.msra.mxu0 0.0
    %491 = vmatprep.subr.mxu0 0.0
    %492 = vmatpush1.xpose.msra.mxu0 0.0
    %493 = vmatprep.subr.mxu0 0.0
    %494 = vmatpush1.xpose.msra.mxu0 0.0
    %495 = vmatprep.subr.mxu0 0.0
    %496 = vmatpush1.xpose.msra.mxu0 0.0
    %497 = vmatprep.subr.mxu0 0.0
    %498 = vmatpush1.xpose.msra.mxu0 0.0
    %499 = vmatprep.subr.mxu0 0.0
    %500 = vmatpush1.xpose.msra.mxu0 0.0
    %501 = vmatprep.subr.mxu0 0.0
    %502 = vmatpush1.xpose.msra.mxu0 0.0
    %503 = vmatprep.subr.mxu0 0.0
    %504 = vmatpush1.xpose.msra.mxu0 0.0
    %505 = vmatprep.subr.mxu0 0.0
    %506 = vmatpush1.xpose.msra.mxu0 0.0
    %507 = vmatprep.subr.mxu0 0.0
    %508 = vmatpush1.xpose.msra.mxu0 0.0
    %509 = vmatprep.subr.mxu0 0.0
    %510 = vmatpush1.xpose.msra.mxu0 0.0
    %511 = vmatprep.mubr.f32.mxu0 0.0
    %512 = vmatmul.mubr.f32.gmra.mrb[0].mxu0 %v442
    %v513 = vpop.f32.mrb[0].mxu0
    %v514 = vadd.f32 0.0, %v513
    %v515 = vpop.f32.mrb[0].mxu0
    %516 = vdwg.mxu0
    %v517 = vsel %vm364, %v438, -inf
    %518 = vmax.xlane.f32.xlu0 %v517
    %v519 = vpop.xlane.xlu0 %518
    %v520 = vsel %vm364, %v514, -inf
    %521 = vmax.xlane.f32.xlu0 %v520
    %v522 = vpop.xlane.xlu0 %521
    %v523 = vsub.f32 %v438, %v519
    %v524 = vsub.f32 %v514, %v522
    %v525 = vmul.f32 %v523, 1.442695
    %v526 = vpow.pop %v525
    %v527 = vmul.f32 %v524, 1.442695
    %v528 = vpow.pop %v527
    %v529 = vsel %vm364, %v526, 0.0
    %530 = vadd.xlane.f32.xlu0 %v529
    %v531 = vpop.xlane.xlu0 %530
    %v532 = vsel %vm364, %v528, 0.0
    %533 = vadd.xlane.f32.xlu0 %v532
    %v534 = vpop.xlane.xlu0 %533
    %v535 = vrcp.pop %v531
    %v536 = vrcp.pop %v534
    %v537 = vmul.f32 %v526, %v535
    %v538 = vmul.f32 %v528, %v536
    %v540 = vsel %vm364, %v537, 0
    %542 = vmatprep.subr.mxu0 0.0
    %543 = vmatpush1.msra.mxu0 %v356
    %544 = vmatprep.subr.mxu0 0.0
    %545 = vmatpush1.msra.mxu0 0.0
    %546 = vmatprep.subr.mxu0 0.0
    %547 = vmatpush1.msra.mxu0 0.0
    %548 = vmatprep.subr.mxu0 0.0
    %549 = vmatpush1.msra.mxu0 0.0
    %550 = vmatprep.subr.mxu0 0.0
    %551 = vmatpush1.msra.mxu0 0.0
    %552 = vmatprep.subr.mxu0 0.0
    %553 = vmatpush1.msra.mxu0 0.0
    %554 = vmatprep.subr.mxu0 0.0
    %555 = vmatpush1.msra.mxu0 0.0
    %556 = vmatprep.subr.mxu0 0.0
    %557 = vmatpush1.msra.mxu0 0.0
    %558 = vmatprep.subr.mxu0 0.0
    %559 = vmatpush1.msra.mxu0 0.0
    %560 = vmatprep.subr.mxu0 0.0
    %561 = vmatpush1.msra.mxu0 0.0
    %562 = vmatprep.subr.mxu0 0.0
    %563 = vmatpush1.msra.mxu0 0.0
    %564 = vmatprep.subr.mxu0 0.0
    %565 = vmatpush1.msra.mxu0 0.0
    %566 = vmatprep.subr.mxu0 0.0
    %567 = vmatpush1.msra.mxu0 0.0
    %568 = vmatprep.subr.mxu0 0.0
    %569 = vmatpush1.msra.mxu0 0.0
    %570 = vmatprep.subr.mxu0 0.0
    %571 = vmatpush1.msra.mxu0 0.0
    %572 = vmatprep.subr.mxu0 0.0
    %573 = vmatpush1.msra.mxu0 0.0
    %574 = vmatprep.subr.mxu0 0.0
    %575 = vmatpush1.msra.mxu0 0.0
    %576 = vmatprep.subr.mxu0 0.0
    %577 = vmatpush1.msra.mxu0 0.0
    %578 = vmatprep.subr.mxu0 0.0
    %579 = vmatpush1.msra.mxu0 0.0
    %580 = vmatprep.subr.mxu0 0.0
    %581 = vmatpush1.msra.mxu0 0.0
    %582 = vmatprep.subr.mxu0 0.0
    %583 = vmatpush1.msra.mxu0 0.0
    %584 = vmatprep.subr.mxu0 0.0
    %585 = vmatpush1.msra.mxu0 0.0
    %586 = vmatprep.subr.mxu0 0.0
    %587 = vmatpush1.msra.mxu0 0.0
    %588 = vmatprep.subr.mxu0 0.0
    %589 = vmatpush1.msra.mxu0 0.0
    %590 = vmatprep.subr.mxu0 0.0
    %591 = vmatpush1.msra.mxu0 0.0
    %592 = vmatprep.subr.mxu0 0.0
    %593 = vmatpush1.msra.mxu0 0.0
    %594 = vmatprep.subr.mxu0 0.0
    %595 = vmatpush1.msra.mxu0 0.0
    %596 = vmatprep.subr.mxu0 0.0
    %597 = vmatpush1.msra.mxu0 0.0
    %598 = vmatprep.subr.mxu0 0.0
    %599 = vmatpush1.msra.mxu0 0.0
    %600 = vmatprep.subr.mxu0 0.0
    %601 = vmatpush1.msra.mxu0 0.0
    %602 = vmatprep.subr.mxu0 0.0
    %603 = vmatpush1.msra.mxu0 0.0
    %604 = vmatprep.subr.mxu0 0.0
    %605 = vmatpush1.msra.mxu0 0.0
    %606 = vmatprep.mubr.f32.mxu0 0.0
    %607 = vmatmul.mubr.f32.gmra.mrb[0].mxu0 %v540
    %v608 = vpop.f32.mrb[0].mxu0
    %v609 = vadd.f32 0.0, %v608
    %v610 = vpop.f32.mrb[0].mxu0
    %611 = vdwg.mxu0
    %v613 = vsel %vm364, %v538, 0
    %615 = vmatprep.subr.mxu0 0.0
    %616 = vmatpush1.msra.mxu0 %v361
    %617 = vmatprep.subr.mxu0 0.0
    %618 = vmatpush1.msra.mxu0 0.0
    %619 = vmatprep.subr.mxu0 0.0
    %620 = vmatpush1.msra.mxu0 0.0
    %621 = vmatprep.subr.mxu0 0.0
    %622 = vmatpush1.msra.mxu0 0.0
    %623 = vmatprep.subr.mxu0 0.0
    %624 = vmatpush1.msra.mxu0 0.0
    %625 = vmatprep.subr.mxu0 0.0
    %626 = vmatpush1.msra.mxu0 0.0
    %627 = vmatprep.subr.mxu0 0.0
    %628 = vmatpush1.msra.mxu0 0.0
    %629 = vmatprep.subr.mxu0 0.0
    %630 = vmatpush1.msra.mxu0 0.0
    %631 = vmatprep.subr.mxu0 0.0
    %632 = vmatpush1.msra.mxu0 0.0
    %633 = vmatprep.subr.mxu0 0.0
    %634 = vmatpush1.msra.mxu0 0.0
    %635 = vmatprep.subr.mxu0 0.0
    %636 = vmatpush1.msra.mxu0 0.0
    %637 = vmatprep.subr.mxu0 0.0
    %638 = vmatpush1.msra.mxu0 0.0
    %639 = vmatprep.subr.mxu0 0.0
    %640 = vmatpush1.msra.mxu0 0.0
    %641 = vmatprep.subr.mxu0 0.0
    %642 = vmatpush1.msra.mxu0 0.0
    %643 = vmatprep.subr.mxu0 0.0
    %644 = vmatpush1.msra.mxu0 0.0
    %645 = vmatprep.subr.mxu0 0.0
    %646 = vmatpush1.msra.mxu0 0.0
    %647 = vmatprep.subr.mxu0 0.0
    %648 = vmatpush1.msra.mxu0 0.0
    %649 = vmatprep.subr.mxu0 0.0
    %650 = vmatpush1.msra.mxu0 0.0
    %651 = vmatprep.subr.mxu0 0.0
    %652 = vmatpush1.msra.mxu0 0.0
    %653 = vmatprep.subr.mxu0 0.0
    %654 = vmatpush1.msra.mxu0 0.0
    %655 = vmatprep.subr.mxu0 0.0
    %656 = vmatpush1.msra.mxu0 0.0
    %657 = vmatprep.subr.mxu0 0.0
    %658 = vmatpush1.msra.mxu0 0.0
    %659 = vmatprep.subr.mxu0 0.0
    %660 = vmatpush1.msra.mxu0 0.0
    %661 = vmatprep.subr.mxu0 0.0
    %662 = vmatpush1.msra.mxu0 0.0
    %663 = vmatprep.subr.mxu0 0.0
    %664 = vmatpush1.msra.mxu0 0.0
    %665 = vmatprep.subr.mxu0 0.0
    %666 = vmatpush1.msra.mxu0 0.0
    %667 = vmatprep.subr.mxu0 0.0
    %668 = vmatpush1.msra.mxu0 0.0
    %669 = vmatprep.subr.mxu0 0.0
    %670 = vmatpush1.msra.mxu0 0.0
    %671 = vmatprep.subr.mxu0 0.0
    %672 = vmatpush1.msra.mxu0 0.0
    %673 = vmatprep.subr.mxu0 0.0
    %674 = vmatpush1.msra.mxu0 0.0
    %675 = vmatprep.subr.mxu0 0.0
    %676 = vmatpush1.msra.mxu0 0.0
    %677 = vmatprep.subr.mxu0 0.0
    %678 = vmatpush1.msra.mxu0 0.0
    %679 = vmatprep.mubr.f32.mxu0 0.0
    %680 = vmatmul.mubr.f32.gmra.mrb[0].mxu0 %v613
    %v681 = vpop.f32.mrb[0].mxu0
    %v682 = vadd.f32 0.0, %v681
    %v683 = vpop.f32.mrb[0].mxu0
    %684 = vdwg.mxu0
    %685 = vrot.lane.b32.xlu0 %v182, 120
    %v686 = vpop.permute.xlu0 %685
    %687 = vrot.lane.b32.xlu0 %v269, 120
    %v688 = vpop.permute.xlu0 %687
    %v689 = vsel %vm364, %v686, 0
    %v691 = vsel %vm364, %v688, 0
    %693 = vmatprep.subr.mxu0 0.0
    %694 = vmatpush1.xpose.msra.mxu0 %v691
    %695 = vmatprep.subr.mxu0 0.0
    %696 = vmatpush1.xpose.msra.mxu0 0.0
    %697 = vmatprep.subr.mxu0 0.0
    %698 = vmatpush1.xpose.msra.mxu0 0.0
    %699 = vmatprep.subr.mxu0 0.0
    %700 = vmatpush1.xpose.msra.mxu0 0.0
    %701 = vmatprep.subr.mxu0 0.0
    %702 = vmatpush1.xpose.msra.mxu0 0.0
    %703 = vmatprep.subr.mxu0 0.0
    %704 = vmatpush1.xpose.msra.mxu0 0.0
    %705 = vmatprep.subr.mxu0 0.0
    %706 = vmatpush1.xpose.msra.mxu0 0.0
    %707 = vmatprep.subr.mxu0 0.0
    %708 = vmatpush1.xpose.msra.mxu0 0.0
    %709 = vmatprep.subr.mxu0 0.0
    %710 = vmatpush1.xpose.msra.mxu0 0.0
    %711 = vmatprep.subr.mxu0 0.0
    %712 = vmatpush1.xpose.msra.mxu0 0.0
    %713 = vmatprep.subr.mxu0 0.0
    %714 = vmatpush1.xpose.msra.mxu0 0.0
    %715 = vmatprep.subr.mxu0 0.0
    %716 = vmatpush1.xpose.msra.mxu0 0.0
    %717 = vmatprep.subr.mxu0 0.0
    %718 = vmatpush1.xpose.msra.mxu0 0.0
    %719 = vmatprep.subr.mxu0 0.0
    %720 = vmatpush1.xpose.msra.mxu0 0.0
    %721 = vmatprep.subr.mxu0 0.0
    %722 = vmatpush1.xpose.msra.mxu0 0.0
    %723 = vmatprep.subr.mxu0 0.0
    %724 = vmatpush1.xpose.msra.mxu0 0.0
    %725 = vmatprep.subr.mxu0 0.0
    %726 = vmatpush1.xpose.msra.mxu0 0.0
    %727 = vmatprep.subr.mxu0 0.0
    %728 = vmatpush1.xpose.msra.mxu0 0.0
    %729 = vmatprep.subr.mxu0 0.0
    %730 = vmatpush1.xpose.msra.mxu0 0.0
    %731 = vmatprep.subr.mxu0 0.0
    %732 = vmatpush1.xpose.msra.mxu0 0.0
    %733 = vmatprep.subr.mxu0 0.0
    %734 = vmatpush1.xpose.msra.mxu0 0.0
    %735 = vmatprep.subr.mxu0 0.0
    %736 = vmatpush1.xpose.msra.mxu0 0.0
    %737 = vmatprep.subr.mxu0 0.0
    %738 = vmatpush1.xpose.msra.mxu0 0.0
    %739 = vmatprep.subr.mxu0 0.0
    %740 = vmatpush1.xpose.msra.mxu0 0.0
    %741 = vmatprep.subr.mxu0 0.0
    %742 = vmatpush1.xpose.msra.mxu0 0.0
    %743 = vmatprep.subr.mxu0 0.0
    %744 = vmatpush1.xpose.msra.mxu0 0.0
    %745 = vmatprep.subr.mxu0 0.0
    %746 = vmatpush1.xpose.msra.mxu0 0.0
    %747 = vmatprep.subr.mxu0 0.0
    %748 = vmatpush1.xpose.msra.mxu0 0.0
    %749 = vmatprep.subr.mxu0 0.0
    %750 = vmatpush1.xpose.msra.mxu0 0.0
    %751 = vmatprep.subr.mxu0 0.0
    %752 = vmatpush1.xpose.msra.mxu0 0.0
    %753 = vmatprep.subr.mxu0 0.0
    %754 = vmatpush1.xpose.msra.mxu0 0.0
    %755 = vmatprep.subr.mxu0 0.0
    %756 = vmatpush1.xpose.msra.mxu0 0.0
    %757 = vmatprep.mubr.f32.mxu0 0.0
    %758 = vmatmul.mubr.f32.gmra.mrb[0].mxu0 %v689
    %v759 = vpop.f32.mrb[0].mxu0
    %v760 = vadd.f32 0.0, %v759
    %v761 = vpop.f32.mrb[0].mxu0
    %762 = vdwg.mxu0
    %763 = vrot.lane.b32.xlu0 %v187, 120
    %v764 = vpop.permute.xlu0 %763
    %765 = vrot.lane.b32.xlu0 %v274, 120
    %v766 = vpop.permute.xlu0 %765
    %v767 = vsel %vm364, %v764, 0
    %v769 = vsel %vm364, %v766, 0
    %771 = vmatprep.subr.mxu0 0.0
    %772 = vmatpush1.xpose.msra.mxu0 %v769
    %773 = vmatprep.subr.mxu0 0.0
    %774 = vmatpush1.xpose.msra.mxu0 0.0
    %775 = vmatprep.subr.mxu0 0.0
    %776 = vmatpush1.xpose.msra.mxu0 0.0
    %777 = vmatprep.subr.mxu0 0.0
    %778 = vmatpush1.xpose.msra.mxu0 0.0
    %779 = vmatprep.subr.mxu0 0.0
    %780 = vmatpush1.xpose.msra.mxu0 0.0
    %781 = vmatprep.subr.mxu0 0.0
    %782 = vmatpush1.xpose.msra.mxu0 0.0
    %783 = vmatprep.subr.mxu0 0.0
    %784 = vmatpush1.xpose.msra.mxu0 0.0
    %785 = vmatprep.subr.mxu0 0.0
    %786 = vmatpush1.xpose.msra.mxu0 0.0
    %787 = vmatprep.subr.mxu0 0.0
    %788 = vmatpush1.xpose.msra.mxu0 0.0
    %789 = vmatprep.subr.mxu0 0.0
    %790 = vmatpush1.xpose.msra.mxu0 0.0
    %791 = vmatprep.subr.mxu0 0.0
    %792 = vmatpush1.xpose.msra.mxu0 0.0
    %793 = vmatprep.subr.mxu0 0.0
    %794 = vmatpush1.xpose.msra.mxu0 0.0
    %795 = vmatprep.subr.mxu0 0.0
    %796 = vmatpush1.xpose.msra.mxu0 0.0
    %797 = vmatprep.subr.mxu0 0.0
    %798 = vmatpush1.xpose.msra.mxu0 0.0
    %799 = vmatprep.subr.mxu0 0.0
    %800 = vmatpush1.xpose.msra.mxu0 0.0
    %801 = vmatprep.subr.mxu0 0.0
    %802 = vmatpush1.xpose.msra.mxu0 0.0
    %803 = vmatprep.subr.mxu0 0.0
    %804 = vmatpush1.xpose.msra.mxu0 0.0
    %805 = vmatprep.subr.mxu0 0.0
    %806 = vmatpush1.xpose.msra.mxu0 0.0
    %807 = vmatprep.subr.mxu0 0.0
    %808 = vmatpush1.xpose.msra.mxu0 0.0
    %809 = vmatprep.subr.mxu0 0.0
    %810 = vmatpush1.xpose.msra.mxu0 0.0
    %811 = vmatprep.subr.mxu0 0.0
    %812 = vmatpush1.xpose.msra.mxu0 0.0
    %813 = vmatprep.subr.mxu0 0.0
    %814 = vmatpush1.xpose.msra.mxu0 0.0
    %815 = vmatprep.subr.mxu0 0.0
    %816 = vmatpush1.xpose.msra.mxu0 0.0
    %817 = vmatprep.subr.mxu0 0.0
    %818 = vmatpush1.xpose.msra.mxu0 0.0
    %819 = vmatprep.subr.mxu0 0.0
    %820 = vmatpush1.xpose.msra.mxu0 0.0
    %821 = vmatprep.subr.mxu0 0.0
    %822 = vmatpush1.xpose.msra.mxu0 0.0
    %823 = vmatprep.subr.mxu0 0.0
    %824 = vmatpush1.xpose.msra.mxu0 0.0
    %825 = vmatprep.subr.mxu0 0.0
    %826 = vmatpush1.xpose.msra.mxu0 0.0
    %827 = vmatprep.subr.mxu0 0.0
    %828 = vmatpush1.xpose.msra.mxu0 0.0
    %829 = vmatprep.subr.mxu0 0.0
    %830 = vmatpush1.xpose.msra.mxu0 0.0
    %831 = vmatprep.subr.mxu0 0.0
    %832 = vmatpush1.xpose.msra.mxu0 0.0
    %833 = vmatprep.subr.mxu0 0.0
    %834 = vmatpush1.xpose.msra.mxu0 0.0
    %835 = vmatprep.mubr.f32.mxu0 0.0
    %836 = vmatmul.mubr.f32.gmra.mrb[0].mxu0 %v767
    %v837 = vpop.f32.mrb[0].mxu0
    %v838 = vadd.f32 0.0, %v837
    %v839 = vpop.f32.mrb[0].mxu0
    %840 = vdwg.mxu0
    %v841 = vsel %vm364, %v760, -inf
    %842 = vmax.xlane.f32.xlu0 %v841
    %v843 = vpop.xlane.xlu0 %842
    %v844 = vsel %vm364, %v838, -inf
    %845 = vmax.xlane.f32.xlu0 %v844
    %v846 = vpop.xlane.xlu0 %845
    %v847 = vsub.f32 %v760, %v843
    %v848 = vsub.f32 %v838, %v846
    %v849 = vmul.f32 %v847, 1.442695
    %v850 = vpow.pop %v849
    %v851 = vmul.f32 %v848, 1.442695
    %v852 = vpow.pop %v851
    %v853 = vsel %vm364, %v850, 0.0
    %854 = vadd.xlane.f32.xlu0 %v853
    %v855 = vpop.xlane.xlu0 %854
    %v856 = vsel %vm364, %v852, 0.0
    %857 = vadd.xlane.f32.xlu0 %v856
    %v858 = vpop.xlane.xlu0 %857
    %v859 = vrcp.pop %v855
    %v860 = vrcp.pop %v858
    %v861 = vmul.f32 %v850, %v859
    %v862 = vmul.f32 %v852, %v860
    %864 = vrot.lane.b32.xlu0 %v356, 120
    %v865 = vpop.permute.xlu0 %864
    %v868 = vsel %vm364, %v861, 0
    %870 = vmatprep.subr.mxu0 0.0
    %871 = vmatpush1.msra.mxu0 %v865
    %872 = vmatprep.subr.mxu0 0.0
    %873 = vmatpush1.msra.mxu0 0.0
    %874 = vmatprep.subr.mxu0 0.0
    %875 = vmatpush1.msra.mxu0 0.0
    %876 = vmatprep.subr.mxu0 0.0
    %877 = vmatpush1.msra.mxu0 0.0
    %878 = vmatprep.subr.mxu0 0.0
    %879 = vmatpush1.msra.mxu0 0.0
    %880 = vmatprep.subr.mxu0 0.0
    %881 = vmatpush1.msra.mxu0 0.0
    %882 = vmatprep.subr.mxu0 0.0
    %883 = vmatpush1.msra.mxu0 0.0
    %884 = vmatprep.subr.mxu0 0.0
    %885 = vmatpush1.msra.mxu0 0.0
    %886 = vmatprep.subr.mxu0 0.0
    %887 = vmatpush1.msra.mxu0 0.0
    %888 = vmatprep.subr.mxu0 0.0
    %889 = vmatpush1.msra.mxu0 0.0
    %890 = vmatprep.subr.mxu0 0.0
    %891 = vmatpush1.msra.mxu0 0.0
    %892 = vmatprep.subr.mxu0 0.0
    %893 = vmatpush1.msra.mxu0 0.0
    %894 = vmatprep.subr.mxu0 0.0
    %895 = vmatpush1.msra.mxu0 0.0
    %896 = vmatprep.subr.mxu0 0.0
    %897 = vmatpush1.msra.mxu0 0.0
    %898 = vmatprep.subr.mxu0 0.0
    %899 = vmatpush1.msra.mxu0 0.0
    %900 = vmatprep.subr.mxu0 0.0
    %901 = vmatpush1.msra.mxu0 0.0
    %902 = vmatprep.subr.mxu0 0.0
    %903 = vmatpush1.msra.mxu0 0.0
    %904 = vmatprep.subr.mxu0 0.0
    %905 = vmatpush1.msra.mxu0 0.0
    %906 = vmatprep.subr.mxu0 0.0
    %907 = vmatpush1.msra.mxu0 0.0
    %908 = vmatprep.subr.mxu0 0.0
    %909 = vmatpush1.msra.mxu0 0.0
    %910 = vmatprep.subr.mxu0 0.0
    %911 = vmatpush1.msra.mxu0 0.0
    %912 = vmatprep.subr.mxu0 0.0
    %913 = vmatpush1.msra.mxu0 0.0
    %914 = vmatprep.subr.mxu0 0.0
    %915 = vmatpush1.msra.mxu0 0.0
    %916 = vmatprep.subr.mxu0 0.0
    %917 = vmatpush1.msra.mxu0 0.0
    %918 = vmatprep.subr.mxu0 0.0
    %919 = vmatpush1.msra.mxu0 0.0
    %920 = vmatprep.subr.mxu0 0.0
    %921 = vmatpush1.msra.mxu0 0.0
    %922 = vmatprep.subr.mxu0 0.0
    %923 = vmatpush1.msra.mxu0 0.0
    %924 = vmatprep.subr.mxu0 0.0
    %925 = vmatpush1.msra.mxu0 0.0
    %926 = vmatprep.subr.mxu0 0.0
    %927 = vmatpush1.msra.mxu0 0.0
    %928 = vmatprep.subr.mxu0 0.0
    %929 = vmatpush1.msra.mxu0 0.0
    %930 = vmatprep.subr.mxu0 0.0
    %931 = vmatpush1.msra.mxu0 0.0
    %932 = vmatprep.subr.mxu0 0.0
    %933 = vmatpush1.msra.mxu0 0.0
    %934 = vmatprep.mubr.f32.mxu0 0.0
    %935 = vmatmul.mubr.f32.gmra.mrb[0].mxu0 %v868
    %v936 = vpop.f32.mrb[0].mxu0
    %v937 = vadd.f32 0.0, %v936
    %v938 = vpop.f32.mrb[0].mxu0
    %939 = vdwg.mxu0
    %941 = vrot.lane.b32.xlu0 %v361, 120
    %v942 = vpop.permute.xlu0 %941
    %v945 = vsel %vm364, %v862, 0
    %947 = vmatprep.subr.mxu0 0.0
    %948 = vmatpush1.msra.mxu0 %v942
    %949 = vmatprep.subr.mxu0 0.0
    %950 = vmatpush1.msra.mxu0 0.0
    %951 = vmatprep.subr.mxu0 0.0
    %952 = vmatpush1.msra.mxu0 0.0
    %953 = vmatprep.subr.mxu0 0.0
    %954 = vmatpush1.msra.mxu0 0.0
    %955 = vmatprep.subr.mxu0 0.0
    %956 = vmatpush1.msra.mxu0 0.0
    %957 = vmatprep.subr.mxu0 0.0
    %958 = vmatpush1.msra.mxu0 0.0
    %959 = vmatprep.subr.mxu0 0.0
    %960 = vmatpush1.msra.mxu0 0.0
    %961 = vmatprep.subr.mxu0 0.0
    %962 = vmatpush1.msra.mxu0 0.0
    %963 = vmatprep.subr.mxu0 0.0
    %964 = vmatpush1.msra.mxu0 0.0
    %965 = vmatprep.subr.mxu0 0.0
    %966 = vmatpush1.msra.mxu0 0.0
    %967 = vmatprep.subr.mxu0 0.0
    %968 = vmatpush1.msra.mxu0 0.0
    %969 = vmatprep.subr.mxu0 0.0
    %970 = vmatpush1.msra.mxu0 0.0
    %971 = vmatprep.subr.mxu0 0.0
    %972 = vmatpush1.msra.mxu0 0.0
    %973 = vmatprep.subr.mxu0 0.0
    %974 = vmatpush1.msra.mxu0 0.0
    %975 = vmatprep.subr.mxu0 0.0
    %976 = vmatpush1.msra.mxu0 0.0
    %977 = vmatprep.subr.mxu0 0.0
    %978 = vmatpush1.msra.mxu0 0.0
    %979 = vmatprep.subr.mxu0 0.0
    %980 = vmatpush1.msra.mxu0 0.0
    %981 = vmatprep.subr.mxu0 0.0
    %982 = vmatpush1.msra.mxu0 0.0
    %983 = vmatprep.subr.mxu0 0.0
    %984 = vmatpush1.msra.mxu0 0.0
    %985 = vmatprep.subr.mxu0 0.0
    %986 = vmatpush1.msra.mxu0 0.0
    %987 = vmatprep.subr.mxu0 0.0
    %988 = vmatpush1.msra.mxu0 0.0
    %989 = vmatprep.subr.mxu0 0.0
    %990 = vmatpush1.msra.mxu0 0.0
    %991 = vmatprep.subr.mxu0 0.0
    %992 = vmatpush1.msra.mxu0 0.0
    %993 = vmatprep.subr.mxu0 0.0
    %994 = vmatpush1.msra.mxu0 0.0
    %995 = vmatprep.subr.mxu0 0.0
    %996 = vmatpush1.msra.mxu0 0.0
    %997 = vmatprep.subr.mxu0 0.0
    %998 = vmatpush1.msra.mxu0 0.0
    %999 = vmatprep.subr.mxu0 0.0
    %1000 = vmatpush1.msra.mxu0 0.0
    %1001 = vmatprep.subr.mxu0 0.0
    %1002 = vmatpush1.msra.mxu0 0.0
    %1003 = vmatprep.subr.mxu0 0.0
    %1004 = vmatpush1.msra.mxu0 0.0
    %1005 = vmatprep.subr.mxu0 0.0
    %1006 = vmatpush1.msra.mxu0 0.0
    %1007 = vmatprep.subr.mxu0 0.0
    %1008 = vmatpush1.msra.mxu0 0.0
    %1009 = vmatprep.subr.mxu0 0.0
    %1010 = vmatpush1.msra.mxu0 0.0
    %1011 = vmatprep.mubr.f32.mxu0 0.0
    %1012 = vmatmul.mubr.f32.gmra.mrb[0].mxu0 %v945
    %v1013 = vpop.f32.mrb[0].mxu0
    %v1014 = vadd.f32 0.0, %v1013
    %v1015 = vpop.f32.mrb[0].mxu0
    %1016 = vdwg.mxu0
    %v1018 = vsel %vm364, %v937, 0
    %v1021 = vsel %vm364, %v1014, 0
    %1023 = vmatprep.subr.mxu0 0.0
    %1024 = vmatpush1.msra.mxu0 %v89
    %1025 = vmatprep.subr.mxu0 0.0
    %1026 = vmatpush1.msra.mxu0 0.0
    %1027 = vmatprep.subr.mxu0 0.0
    %1028 = vmatpush1.msra.mxu0 0.0
    %1029 = vmatprep.subr.mxu0 0.0
    %1030 = vmatpush1.msra.mxu0 0.0
    %1031 = vmatprep.subr.mxu0 0.0
    %1032 = vmatpush1.msra.mxu0 0.0
    %1033 = vmatprep.subr.mxu0 0.0
    %1034 = vmatpush1.msra.mxu0 0.0
    %1035 = vmatprep.subr.mxu0 0.0
    %1036 = vmatpush1.msra.mxu0 0.0
    %1037 = vmatprep.subr.mxu0 0.0
    %1038 = vmatpush1.msra.mxu0 0.0
    %1039 = vmatprep.subr.mxu0 0.0
    %1040 = vmatpush1.msra.mxu0 0.0
    %1041 = vmatprep.subr.mxu0 0.0
    %1042 = vmatpush1.msra.mxu0 0.0
    %1043 = vmatprep.subr.mxu0 0.0
    %1044 = vmatpush1.msra.mxu0 0.0
    %1045 = vmatprep.subr.mxu0 0.0
    %1046 = vmatpush1.msra.mxu0 0.0
    %1047 = vmatprep.subr.mxu0 0.0
    %1048 = vmatpush1.msra.mxu0 0.0
    %1049 = vmatprep.subr.mxu0 0.0
    %1050 = vmatpush1.msra.mxu0 0.0
    %1051 = vmatprep.subr.mxu0 0.0
    %1052 = vmatpush1.msra.mxu0 0.0
    %1053 = vmatprep.subr.mxu0 0.0
    %1054 = vmatpush1.msra.mxu0 0.0
    %1055 = vmatprep.subr.mxu0 0.0
    %1056 = vmatpush1.msra.mxu0 0.0
    %1057 = vmatprep.subr.mxu0 0.0
    %1058 = vmatpush1.msra.mxu0 0.0
    %1059 = vmatprep.subr.mxu0 0.0
    %1060 = vmatpush1.msra.mxu0 0.0
    %1061 = vmatprep.subr.mxu0 0.0
    %1062 = vmatpush1.msra.mxu0 0.0
    %1063 = vmatprep.subr.mxu0 0.0
    %1064 = vmatpush1.msra.mxu0 0.0
    %1065 = vmatprep.subr.mxu0 0.0
    %1066 = vmatpush1.msra.mxu0 0.0
    %1067 = vmatprep.subr.mxu0 0.0
    %1068 = vmatpush1.msra.mxu0 0.0
    %1069 = vmatprep.subr.mxu0 0.0
    %1070 = vmatpush1.msra.mxu0 0.0
    %1071 = vmatprep.subr.mxu0 0.0
    %1072 = vmatpush1.msra.mxu0 0.0
    %1073 = vmatprep.subr.mxu0 0.0
    %1074 = vmatpush1.msra.mxu0 0.0
    %1075 = vmatprep.subr.mxu0 0.0
    %1076 = vmatpush1.msra.mxu0 0.0
    %1077 = vmatprep.subr.mxu0 0.0
    %1078 = vmatpush1.msra.mxu0 0.0
    %1079 = vmatprep.subr.mxu0 0.0
    %1080 = vmatpush1.msra.mxu0 0.0
    %1081 = vmatprep.subr.mxu0 0.0
    %1082 = vmatpush1.msra.mxu0 0.0
    %1083 = vmatprep.subr.mxu0 0.0
    %1084 = vmatpush1.msra.mxu0 0.0
    %1085 = vmatprep.subr.mxu0 0.0
    %1086 = vmatpush1.msra.mxu0 0.0
    %1087 = vmatprep.mubr.f32.mxu0 0.0
    %1088 = vmatmul.mubr.f32.gmra.mrb[0].mxu0 %v1018
    %v1089 = vpop.f32.mrb[0].mxu0
    %v1090 = vadd.f32 0.0, %v1089
    %v1091 = vpop.f32.mrb[0].mxu0
    %1092 = vmatprep.mubr.f32.mxu0 0.0
    %1093 = vmatmul.mubr.f32.gmra.mrb[0].mxu0 %v1021
    %v1094 = vpop.f32.mrb[0].mxu0
    %v1095 = vadd.f32 0.0, %v1094
    %v1096 = vpop.f32.mrb[0].mxu0
    %1097 = vdwg.mxu0
    %v1099 = vsel %vm364, %v609, 0
    %v1102 = vsel %vm364, %v682, 0
    %1104 = vmatprep.subr.mxu0 0.0
    %1105 = vmatpush1.msra.mxu0 %v88
    %1106 = vmatprep.subr.mxu0 0.0
    %1107 = vmatpush1.msra.mxu0 0.0
    %1108 = vmatprep.subr.mxu0 0.0
    %1109 = vmatpush1.msra.mxu0 0.0
    %1110 = vmatprep.subr.mxu0 0.0
    %1111 = vmatpush1.msra.mxu0 0.0
    %1112 = vmatprep.subr.mxu0 0.0
    %1113 = vmatpush1.msra.mxu0 0.0
    %1114 = vmatprep.subr.mxu0 0.0
    %1115 = vmatpush1.msra.mxu0 0.0
    %1116 = vmatprep.subr.mxu0 0.0
    %1117 = vmatpush1.msra.mxu0 0.0
    %1118 = vmatprep.subr.mxu0 0.0
    %1119 = vmatpush1.msra.mxu0 0.0
    %1120 = vmatprep.subr.mxu0 0.0
    %1121 = vmatpush1.msra.mxu0 0.0
    %1122 = vmatprep.subr.mxu0 0.0
    %1123 = vmatpush1.msra.mxu0 0.0
    %1124 = vmatprep.subr.mxu0 0.0
    %1125 = vmatpush1.msra.mxu0 0.0
    %1126 = vmatprep.subr.mxu0 0.0
    %1127 = vmatpush1.msra.mxu0 0.0
    %1128 = vmatprep.subr.mxu0 0.0
    %1129 = vmatpush1.msra.mxu0 0.0
    %1130 = vmatprep.subr.mxu0 0.0
    %1131 = vmatpush1.msra.mxu0 0.0
    %1132 = vmatprep.subr.mxu0 0.0
    %1133 = vmatpush1.msra.mxu0 0.0
    %1134 = vmatprep.subr.mxu0 0.0
    %1135 = vmatpush1.msra.mxu0 0.0
    %1136 = vmatprep.subr.mxu0 0.0
    %1137 = vmatpush1.msra.mxu0 0.0
    %1138 = vmatprep.subr.mxu0 0.0
    %1139 = vmatpush1.msra.mxu0 0.0
    %1140 = vmatprep.subr.mxu0 0.0
    %1141 = vmatpush1.msra.mxu0 0.0
    %1142 = vmatprep.subr.mxu0 0.0
    %1143 = vmatpush1.msra.mxu0 0.0
    %1144 = vmatprep.subr.mxu0 0.0
    %1145 = vmatpush1.msra.mxu0 0.0
    %1146 = vmatprep.subr.mxu0 0.0
    %1147 = vmatpush1.msra.mxu0 0.0
    %1148 = vmatprep.subr.mxu0 0.0
    %1149 = vmatpush1.msra.mxu0 0.0
    %1150 = vmatprep.subr.mxu0 0.0
    %1151 = vmatpush1.msra.mxu0 0.0
    %1152 = vmatprep.subr.mxu0 0.0
    %1153 = vmatpush1.msra.mxu0 0.0
    %1154 = vmatprep.subr.mxu0 0.0
    %1155 = vmatpush1.msra.mxu0 0.0
    %1156 = vmatprep.subr.mxu0 0.0
    %1157 = vmatpush1.msra.mxu0 0.0
    %1158 = vmatprep.subr.mxu0 0.0
    %1159 = vmatpush1.msra.mxu0 0.0
    %1160 = vmatprep.subr.mxu0 0.0
    %1161 = vmatpush1.msra.mxu0 0.0
    %1162 = vmatprep.subr.mxu0 0.0
    %1163 = vmatpush1.msra.mxu0 0.0
    %1164 = vmatprep.subr.mxu0 0.0
    %1165 = vmatpush1.msra.mxu0 0.0
    %1166 = vmatprep.subr.mxu0 0.0
    %1167 = vmatpush1.msra.mxu0 0.0
    %1168 = vmatprep.mubr.f32.mxu0 0.0
    %1169 = vmatmul.mubr.f32.gmra.mrb[0].mxu0 %v1099
    %v1170 = vpop.f32.mrb[0].mxu0
    %v1171 = vadd.f32 %v1090, %v1170
    %v1172 = vpop.f32.mrb[0].mxu0
    %1173 = vmatprep.mubr.f32.mxu0 0.0
    %1174 = vmatmul.mubr.f32.gmra.mrb[0].mxu0 %v1102
    %v1175 = vpop.f32.mrb[0].mxu0
    %v1176 = vadd.f32 %v1095, %v1175
    %v1177 = vpop.f32.mrb[0].mxu0
    %1178 = vdwg.mxu0
    %1179 = vrot.lane.b32.xlu0 %v182, 112
    %v1180 = vpop.permute.xlu0 %1179
    %1181 = vrot.lane.b32.xlu0 %v269, 112
    %v1182 = vpop.permute.xlu0 %1181
    %v1183 = vsel %vm364, %v1180, 0
    %v1185 = vsel %vm364, %v1182, 0
    %1187 = vmatprep.subr.mxu0 0.0
    %1188 = vmatpush1.xpose.msra.mxu0 %v1185
    %1189 = vmatprep.subr.mxu0 0.0
    %1190 = vmatpush1.xpose.msra.mxu0 0.0
    %1191 = vmatprep.subr.mxu0 0.0
    %1192 = vmatpush1.xpose.msra.mxu0 0.0
    %1193 = vmatprep.subr.mxu0 0.0
    %1194 = vmatpush1.xpose.msra.mxu0 0.0
    %1195 = vmatprep.subr.mxu0 0.0
    %1196 = vmatpush1.xpose.msra.mxu0 0.0
    %1197 = vmatprep.subr.mxu0 0.0
    %1198 = vmatpush1.xpose.msra.mxu0 0.0
    %1199 = vmatprep.subr.mxu0 0.0
    %1200 = vmatpush1.xpose.msra.mxu0 0.0
    %1201 = vmatprep.subr.mxu0 0.0
    %1202 = vmatpush1.xpose.msra.mxu0 0.0
    %1203 = vmatprep.subr.mxu0 0.0
    %1204 = vmatpush1.xpose.msra.mxu0 0.0
    %1205 = vmatprep.subr.mxu0 0.0
    %1206 = vmatpush1.xpose.msra.mxu0 0.0
    %1207 = vmatprep.subr.mxu0 0.0
    %1208 = vmatpush1.xpose.msra.mxu0 0.0
    %1209 = vmatprep.subr.mxu0 0.0
    %1210 = vmatpush1.xpose.msra.mxu0 0.0
    %1211 = vmatprep.subr.mxu0 0.0
    %1212 = vmatpush1.xpose.msra.mxu0 0.0
    %1213 = vmatprep.subr.mxu0 0.0
    %1214 = vmatpush1.xpose.msra.mxu0 0.0
    %1215 = vmatprep.subr.mxu0 0.0
    %1216 = vmatpush1.xpose.msra.mxu0 0.0
    %1217 = vmatprep.subr.mxu0 0.0
    %1218 = vmatpush1.xpose.msra.mxu0 0.0
    %1219 = vmatprep.subr.mxu0 0.0
    %1220 = vmatpush1.xpose.msra.mxu0 0.0
    %1221 = vmatprep.subr.mxu0 0.0
    %1222 = vmatpush1.xpose.msra.mxu0 0.0
    %1223 = vmatprep.subr.mxu0 0.0
    %1224 = vmatpush1.xpose.msra.mxu0 0.0
    %1225 = vmatprep.subr.mxu0 0.0
    %1226 = vmatpush1.xpose.msra.mxu0 0.0
    %1227 = vmatprep.subr.mxu0 0.0
    %1228 = vmatpush1.xpose.msra.mxu0 0.0
    %1229 = vmatprep.subr.mxu0 0.0
    %1230 = vmatpush1.xpose.msra.mxu0 0.0
    %1231 = vmatprep.subr.mxu0 0.0
    %1232 = vmatpush1.xpose.msra.mxu0 0.0
    %1233 = vmatprep.subr.mxu0 0.0
    %1234 = vmatpush1.xpose.msra.mxu0 0.0
    %1235 = vmatprep.subr.mxu0 0.0
    %1236 = vmatpush1.xpose.msra.mxu0 0.0
    %1237 = vmatprep.subr.mxu0 0.0
    %1238 = vmatpush1.xpose.msra.mxu0 0.0
    %1239 = vmatprep.subr.mxu0 0.0
    %1240 = vmatpush1.xpose.msra.mxu0 0.0
    %1241 = vmatprep.subr.mxu0 0.0
    %1242 = vmatpush1.xpose.msra.mxu0 0.0
    %1243 = vmatprep.subr.mxu0 0.0
    %1244 = vmatpush1.xpose.msra.mxu0 0.0
    %1245 = vmatprep.subr.mxu0 0.0
    %1246 = vmatpush1.xpose.msra.mxu0 0.0
    %1247 = vmatprep.subr.mxu0 0.0
    %1248 = vmatpush1.xpose.msra.mxu0 0.0
    %1249 = vmatprep.subr.mxu0 0.0
    %1250 = vmatpush1.xpose.msra.mxu0 0.0
    %1251 = vmatprep.mubr.f32.mxu0 0.0
    %1252 = vmatmul.mubr.f32.gmra.mrb[0].mxu0 %v1183
    %v1253 = vpop.f32.mrb[0].mxu0
    %v1254 = vadd.f32 0.0, %v1253
    %v1255 = vpop.f32.mrb[0].mxu0
    %1256 = vdwg.mxu0
    %1257 = vrot.lane.b32.xlu0 %v187, 112
    %v1258 = vpop.permute.xlu0 %1257
    %1259 = vrot.lane.b32.xlu0 %v274, 112
    %v1260 = vpop.permute.xlu0 %1259
    %v1261 = vsel %vm364, %v1258, 0
    %v1263 = vsel %vm364, %v1260, 0
    %1265 = vmatprep.subr.mxu0 0.0
    %1266 = vmatpush1.xpose.msra.mxu0 %v1263
    %1267 = vmatprep.subr.mxu0 0.0
    %1268 = vmatpush1.xpose.msra.mxu0 0.0
    %1269 = vmatprep.subr.mxu0 0.0
    %1270 = vmatpush1.xpose.msra.mxu0 0.0
    %1271 = vmatprep.subr.mxu0 0.0
    %1272 = vmatpush1.xpose.msra.mxu0 0.0
    %1273 = vmatprep.subr.mxu0 0.0
    %1274 = vmatpush1.xpose.msra.mxu0 0.0
    %1275 = vmatprep.subr.mxu0 0.0
    %1276 = vmatpush1.xpose.msra.mxu0 0.0
    %1277 = vmatprep.subr.mxu0 0.0
    %1278 = vmatpush1.xpose.msra.mxu0 0.0
    %1279 = vmatprep.subr.mxu0 0.0
    %1280 = vmatpush1.xpose.msra.mxu0 0.0
    %1281 = vmatprep.subr.mxu0 0.0
    %1282 = vmatpush1.xpose.msra.mxu0 0.0
    %1283 = vmatprep.subr.mxu0 0.0
    %1284 = vmatpush1.xpose.msra.mxu0 0.0
    %1285 = vmatprep.subr.mxu0 0.0
    %1286 = vmatpush1.xpose.msra.mxu0 0.0
    %1287 = vmatprep.subr.mxu0 0.0
    %1288 = vmatpush1.xpose.msra.mxu0 0.0
    %1289 = vmatprep.subr.mxu0 0.0
    %1290 = vmatpush1.xpose.msra.mxu0 0.0
    %1291 = vmatprep.subr.mxu0 0.0
    %1292 = vmatpush1.xpose.msra.mxu0 0.0
    %1293 = vmatprep.subr.mxu0 0.0
    %1294 = vmatpush1.xpose.msra.mxu0 0.0
    %1295 = vmatprep.subr.mxu0 0.0
    %1296 = vmatpush1.xpose.msra.mxu0 0.0
    %1297 = vmatprep.subr.mxu0 0.0
    %1298 = vmatpush1.xpose.msra.mxu0 0.0
    %1299 = vmatprep.subr.mxu0 0.0
    %1300 = vmatpush1.xpose.msra.mxu0 0.0
    %1301 = vmatprep.subr.mxu0 0.0
    %1302 = vmatpush1.xpose.msra.mxu0 0.0
    %1303 = vmatprep.subr.mxu0 0.0
    %1304 = vmatpush1.xpose.msra.mxu0 0.0
    %1305 = vmatprep.subr.mxu0 0.0
    %1306 = vmatpush1.xpose.msra.mxu0 0.0
    %1307 = vmatprep.subr.mxu0 0.0
    %1308 = vmatpush1.xpose.msra.mxu0 0.0
    %1309 = vmatprep.subr.mxu0 0.0
    %1310 = vmatpush1.xpose.msra.mxu0 0.0
    %1311 = vmatprep.subr.mxu0 0.0
    %1312 = vmatpush1.xpose.msra.mxu0 0.0
    %1313 = vmatprep.subr.mxu0 0.0
    %1314 = vmatpush1.xpose.msra.mxu0 0.0
    %1315 = vmatprep.subr.mxu0 0.0
    %1316 = vmatpush1.xpose.msra.mxu0 0.0
    %1317 = vmatprep.subr.mxu0 0.0
    %1318 = vmatpush1.xpose.msra.mxu0 0.0
    %1319 = vmatprep.subr.mxu0 0.0
    %1320 = vmatpush1.xpose.msra.mxu0 0.0
    %1321 = vmatprep.subr.mxu0 0.0
    %1322 = vmatpush1.xpose.msra.mxu0 0.0
    %1323 = vmatprep.subr.mxu0 0.0
    %1324 = vmatpush1.xpose.msra.mxu0 0.0
    %1325 = vmatprep.subr.mxu0 0.0
    %1326 = vmatpush1.xpose.msra.mxu0 0.0
    %1327 = vmatprep.subr.mxu0 0.0
    %1328 = vmatpush1.xpose.msra.mxu0 0.0
    %1329 = vmatprep.mubr.f32.mxu0 0.0
    %1330 = vmatmul.mubr.f32.gmra.mrb[0].mxu0 %v1261
    %v1331 = vpop.f32.mrb[0].mxu0
    %v1332 = vadd.f32 0.0, %v1331
    %v1333 = vpop.f32.mrb[0].mxu0
    %1334 = vdwg.mxu0
    %v1335 = vsel %vm364, %v1254, -inf
    %1336 = vmax.xlane.f32.xlu0 %v1335
    %v1337 = vpop.xlane.xlu0 %1336
    %v1338 = vsel %vm364, %v1332, -inf
    %1339 = vmax.xlane.f32.xlu0 %v1338
    %v1340 = vpop.xlane.xlu0 %1339
    %v1341 = vsub.f32 %v1254, %v1337
    %v1342 = vsub.f32 %v1332, %v1340
    %v1343 = vmul.f32 %v1341, 1.442695
    %v1344 = vpow.pop %v1343
    %v1345 = vmul.f32 %v1342, 1.442695
    %v1346 = vpow.pop %v1345
    %v1347 = vsel %vm364, %v1344, 0.0
    %1348 = vadd.xlane.f32.xlu0 %v1347
    %v1349 = vpop.xlane.xlu0 %1348
    %v1350 = vsel %vm364, %v1346, 0.0
    %1351 = vadd.xlane.f32.xlu0 %v1350
    %v1352 = vpop.xlane.xlu0 %1351
    %v1353 = vrcp.pop %v1349
    %v1354 = vrcp.pop %v1352
    %v1355 = vmul.f32 %v1344, %v1353
    %v1356 = vmul.f32 %v1346, %v1354
    %1357 = vrot.lane.b32.xlu0 %v356, 112
    %v1358 = vpop.permute.xlu0 %1357
    %v1361 = vsel %vm364, %v1355, 0
    %1363 = vmatprep.subr.mxu0 0.0
    %1364 = vmatpush1.msra.mxu0 %v1358
    %1365 = vmatprep.subr.mxu0 0.0
    %1366 = vmatpush1.msra.mxu0 0.0
    %1367 = vmatprep.subr.mxu0 0.0
    %1368 = vmatpush1.msra.mxu0 0.0
    %1369 = vmatprep.subr.mxu0 0.0
    %1370 = vmatpush1.msra.mxu0 0.0
    %1371 = vmatprep.subr.mxu0 0.0
    %1372 = vmatpush1.msra.mxu0 0.0
    %1373 = vmatprep.subr.mxu0 0.0
    %1374 = vmatpush1.msra.mxu0 0.0
    %1375 = vmatprep.subr.mxu0 0.0
    %1376 = vmatpush1.msra.mxu0 0.0
    %1377 = vmatprep.subr.mxu0 0.0
    %1378 = vmatpush1.msra.mxu0 0.0
    %1379 = vmatprep.subr.mxu0 0.0
    %1380 = vmatpush1.msra.mxu0 0.0
    %1381 = vmatprep.subr.mxu0 0.0
    %1382 = vmatpush1.msra.mxu0 0.0
    %1383 = vmatprep.subr.mxu0 0.0
    %1384 = vmatpush1.msra.mxu0 0.0
    %1385 = vmatprep.subr.mxu0 0.0
    %1386 = vmatpush1.msra.mxu0 0.0
    %1387 = vmatprep.subr.mxu0 0.0
    %1388 = vmatpush1.msra.mxu0 0.0
    %1389 = vmatprep.subr.mxu0 0.0
    %1390 = vmatpush1.msra.mxu0 0.0
    %1391 = vmatprep.subr.mxu0 0.0
    %1392 = vmatpush1.msra.mxu0 0.0
    %1393 = vmatprep.subr.mxu0 0.0
    %1394 = vmatpush1.msra.mxu0 0.0
    %1395 = vmatprep.subr.mxu0 0.0
    %1396 = vmatpush1.msra.mxu0 0.0
    %1397 = vmatprep.subr.mxu0 0.0
    %1398 = vmatpush1.msra.mxu0 0.0
    %1399 = vmatprep.subr.mxu0 0.0
    %1400 = vmatpush1.msra.mxu0 0.0
    %1401 = vmatprep.subr.mxu0 0.0
    %1402 = vmatpush1.msra.mxu0 0.0
    %1403 = vmatprep.subr.mxu0 0.0
    %1404 = vmatpush1.msra.mxu0 0.0
    %1405 = vmatprep.subr.mxu0 0.0
    %1406 = vmatpush1.msra.mxu0 0.0
    %1407 = vmatprep.subr.mxu0 0.0
    %1408 = vmatpush1.msra.mxu0 0.0
    %1409 = vmatprep.subr.mxu0 0.0
    %1410 = vmatpush1.msra.mxu0 0.0
    %1411 = vmatprep.subr.mxu0 0.0
    %1412 = vmatpush1.msra.mxu0 0.0
    %1413 = vmatprep.subr.mxu0 0.0
    %1414 = vmatpush1.msra.mxu0 0.0
    %1415 = vmatprep.subr.mxu0 0.0
    %1416 = vmatpush1.msra.mxu0 0.0
    %1417 = vmatprep.subr.mxu0 0.0
    %1418 = vmatpush1.msra.mxu0 0.0
    %1419 = vmatprep.subr.mxu0 0.0
    %1420 = vmatpush1.msra.mxu0 0.0
    %1421 = vmatprep.subr.mxu0 0.0
    %1422 = vmatpush1.msra.mxu0 0.0
    %1423 = vmatprep.subr.mxu0 0.0
    %1424 = vmatpush1.msra.mxu0 0.0
    %1425 = vmatprep.subr.mxu0 0.0
    %1426 = vmatpush1.msra.mxu0 0.0
    %1427 = vmatprep.mubr.f32.mxu0 0.0
    %1428 = vmatmul.mubr.f32.gmra.mrb[0].mxu0 %v1361
    %v1429 = vpop.f32.mrb[0].mxu0
    %v1430 = vadd.f32 0.0, %v1429
    %v1431 = vpop.f32.mrb[0].mxu0
    %1432 = vdwg.mxu0
    %1433 = vrot.lane.b32.xlu0 %v361, 112
    %v1434 = vpop.permute.xlu0 %1433
    %v1437 = vsel %vm364, %v1356, 0
    %1439 = vmatprep.subr.mxu0 0.0
    %1440 = vmatpush1.msra.mxu0 %v1434
    %1441 = vmatprep.subr.mxu0 0.0
    %1442 = vmatpush1.msra.mxu0 0.0
    %1443 = vmatprep.subr.mxu0 0.0
    %1444 = vmatpush1.msra.mxu0 0.0
    %1445 = vmatprep.subr.mxu0 0.0
    %1446 = vmatpush1.msra.mxu0 0.0
    %1447 = vmatprep.subr.mxu0 0.0
    %1448 = vmatpush1.msra.mxu0 0.0
    %1449 = vmatprep.subr.mxu0 0.0
    %1450 = vmatpush1.msra.mxu0 0.0
    %1451 = vmatprep.subr.mxu0 0.0
    %1452 = vmatpush1.msra.mxu0 0.0
    %1453 = vmatprep.subr.mxu0 0.0
    %1454 = vmatpush1.msra.mxu0 0.0
    %1455 = vmatprep.subr.mxu0 0.0
    %1456 = vmatpush1.msra.mxu0 0.0
    %1457 = vmatprep.subr.mxu0 0.0
    %1458 = vmatpush1.msra.mxu0 0.0
    %1459 = vmatprep.subr.mxu0 0.0
    %1460 = vmatpush1.msra.mxu0 0.0
    %1461 = vmatprep.subr.mxu0 0.0
    %1462 = vmatpush1.msra.mxu0 0.0
    %1463 = vmatprep.subr.mxu0 0.0
    %1464 = vmatpush1.msra.mxu0 0.0
    %1465 = vmatprep.subr.mxu0 0.0
    %1466 = vmatpush1.msra.mxu0 0.0
    %1467 = vmatprep.subr.mxu0 0.0
    %1468 = vmatpush1.msra.mxu0 0.0
    %1469 = vmatprep.subr.mxu0 0.0
    %1470 = vmatpush1.msra.mxu0 0.0
    %1471 = vmatprep.subr.mxu0 0.0
    %1472 = vmatpush1.msra.mxu0 0.0
    %1473 = vmatprep.subr.mxu0 0.0
    %1474 = vmatpush1.msra.mxu0 0.0
    %1475 = vmatprep.subr.mxu0 0.0
    %1476 = vmatpush1.msra.mxu0 0.0
    %1477 = vmatprep.subr.mxu0 0.0
    %1478 = vmatpush1.msra.mxu0 0.0
    %1479 = vmatprep.subr.mxu0 0.0
    %1480 = vmatpush1.msra.mxu0 0.0
    %1481 = vmatprep.subr.mxu0 0.0
    %1482 = vmatpush1.msra.mxu0 0.0
    %1483 = vmatprep.subr.mxu0 0.0
    %1484 = vmatpush1.msra.mxu0 0.0
    %1485 = vmatprep.subr.mxu0 0.0
    %1486 = vmatpush1.msra.mxu0 0.0
    %1487 = vmatprep.subr.mxu0 0.0
    %1488 = vmatpush1.msra.mxu0 0.0
    %1489 = vmatprep.subr.mxu0 0.0
    %1490 = vmatpush1.msra.mxu0 0.0
    %1491 = vmatprep.subr.mxu0 0.0
    %1492 = vmatpush1.msra.mxu0 0.0
    %1493 = vmatprep.subr.mxu0 0.0
    %1494 = vmatpush1.msra.mxu0 0.0
    %1495 = vmatprep.subr.mxu0 0.0
    %1496 = vmatpush1.msra.mxu0 0.0
    %1497 = vmatprep.subr.mxu0 0.0
    %1498 = vmatpush1.msra.mxu0 0.0
    %1499 = vmatprep.subr.mxu0 0.0
    %1500 = vmatpush1.msra.mxu0 0.0
    %1501 = vmatprep.subr.mxu0 0.0
    %1502 = vmatpush1.msra.mxu0 0.0
    %1503 = vmatprep.mubr.f32.mxu0 0.0
    %1504 = vmatmul.mubr.f32.gmra.mrb[0].mxu0 %v1437
    %v1505 = vpop.f32.mrb[0].mxu0
    %v1506 = vadd.f32 0.0, %v1505
    %v1507 = vpop.f32.mrb[0].mxu0
    %1508 = vdwg.mxu0
    %v1510 = vsel %vm364, %v1430, 0
    %v1513 = vsel %vm364, %v1506, 0
    %1515 = vmatprep.subr.mxu0 0.0
    %1516 = vmatpush1.msra.mxu0 %v90
    %1517 = vmatprep.subr.mxu0 0.0
    %1518 = vmatpush1.msra.mxu0 0.0
    %1519 = vmatprep.subr.mxu0 0.0
    %1520 = vmatpush1.msra.mxu0 0.0
    %1521 = vmatprep.subr.mxu0 0.0
    %1522 = vmatpush1.msra.mxu0 0.0
    %1523 = vmatprep.subr.mxu0 0.0
    %1524 = vmatpush1.msra.mxu0 0.0
    %1525 = vmatprep.subr.mxu0 0.0
    %1526 = vmatpush1.msra.mxu0 0.0
    %1527 = vmatprep.subr.mxu0 0.0
    %1528 = vmatpush1.msra.mxu0 0.0
    %1529 = vmatprep.subr.mxu0 0.0
    %1530 = vmatpush1.msra.mxu0 0.0
    %1531 = vmatprep.subr.mxu0 0.0
    %1532 = vmatpush1.msra.mxu0 0.0
    %1533 = vmatprep.subr.mxu0 0.0
    %1534 = vmatpush1.msra.mxu0 0.0
    %1535 = vmatprep.subr.mxu0 0.0
    %1536 = vmatpush1.msra.mxu0 0.0
    %1537 = vmatprep.subr.mxu0 0.0
    %1538 = vmatpush1.msra.mxu0 0.0
    %1539 = vmatprep.subr.mxu0 0.0
    %1540 = vmatpush1.msra.mxu0 0.0
    %1541 = vmatprep.subr.mxu0 0.0
    %1542 = vmatpush1.msra.mxu0 0.0
    %1543 = vmatprep.subr.mxu0 0.0
    %1544 = vmatpush1.msra.mxu0 0.0
    %1545 = vmatprep.subr.mxu0 0.0
    %1546 = vmatpush1.msra.mxu0 0.0
    %1547 = vmatprep.subr.mxu0 0.0
    %1548 = vmatpush1.msra.mxu0 0.0
    %1549 = vmatprep.subr.mxu0 0.0
    %1550 = vmatpush1.msra.mxu0 0.0
    %1551 = vmatprep.subr.mxu0 0.0
    %1552 = vmatpush1.msra.mxu0 0.0
    %1553 = vmatprep.subr.mxu0 0.0
    %1554 = vmatpush1.msra.mxu0 0.0
    %1555 = vmatprep.subr.mxu0 0.0
    %1556 = vmatpush1.msra.mxu0 0.0
    %1557 = vmatprep.subr.mxu0 0.0
    %1558 = vmatpush1.msra.mxu0 0.0
    %1559 = vmatprep.subr.mxu0 0.0
    %1560 = vmatpush1.msra.mxu0 0.0
    %1561 = vmatprep.subr.mxu0 0.0
    %1562 = vmatpush1.msra.mxu0 0.0
    %1563 = vmatprep.subr.mxu0 0.0
    %1564 = vmatpush1.msra.mxu0 0.0
    %1565 = vmatprep.subr.mxu0 0.0
    %1566 = vmatpush1.msra.mxu0 0.0
    %1567 = vmatprep.subr.mxu0 0.0
    %1568 = vmatpush1.msra.mxu0 0.0
    %1569 = vmatprep.subr.mxu0 0.0
    %1570 = vmatpush1.msra.mxu0 0.0
    %1571 = vmatprep.subr.mxu0 0.0
    %1572 = vmatpush1.msra.mxu0 0.0
    %1573 = vmatprep.subr.mxu0 0.0
    %1574 = vmatpush1.msra.mxu0 0.0
    %1575 = vmatprep.subr.mxu0 0.0
    %1576 = vmatpush1.msra.mxu0 0.0
    %1577 = vmatprep.subr.mxu0 0.0
    %1578 = vmatpush1.msra.mxu0 0.0
    %1579 = vmatprep.mubr.f32.mxu0 0.0
    %1580 = vmatmul.mubr.f32.gmra.mrb[0].mxu0 %v1510
    %v1581 = vpop.f32.mrb[0].mxu0
    %v1582 = vadd.f32 0.0, %v1581
    %v1583 = vpop.f32.mrb[0].mxu0
    %1584 = vmatprep.mubr.f32.mxu0 0.0
    %1585 = vmatmul.mubr.f32.gmra.mrb[0].mxu0 %v1513
    %v1586 = vpop.f32.mrb[0].mxu0
    %v1587 = vadd.f32 0.0, %v1586
    %v1588 = vpop.f32.mrb[0].mxu0
    %1589 = vdwg.mxu0
    %v1590 = vadd.f32 %v1171, %v1582
    %v1591 = vadd.f32 %v1176, %v1587
    %1592 = vrot.lane.b32.xlu0 %v182, 104
    %v1593 = vpop.permute.xlu0 %1592
    %1594 = vrot.lane.b32.xlu0 %v269, 104
    %v1595 = vpop.permute.xlu0 %1594
    %v1596 = vsel %vm364, %v1593, 0
    %v1598 = vsel %vm364, %v1595, 0
    %1600 = vmatprep.subr.mxu0 0.0
    %1601 = vmatpush1.xpose.msra.mxu0 %v1598
    %1602 = vmatprep.subr.mxu0 0.0
    %1603 = vmatpush1.xpose.msra.mxu0 0.0
    %1604 = vmatprep.subr.mxu0 0.0
    %1605 = vmatpush1.xpose.msra.mxu0 0.0
    %1606 = vmatprep.subr.mxu0 0.0
    %1607 = vmatpush1.xpose.msra.mxu0 0.0
    %1608 = vmatprep.subr.mxu0 0.0
    %1609 = vmatpush1.xpose.msra.mxu0 0.0
    %1610 = vmatprep.subr.mxu0 0.0
    %1611 = vmatpush1.xpose.msra.mxu0 0.0
    %1612 = vmatprep.subr.mxu0 0.0
    %1613 = vmatpush1.xpose.msra.mxu0 0.0
    %1614 = vmatprep.subr.mxu0 0.0
    %1615 = vmatpush1.xpose.msra.mxu0 0.0
    %1616 = vmatprep.subr.mxu0 0.0
    %1617 = vmatpush1.xpose.msra.mxu0 0.0
    %1618 = vmatprep.subr.mxu0 0.0
    %1619 = vmatpush1.xpose.msra.mxu0 0.0
    %1620 = vmatprep.subr.mxu0 0.0
    %1621 = vmatpush1.xpose.msra.mxu0 0.0
    %1622 = vmatprep.subr.mxu0 0.0
    %1623 = vmatpush1.xpose.msra.mxu0 0.0
    %1624 = vmatprep.subr.mxu0 0.0
    %1625 = vmatpush1.xpose.msra.mxu0 0.0
    %1626 = vmatprep.subr.mxu0 0.0
    %1627 = vmatpush1.xpose.msra.mxu0 0.0
    %1628 = vmatprep.subr.mxu0 0.0
    %1629 = vmatpush1.xpose.msra.mxu0 0.0
    %1630 = vmatprep.subr.mxu0 0.0
    %1631 = vmatpush1.xpose.msra.mxu0 0.0
    %1632 = vmatprep.subr.mxu0 0.0
    %1633 = vmatpush1.xpose.msra.mxu0 0.0
    %1634 = vmatprep.subr.mxu0 0.0
    %1635 = vmatpush1.xpose.msra.mxu0 0.0
    %1636 = vmatprep.subr.mxu0 0.0
    %1637 = vmatpush1.xpose.msra.mxu0 0.0
    %1638 = vmatprep.subr.mxu0 0.0
    %1639 = vmatpush1.xpose.msra.mxu0 0.0
    %1640 = vmatprep.subr.mxu0 0.0
    %1641 = vmatpush1.xpose.msra.mxu0 0.0
    %1642 = vmatprep.subr.mxu0 0.0
    %1643 = vmatpush1.xpose.msra.mxu0 0.0
    %1644 = vmatprep.subr.mxu0 0.0
    %1645 = vmatpush1.xpose.msra.mxu0 0.0
    %1646 = vmatprep.subr.mxu0 0.0
    %1647 = vmatpush1.xpose.msra.mxu0 0.0
    %1648 = vmatprep.subr.mxu0 0.0
    %1649 = vmatpush1.xpose.msra.mxu0 0.0
    %1650 = vmatprep.subr.mxu0 0.0
    %1651 = vmatpush1.xpose.msra.mxu0 0.0
    %1652 = vmatprep.subr.mxu0 0.0
    %1653 = vmatpush1.xpose.msra.mxu0 0.0
    %1654 = vmatprep.subr.mxu0 0.0
    %1655 = vmatpush1.xpose.msra.mxu0 0.0
    %1656 = vmatprep.subr.mxu0 0.0
    %1657 = vmatpush1.xpose.msra.mxu0 0.0
    %1658 = vmatprep.subr.mxu0 0.0
    %1659 = vmatpush1.xpose.msra.mxu0 0.0
    %1660 = vmatprep.subr.mxu0 0.0
    %1661 = vmatpush1.xpose.msra.mxu0 0.0
    %1662 = vmatprep.subr.mxu0 0.0
    %1663 = vmatpush1.xpose.msra.mxu0 0.0
    %1664 = vmatprep.mubr.f32.mxu0 0.0
    %1665 = vmatmul.mubr.f32.gmra.mrb[0].mxu0 %v1596
    %v1666 = vpop.f32.mrb[0].mxu0
    %v1667 = vadd.f32 0.0, %v1666
    %v1668 = vpop.f32.mrb[0].mxu0
    %1669 = vdwg.mxu0
    %1670 = vrot.lane.b32.xlu0 %v187, 104
    %v1671 = vpop.permute.xlu0 %1670
    %1672 = vrot.lane.b32.xlu0 %v274, 104
    %v1673 = vpop.permute.xlu0 %1672
    %v1674 = vsel %vm364, %v1671, 0
    %v1676 = vsel %vm364, %v1673, 0
    %1678 = vmatprep.subr.mxu0 0.0
    %1679 = vmatpush1.xpose.msra.mxu0 %v1676
    %1680 = vmatprep.subr.mxu0 0.0
    %1681 = vmatpush1.xpose.msra.mxu0 0.0
    %1682 = vmatprep.subr.mxu0 0.0
    %1683 = vmatpush1.xpose.msra.mxu0 0.0
    %1684 = vmatprep.subr.mxu0 0.0
    %1685 = vmatpush1.xpose.msra.mxu0 0.0
    %1686 = vmatprep.subr.mxu0 0.0
    %1687 = vmatpush1.xpose.msra.mxu0 0.0
    %1688 = vmatprep.subr.mxu0 0.0
    %1689 = vmatpush1.xpose.msra.mxu0 0.0
    %1690 = vmatprep.subr.mxu0 0.0
    %1691 = vmatpush1.xpose.msra.mxu0 0.0
    %1692 = vmatprep.subr.mxu0 0.0
    %1693 = vmatpush1.xpose.msra.mxu0 0.0
    %1694 = vmatprep.subr.mxu0 0.0
    %1695 = vmatpush1.xpose.msra.mxu0 0.0
    %1696 = vmatprep.subr.mxu0 0.0
    %1697 = vmatpush1.xpose.msra.mxu0 0.0
    %1698 = vmatprep.subr.mxu0 0.0
    %1699 = vmatpush1.xpose.msra.mxu0 0.0
    %1700 = vmatprep.subr.mxu0 0.0
    %1701 = vmatpush1.xpose.msra.mxu0 0.0
    %1702 = vmatprep.subr.mxu0 0.0
    %1703 = vmatpush1.xpose.msra.mxu0 0.0
    %1704 = vmatprep.subr.mxu0 0.0
    %1705 = vmatpush1.xpose.msra.mxu0 0.0
    %1706 = vmatprep.subr.mxu0 0.0
    %1707 = vmatpush1.xpose.msra.mxu0 0.0
    %1708 = vmatprep.subr.mxu0 0.0
    %1709 = vmatpush1.xpose.msra.mxu0 0.0
    %1710 = vmatprep.subr.mxu0 0.0
    %1711 = vmatpush1.xpose.msra.mxu0 0.0
    %1712 = vmatprep.subr.mxu0 0.0
    %1713 = vmatpush1.xpose.msra.mxu0 0.0
    %1714 = vmatprep.subr.mxu0 0.0
    %1715 = vmatpush1.xpose.msra.mxu0 0.0
    %1716 = vmatprep.subr.mxu0 0.0
    %1717 = vmatpush1.xpose.msra.mxu0 0.0
    %1718 = vmatprep.subr.mxu0 0.0
    %1719 = vmatpush1.xpose.msra.mxu0 0.0
    %1720 = vmatprep.subr.mxu0 0.0
    %1721 = vmatpush1.xpose.msra.mxu0 0.0
    %1722 = vmatprep.subr.mxu0 0.0
    %1723 = vmatpush1.xpose.msra.mxu0 0.0
    %1724 = vmatprep.subr.mxu0 0.0
    %1725 = vmatpush1.xpose.msra.mxu0 0.0
    %1726 = vmatprep.subr.mxu0 0.0
    %1727 = vmatpush1.xpose.msra.mxu0 0.0
    %1728 = vmatprep.subr.mxu0 0.0
    %1729 = vmatpush1.xpose.msra.mxu0 0.0
    %1730 = vmatprep.subr.mxu0 0.0
    %1731 = vmatpush1.xpose.msra.mxu0 0.0
    %1732 = vmatprep.subr.mxu0 0.0
    %1733 = vmatpush1.xpose.msra.mxu0 0.0
    %1734 = vmatprep.subr.mxu0 0.0
    %1735 = vmatpush1.xpose.msra.mxu0 0.0
    %1736 = vmatprep.subr.mxu0 0.0
    %1737 = vmatpush1.xpose.msra.mxu0 0.0
    %1738 = vmatprep.subr.mxu0 0.0
    %1739 = vmatpush1.xpose.msra.mxu0 0.0
    %1740 = vmatprep.subr.mxu0 0.0
    %1741 = vmatpush1.xpose.msra.mxu0 0.0
    %1742 = vmatprep.mubr.f32.mxu0 0.0
    %1743 = vmatmul.mubr.f32.gmra.mrb[0].mxu0 %v1674
    %v1744 = vpop.f32.mrb[0].mxu0
    %v1745 = vadd.f32 0.0, %v1744
    %v1746 = vpop.f32.mrb[0].mxu0
    %1747 = vdwg.mxu0
    %v1748 = vsel %vm364, %v1667, -inf
    %1749 = vmax.xlane.f32.xlu0 %v1748
    %v1750 = vpop.xlane.xlu0 %1749
    %v1751 = vsel %vm364, %v1745, -inf
    %1752 = vmax.xlane.f32.xlu0 %v1751
    %v1753 = vpop.xlane.xlu0 %1752
    %v1754 = vsub.f32 %v1667, %v1750
    %v1755 = vsub.f32 %v1745, %v1753
    %v1756 = vmul.f32 %v1754, 1.442695
    %v1757 = vpow.pop %v1756
    %v1758 = vmul.f32 %v1755, 1.442695
    %v1759 = vpow.pop %v1758
    %v1760 = vsel %vm364, %v1757, 0.0
    %1761 = vadd.xlane.f32.xlu0 %v1760
    %v1762 = vpop.xlane.xlu0 %1761
    %v1763 = vsel %vm364, %v1759, 0.0
    %1764 = vadd.xlane.f32.xlu0 %v1763
    %v1765 = vpop.xlane.xlu0 %1764
    %v1766 = vrcp.pop %v1762
    %v1767 = vrcp.pop %v1765
    %v1768 = vmul.f32 %v1757, %v1766
    %v1769 = vmul.f32 %v1759, %v1767
    %1770 = vrot.lane.b32.xlu0 %v356, 104
    %v1771 = vpop.permute.xlu0 %1770
    %v1774 = vsel %vm364, %v1768, 0
    %1776 = vmatprep.subr.mxu0 0.0
    %1777 = vmatpush1.msra.mxu0 %v1771
    %1778 = vmatprep.subr.mxu0 0.0
    %1779 = vmatpush1.msra.mxu0 0.0
    %1780 = vmatprep.subr.mxu0 0.0
    %1781 = vmatpush1.msra.mxu0 0.0
    %1782 = vmatprep.subr.mxu0 0.0
    %1783 = vmatpush1.msra.mxu0 0.0
    %1784 = vmatprep.subr.mxu0 0.0
    %1785 = vmatpush1.msra.mxu0 0.0
    %1786 = vmatprep.subr.mxu0 0.0
    %1787 = vmatpush1.msra.mxu0 0.0
    %1788 = vmatprep.subr.mxu0 0.0
    %1789 = vmatpush1.msra.mxu0 0.0
    %1790 = vmatprep.subr.mxu0 0.0
    %1791 = vmatpush1.msra.mxu0 0.0
    %1792 = vmatprep.subr.mxu0 0.0
    %1793 = vmatpush1.msra.mxu0 0.0
    %1794 = vmatprep.subr.mxu0 0.0
    %1795 = vmatpush1.msra.mxu0 0.0
    %1796 = vmatprep.subr.mxu0 0.0
    %1797 = vmatpush1.msra.mxu0 0.0
    %1798 = vmatprep.subr.mxu0 0.0
    %1799 = vmatpush1.msra.mxu0 0.0
    %1800 = vmatprep.subr.mxu0 0.0
    %1801 = vmatpush1.msra.mxu0 0.0
    %1802 = vmatprep.subr.mxu0 0.0
    %1803 = vmatpush1.msra.mxu0 0.0
    %1804 = vmatprep.subr.mxu0 0.0
    %1805 = vmatpush1.msra.mxu0 0.0
    %1806 = vmatprep.subr.mxu0 0.0
    %1807 = vmatpush1.msra.mxu0 0.0
    %1808 = vmatprep.subr.mxu0 0.0
    %1809 = vmatpush1.msra.mxu0 0.0
    %1810 = vmatprep.subr.mxu0 0.0
    %1811 = vmatpush1.msra.mxu0 0.0
    %1812 = vmatprep.subr.mxu0 0.0
    %1813 = vmatpush1.msra.mxu0 0.0
    %1814 = vmatprep.subr.mxu0 0.0
    %1815 = vmatpush1.msra.mxu0 0.0
    %1816 = vmatprep.subr.mxu0 0.0
    %1817 = vmatpush1.msra.mxu0 0.0
    %1818 = vmatprep.subr.mxu0 0.0
    %1819 = vmatpush1.msra.mxu0 0.0
    %1820 = vmatprep.subr.mxu0 0.0
    %1821 = vmatpush1.msra.mxu0 0.0
    %1822 = vmatprep.subr.mxu0 0.0
    %1823 = vmatpush1.msra.mxu0 0.0
    %1824 = vmatprep.subr.mxu0 0.0
    %1825 = vmatpush1.msra.mxu0 0.0
    %1826 = vmatprep.subr.mxu0 0.0
    %1827 = vmatpush1.msra.mxu0 0.0
    %1828 = vmatprep.subr.mxu0 0.0
    %1829 = vmatpush1.msra.mxu0 0.0
    %1830 = vmatprep.subr.mxu0 0.0
    %1831 = vmatpush1.msra.mxu0 0.0
    %1832 = vmatprep.subr.mxu0 0.0
    %1833 = vmatpush1.msra.mxu0 0.0
    %1834 = vmatprep.subr.mxu0 0.0
    %1835 = vmatpush1.msra.mxu0 0.0
    %1836 = vmatprep.subr.mxu0 0.0
    %1837 = vmatpush1.msra.mxu0 0.0
    %1838 = vmatprep.subr.mxu0 0.0
    %1839 = vmatpush1.msra.mxu0 0.0
    %1840 = vmatprep.mubr.f32.mxu0 0.0
    %1841 = vmatmul.mubr.f32.gmra.mrb[0].mxu0 %v1774
    %v1842 = vpop.f32.mrb[0].mxu0
    %v1843 = vadd.f32 0.0, %v1842
    %v1844 = vpop.f32.mrb[0].mxu0
    %1845 = vdwg.mxu0
    %1846 = vrot.lane.b32.xlu0 %v361, 104
    %v1847 = vpop.permute.xlu0 %1846
    %v1850 = vsel %vm364, %v1769, 0
    %1852 = vmatprep.subr.mxu0 0.0
    %1853 = vmatpush1.msra.mxu0 %v1847
    %1854 = vmatprep.subr.mxu0 0.0
    %1855 = vmatpush1.msra.mxu0 0.0
    %1856 = vmatprep.subr.mxu0 0.0
    %1857 = vmatpush1.msra.mxu0 0.0
    %1858 = vmatprep.subr.mxu0 0.0
    %1859 = vmatpush1.msra.mxu0 0.0
    %1860 = vmatprep.subr.mxu0 0.0
    %1861 = vmatpush1.msra.mxu0 0.0
    %1862 = vmatprep.subr.mxu0 0.0
    %1863 = vmatpush1.msra.mxu0 0.0
    %1864 = vmatprep.subr.mxu0 0.0
    %1865 = vmatpush1.msra.mxu0 0.0
    %1866 = vmatprep.subr.mxu0 0.0
    %1867 = vmatpush1.msra.mxu0 0.0
    %1868 = vmatprep.subr.mxu0 0.0
    %1869 = vmatpush1.msra.mxu0 0.0
    %1870 = vmatprep.subr.mxu0 0.0
    %1871 = vmatpush1.msra.mxu0 0.0
    %1872 = vmatprep.subr.mxu0 0.0
    %1873 = vmatpush1.msra.mxu0 0.0
    %1874 = vmatprep.subr.mxu0 0.0
    %1875 = vmatpush1.msra.mxu0 0.0
    %1876 = vmatprep.subr.mxu0 0.0
    %1877 = vmatpush1.msra.mxu0 0.0
    %1878 = vmatprep.subr.mxu0 0.0
    %1879 = vmatpush1.msra.mxu0 0.0
    %1880 = vmatprep.subr.mxu0 0.0
    %1881 = vmatpush1.msra.mxu0 0.0
    %1882 = vmatprep.subr.mxu0 0.0
    %1883 = vmatpush1.msra.mxu0 0.0
    %1884 = vmatprep.subr.mxu0 0.0
    %1885 = vmatpush1.msra.mxu0 0.0
    %1886 = vmatprep.subr.mxu0 0.0
    %1887 = vmatpush1.msra.mxu0 0.0
    %1888 = vmatprep.subr.mxu0 0.0
    %1889 = vmatpush1.msra.mxu0 0.0
    %1890 = vmatprep.subr.mxu0 0.0
    %1891 = vmatpush1.msra.mxu0 0.0
    %1892 = vmatprep.subr.mxu0 0.0
    %1893 = vmatpush1.msra.mxu0 0.0
    %1894 = vmatprep.subr.mxu0 0.0
    %1895 = vmatpush1.msra.mxu0 0.0
    %1896 = vmatprep.subr.mxu0 0.0
    %1897 = vmatpush1.msra.mxu0 0.0
    %1898 = vmatprep.subr.mxu0 0.0
    %1899 = vmatpush1.msra.mxu0 0.0
    %1900 = vmatprep.subr.mxu0 0.0
    %1901 = vmatpush1.msra.mxu0 0.0
    %1902 = vmatprep.subr.mxu0 0.0
    %1903 = vmatpush1.msra.mxu0 0.0
    %1904 = vmatprep.subr.mxu0 0.0
    %1905 = vmatpush1.msra.mxu0 0.0
    %1906 = vmatprep.subr.mxu0 0.0
    %1907 = vmatpush1.msra.mxu0 0.0
    %1908 = vmatprep.subr.mxu0 0.0
    %1909 = vmatpush1.msra.mxu0 0.0
    %1910 = vmatprep.subr.mxu0 0.0
    %1911 = vmatpush1.msra.mxu0 0.0
    %1912 = vmatprep.subr.mxu0 0.0
    %1913 = vmatpush1.msra.mxu0 0.0
    %1914 = vmatprep.subr.mxu0 0.0
    %1915 = vmatpush1.msra.mxu0 0.0
    %1916 = vmatprep.mubr.f32.mxu0 0.0
    %1917 = vmatmul.mubr.f32.gmra.mrb[0].mxu0 %v1850
    %v1918 = vpop.f32.mrb[0].mxu0
    %v1919 = vadd.f32 0.0, %v1918
    %v1920 = vpop.f32.mrb[0].mxu0
    %1921 = vdwg.mxu0
    %v1923 = vsel %vm364, %v1843, 0
    %v1926 = vsel %vm364, %v1919, 0
    %1928 = vmatprep.subr.mxu0 0.0
    %1929 = vmatpush1.msra.mxu0 %v91
    %1930 = vmatprep.subr.mxu0 0.0
    %1931 = vmatpush1.msra.mxu0 0.0
    %1932 = vmatprep.subr.mxu0 0.0
    %1933 = vmatpush1.msra.mxu0 0.0
    %1934 = vmatprep.subr.mxu0 0.0
    %1935 = vmatpush1.msra.mxu0 0.0
    %1936 = vmatprep.subr.mxu0 0.0
    %1937 = vmatpush1.msra.mxu0 0.0
    %1938 = vmatprep.subr.mxu0 0.0
    %1939 = vmatpush1.msra.mxu0 0.0
    %1940 = vmatprep.subr.mxu0 0.0
    %1941 = vmatpush1.msra.mxu0 0.0
    %1942 = vmatprep.subr.mxu0 0.0
    %1943 = vmatpush1.msra.mxu0 0.0
    %1944 = vmatprep.subr.mxu0 0.0
    %1945 = vmatpush1.msra.mxu0 0.0
    %1946 = vmatprep.subr.mxu0 0.0
    %1947 = vmatpush1.msra.mxu0 0.0
    %1948 = vmatprep.subr.mxu0 0.0
    %1949 = vmatpush1.msra.mxu0 0.0
    %1950 = vmatprep.subr.mxu0 0.0
    %1951 = vmatpush1.msra.mxu0 0.0
    %1952 = vmatprep.subr.mxu0 0.0
    %1953 = vmatpush1.msra.mxu0 0.0
    %1954 = vmatprep.subr.mxu0 0.0
    %1955 = vmatpush1.msra.mxu0 0.0
    %1956 = vmatprep.subr.mxu0 0.0
    %1957 = vmatpush1.msra.mxu0 0.0
    %1958 = vmatprep.subr.mxu0 0.0
    %1959 = vmatpush1.msra.mxu0 0.0
    %1960 = vmatprep.subr.mxu0 0.0
    %1961 = vmatpush1.msra.mxu0 0.0
    %1962 = vmatprep.subr.mxu0 0.0
    %1963 = vmatpush1.msra.mxu0 0.0
    %1964 = vmatprep.subr.mxu0 0.0
    %1965 = vmatpush1.msra.mxu0 0.0
    %1966 = vmatprep.subr.mxu0 0.0
    %1967 = vmatpush1.msra.mxu0 0.0
    %1968 = vmatprep.subr.mxu0 0.0
    %1969 = vmatpush1.msra.mxu0 0.0
    %1970 = vmatprep.subr.mxu0 0.0
    %1971 = vmatpush1.msra.mxu0 0.0
    %1972 = vmatprep.subr.mxu0 0.0
    %1973 = vmatpush1.msra.mxu0 0.0
    %1974 = vmatprep.subr.mxu0 0.0
    %1975 = vmatpush1.msra.mxu0 0.0
    %1976 = vmatprep.subr.mxu0 0.0
    %1977 = vmatpush1.msra.mxu0 0.0
    %1978 = vmatprep.subr.mxu0 0.0
    %1979 = vmatpush1.msra.mxu0 0.0
    %1980 = vmatprep.subr.mxu0 0.0
    %1981 = vmatpush1.msra.mxu0 0.0
    %1982 = vmatprep.subr.mxu0 0.0
    %1983 = vmatpush1.msra.mxu0 0.0
    %1984 = vmatprep.subr.mxu0 0.0
    %1985 = vmatpush1.msra.mxu0 0.0
    %1986 = vmatprep.subr.mxu0 0.0
    %1987 = vmatpush1.msra.mxu0 0.0
    %1988 = vmatprep.subr.mxu0 0.0
    %1989 = vmatpush1.msra.mxu0 0.0
    %1990 = vmatprep.subr.mxu0 0.0
    %1991 = vmatpush1.msra.mxu0 0.0
    %1992 = vmatprep.mubr.f32.mxu0 0.0
    %1993 = vmatmul.mubr.f32.gmra.mrb[0].mxu0 %v1923
    %v1994 = vpop.f32.mrb[0].mxu0
    %v1995 = vadd.f32 0.0, %v1994
    %v1996 = vpop.f32.mrb[0].mxu0
    %1997 = vmatprep.mubr.f32.mxu0 0.0
    %1998 = vmatmul.mubr.f32.gmra.mrb[0].mxu0 %v1926
    %v1999 = vpop.f32.mrb[0].mxu0
    %v2000 = vadd.f32 0.0, %v1999
    %v2001 = vpop.f32.mrb[0].mxu0
    %2002 = vdwg.mxu0
    %v2003 = vadd.f32 %v1590, %v1995
    %v2004 = vadd.f32 %v1591, %v2000
    %v2006 = vlaneseq
    %v2007 = vshrl.u32 %v2006, 7
    %v2008 = vsub.s32 0, %v2007
    %v2009 = vrot.slane %v95, %v2008
    %v2011 = vadd.f32 %v2003, %v2009
    %v2012 = vadd.f32 %v2004, %v2009
    %2013 = vst.msk [vmem:[#allocation10] sm:$0xff] %vm108, %v2011
    %2014 = vst.msk [vmem:[#allocation10 + $0x8] sm:$0xff] %vm108, %v2012
    // Predicated region
    $region38: #{tpu_custom_call.1} parent=1 // pred_check
      _
    $region39: #{tpu_custom_call.1} parent=1 // pred_check_branch
      %2016 = sbr.rel (0) target = $region41
    $region40: #{tpu_custom_call.1} parent=1 // pred_region
      %s2018 = ssub.s32 256, 256
      %2019 = vsyncadd [#allocation4], %s2018
      %s2020 = sshll.u32 [#allocation10], 4
      %s2021 = int_to_ptr.vmem [resolvable:$true] %s2020
      %2026 = dma.vmem_to_hbm [thread:$0]  %s2021, 256, %s5, [#allocation4], 128, 128, 8
    $region41: #{tpu_custom_call.1} parent=1 // pred_fallthru
      _
    // Predicated region
    $region42: #{tpu_custom_call.1} parent=1 // pred_check
      _
    $region43: #{tpu_custom_call.1} parent=1 // pred_check_branch
      %2028 = sbr.rel (0) target = $region45
    $region44: #{tpu_custom_call.1} parent=1 // pred_region
      %2029 = dma.done [#allocation4], 256
    $region45: #{tpu_custom_call.1} parent=1 // pred_fallthru
      _
    %2030 = vsyncpa [#allocation3], 1
    %2031 = vsyncpa [#allocation6], 1
    %2032 = vsyncpa [#allocation9], 1
    %2033 = vsyncpa [#allocation4], 1

</llo_original>
